<compile_context>
chip_gen: v7x
topology: tpu7x:2x2x1
jax: 0.10.0
libtpu: 0.0.40
codegen_flags: <defaults>
</compile_context>

<pallas_src>
import functools

import jax
import jax.numpy as jnp
from jax.experimental import pallas as pl
from jax.experimental.pallas import tpu as pltpu


LANE_TILE = 8192                     # lane-axis tile (multiple of 128)
VMEM_LIMIT = 48 * 1024 * 1024        # explicit scoped-VMEM limit (safe on v5e/v6e/v7x)
BN_EPS = 1e-5


def _round_up(x, m):
    return ((x + m - 1) // m) * m


def _lane_tiling(M):
    """Pick a lane tile (multiple of 128, <= LANE_TILE) and the padded lane extent."""
    mp128 = _round_up(max(M, 1), 128)
    n = -(-mp128 // LANE_TILE)                       # number of tiles
    tile = _round_up(-(-mp128 // n), 128)
    return tile, tile * n


# ---------------------------------------------------------------------------
# Pallas kernels
# ---------------------------------------------------------------------------
def _conv_bias_act_kernel(p_ref, w_ref, b_ref, o_ref, *, act):
    """One lane tile of: W(C,K) @ P(K,tile) + b, then activation.  bf16 in, f32 out."""
    y = jnp.dot(w_ref[...], p_ref[...], preferred_element_type=jnp.float32)
    y = y + b_ref[...]
    if act == "relu":
        y = jnp.maximum(y, 0.0)
    elif act == "sigmoid":
        y = 1.0 / (1.0 + jnp.exp(-y))                # exact sigmoid (EUP exp + f32 divide)
    o_ref[...] = y.astype(o_ref.dtype)


def _conv_stats_kernel(p_ref, w_ref, y_ref, sum_ref, sq_ref, *, m_valid, tile):
    """BN pass A: conv matmul for one lane tile + masked per-row sum / sum-of-squares
    accumulated across tiles in resident accumulator outputs (grid axis is 'arbitrary')."""
    i = pl.program_id(0)
    y = jnp.dot(w_ref[...], p_ref[...], preferred_element_type=jnp.float32)
    y_ref[...] = y

    # global lane index so padded lanes never pollute the batch statistics
    lane = jax.lax.broadcasted_iota(jnp.int32, y.shape, 1) + i * tile
    ym = jnp.where(lane < m_valid, y, 0.0)

    @pl.when(i == 0)
    def _():
        sum_ref[...] = jnp.zeros_like(sum_ref)
        sq_ref[...] = jnp.zeros_like(sq_ref)

    sum_ref[...] += jnp.sum(ym, axis=1, keepdims=True)
    sq_ref[...] += jnp.sum(ym * ym, axis=1, keepdims=True)


def _scale_shift_relu_kernel(y_ref, s_ref, t_ref, o_ref):
    """BN pass B: per-row affine (gamma*rstd, beta - mean*gamma*rstd) + ReLU."""
    o_ref[...] = jnp.maximum(y_ref[...] * s_ref[...] + t_ref[...], 0.0).astype(o_ref.dtype)


def _linear_stack_kernel(x_ref, w1_ref, b1_ref, w2_ref, b2_ref, w3_ref, b3_ref,
                         w4_ref, b4_ref, w5_ref, b5_ref, enc_ref, dec_ref):
    """All five Linear layers for one batch tile; intermediates never leave VMEM."""
    def dense(h, w_ref, b_ref, relu=True):
        y = jnp.dot(h.astype(jnp.bfloat16), w_ref[...],
                    preferred_element_type=jnp.float32) + b_ref[...]
        return jnp.maximum(y, 0.0) if relu else y

    h = dense(x_ref[...], w1_ref, b1_ref)            # 288 -> 128, ReLU
    h = dense(h, w2_ref, b2_ref)                     # 128 -> 64,  ReLU
    enc = dense(h, w3_ref, b3_ref, relu=False)       # 64  -> 16   (encoding)
    enc_ref[...] = enc.astype(enc_ref.dtype)
    h = dense(enc, w4_ref, b4_ref)                   # 16  -> 64,  ReLU
    h = dense(h, w5_ref, b5_ref)                     # 64  -> 288, ReLU
    dec_ref[...] = h.astype(dec_ref.dtype)


# ---------------------------------------------------------------------------
# Kernel wrappers
# ---------------------------------------------------------------------------
def conv_fused(pT, wm, bias, act="relu"):
    """pT: (K, M) patches, wm: (C, K), bias: (C,).  Returns (C, M) fused conv output."""
    K, M = pT.shape
    C = wm.shape[0]
    tile, Mp = _lane_tiling(M)
    if Mp != M:
        pT = jnp.pad(pT, ((0, 0), (0, Mp - M)))
    grid = (Mp // tile,)

    y = pl.pallas_call(
        functools.partial(_conv_bias_act_kernel, act=act),
        grid=grid,
        in_specs=[pl.BlockSpec((K, tile), lambda i: (0, i)),
                  pl.BlockSpec((C, K), lambda i: (0, 0)),
                  pl.BlockSpec((C, 1), lambda i: (0, 0))],
        out_specs=pl.BlockSpec((C, tile), lambda i: (0, i)),
        out_shape=jax.ShapeDtypeStruct((C, Mp), jnp.float32),
        compiler_params=pltpu.CompilerParams(
            dimension_semantics=("parallel",), vmem_limit_bytes=VMEM_LIMIT),
    )(pT.astype(jnp.bfloat16), wm.astype(jnp.bfloat16),
      bias.reshape(C, 1).astype(jnp.float32))
    return y[:, :M]


def conv_bn_relu(pT, wm, gamma, beta, groups=1, eps=BN_EPS):
    """Conv (no bias: absorbed by BN) + training-mode BatchNorm2d + ReLU, tiled over lanes.

    `groups > 1` is used by the parity-split transposed convs: output rows are ordered
    (parity, channel) and BN statistics are shared across the `groups` parity row blocks.
    """
    K, M = pT.shape
    R = wm.shape[0]
    assert R % groups == 0
    Cc = R // groups
    tile, Mp = _lane_tiling(M)
    if Mp != M:
        pT = jnp.pad(pT, ((0, 0), (0, Mp - M)))
    grid = (Mp // tile,)

    # pass A: matmul + masked per-row sum / sumsq accumulated across lane tiles
    y, s, ss = pl.pallas_call(
        functools.partial(_conv_stats_kernel, m_valid=M, tile=tile),
        grid=grid,
        in_specs=[pl.BlockSpec((K, tile), lambda i: (0, i)),
                  pl.BlockSpec((R, K), lambda i: (0, 0))],
        out_specs=(pl.BlockSpec((R, tile), lambda i: (0, i)),
                   pl.BlockSpec((R, 1), lambda i: (0, 0)),
                   pl.BlockSpec((R, 1), lambda i: (0, 0))),
        out_shape=(jax.ShapeDtypeStruct((R, Mp), jnp.float32),
                   jax.ShapeDtypeStruct((R, 1), jnp.float32),
                   jax.ShapeDtypeStruct((R, 1), jnp.float32)),
        compiler_params=pltpu.CompilerParams(
            dimension_semantics=("arbitrary",), vmem_limit_bytes=VMEM_LIMIT),
    )(pT.astype(jnp.bfloat16), wm.astype(jnp.bfloat16))

    # stats finalisation + gamma/beta folding: tiny (C, 1) math, left to XLA
    cnt = float(groups * M)
    s_c = s.reshape(groups, Cc, 1).sum(axis=0)
    ss_c = ss.reshape(groups, Cc, 1).sum(axis=0)
    mean = s_c / cnt
    var = ss_c / cnt - mean * mean                   # biased variance (PyTorch train-mode)
    rstd = jax.lax.rsqrt(var + eps)
    scale_c = gamma.reshape(Cc, 1).astype(jnp.float32) * rstd
    shift_c = beta.reshape(Cc, 1).astype(jnp.float32) - mean * scale_c
    scale = jnp.tile(scale_c, (groups, 1))
    shift = jnp.tile(shift_c, (groups, 1))

    # pass B: normalize + ReLU, tiled & megacore-shardable
    out = pl.pallas_call(
        _scale_shift_relu_kernel,
        grid=grid,
        in_specs=[pl.BlockSpec((R, tile), lambda i: (0, i)),
                  pl.BlockSpec((R, 1), lambda i: (0, 0)),
                  pl.BlockSpec((R, 1), lambda i: (0, 0))],
        out_specs=pl.BlockSpec((R, tile), lambda i: (0, i)),
        out_shape=jax.ShapeDtypeStruct((R, Mp), jnp.float32),
        compiler_params=pltpu.CompilerParams(
            dimension_semantics=("parallel",), vmem_limit_bytes=VMEM_LIMIT),
    )(y, scale, shift)
    return out[:, :M]


def linear_stack(flat, p, tb=1024):
    """flat: (N, 288).  Returns (encoding (N, 16), decoder-flat (N, 288)), batch-tiled."""
    N = flat.shape[0]
    TB = min(tb, _round_up(N, 8))
    Np = _round_up(N, TB)
    if Np != N:
        flat = jnp.pad(flat, ((0, Np - N), (0, 0)))
    grid = (Np // TB,)

    layers = [(p["el1_w"], p["el1_b"]), (p["el2_w"], p["el2_b"]), (p["el3_w"], p["el3_b"]),
              (p["dl1_w"], p["dl1_b"]), (p["dl2_w"], p["dl2_b"])]
    args = [flat.astype(jnp.float32)]
    in_specs = [pl.BlockSpec((TB, 288), lambda i: (i, 0))]
    for w, b in layers:
        args += [w.astype(jnp.bfloat16), b.reshape(1, -1).astype(jnp.float32)]
        in_specs += [pl.BlockSpec(w.shape, lambda i: (0, 0)),
                     pl.BlockSpec((1, b.shape[0]), lambda i: (0, 0))]

    enc, dec = pl.pallas_call(
        _linear_stack_kernel,
        grid=grid,
        in_specs=in_specs,
        out_specs=(pl.BlockSpec((TB, 16), lambda i: (i, 0)),
                   pl.BlockSpec((TB, 288), lambda i: (i, 0))),
        out_shape=(jax.ShapeDtypeStruct((Np, 16), jnp.float32),
                   jax.ShapeDtypeStruct((Np, 288), jnp.float32)),
        compiler_params=pltpu.CompilerParams(
            dimension_semantics=("parallel",), vmem_limit_bytes=VMEM_LIMIT),
    )(*args)
    return enc[:N], dec[:N]


# ---------------------------------------------------------------------------
# Plain-JAX layout glue (im2col patch gather, parity split, interleave)
# ---------------------------------------------------------------------------
def im2col_T(x, k, stride, pad):
    """x: (C, N, H, W) -> patches of shape (C*k*k, N*Ho*Wo), feature order (c, dh, dw)."""
    C, N, H, W = x.shape
    xp = jnp.pad(x, ((0, 0), (0, 0), (pad, pad), (pad, pad)))
    Ho = (H + 2 * pad - k) // stride + 1
    Wo = (W + 2 * pad - k) // stride + 1
    cols = []
    for dh in range(k):
        for dw in range(k):
            cols.append(xp[:, :, dh:dh + stride * Ho:stride, dw:dw + stride * Wo:stride])
    patches = jnp.stack(cols, axis=1)                    # (C, k*k, N, Ho, Wo)
    return patches.reshape(C * k * k, N * Ho * Wo), Ho, Wo


def dilate_for_convT(x, stride, pad, output_padding, k):
    """Zero-insert + pad (CNHW) so ConvTranspose2d == stride-1 conv with the flipped kernel."""
    C, N, H, W = x.shape
    Hd, Wd = (H - 1) * stride + 1, (W - 1) * stride + 1
    xd = jnp.zeros((C, N, Hd, Wd), x.dtype).at[:, :, ::stride, ::stride].set(x)
    p_lo = k - 1 - pad
    p_hi = k - 1 - pad + output_padding
    return jnp.pad(xd, ((0, 0), (0, 0), (p_lo, p_hi), (p_lo, p_hi)))


def convT_parity_im2col(x, w, stride=2, pad=1, op=1):
    """Sub-pixel (parity) decomposition of a stride-2 ConvTranspose2d with even output size.

    Builds a K-concatenated patch matrix (no inserted zeros) plus a block-diagonal weight so
    all four output parities come from ONE matmul.  Output rows are ordered (parity, channel)
    with parity p = a*2 + b and the lane axis enumerates (n, th, tw) quadrant positions.
    """
    inC, outC, k, _ = w.shape
    C, N, H, W = x.shape
    assert C == inC and stride == 2
    p_lo = k - 1 - pad
    Ho = (H - 1) * stride + k - 2 * pad + op
    Wo = (W - 1) * stride + k - 2 * pad + op
    assert Ho % 2 == 0 and Wo % 2 == 0, "parity-split path needs an even output size"
    Th, Tw = Ho // 2, Wo // 2
    w_eq = jnp.flip(w, axis=(2, 3)).transpose(1, 0, 2, 3)        # (outC, inC, dh, dw)

    taps = {a: [d for d in range(k) if (a + d - p_lo) % 2 == 0] for a in (0, 1)}
    off = lambda a, d: (a + d - p_lo) // 2
    offs = [off(a, d) for a in (0, 1) for d in taps[a]]
    pad_lo = max(0, -min(offs))
    pad_hi_h = max(0, max(offs) + Th - 1 - (H - 1))
    pad_hi_w = max(0, max(offs) + Tw - 1 - (W - 1))
    xp = jnp.pad(x, ((0, 0), (0, 0), (pad_lo, pad_hi_h), (pad_lo, pad_hi_w)))

    P_blocks, W_blocks = [], []
    for a in (0, 1):
        for b in (0, 1):
            Da, Db = taps[a], taps[b]
            cols = []
            for dh in Da:
                r0 = pad_lo + off(a, dh)
                for dw in Db:
                    c0 = pad_lo + off(b, dw)
                    cols.append(xp[:, :, r0:r0 + Th, c0:c0 + Tw])
            P_blocks.append(jnp.stack(cols, axis=1)
                            .reshape(inC * len(Da) * len(Db), N * Th * Tw))
            W_blocks.append(w_eq[:, :, Da, :][:, :, :, Db]
                            .reshape(outC, inC * len(Da) * len(Db)))
    P_big = jnp.concatenate(P_blocks, axis=0)
    W_big = jax.scipy.linalg.block_diag(*W_blocks)               # (4*outC, K_total)
    return P_big, W_big, Th, Tw


def _interleave_parity(y_rows, outC, N, Th, Tw):
    """(4*outC, N*Th*Tw) with rows (parity, channel) -> (outC, N, 2*Th, 2*Tw) CNHW."""
    y = y_rows.reshape(2, 2, outC, N, Th, Tw)                    # (a, b, co, n, th, tw)
    y = y.transpose(2, 3, 4, 0, 5, 1)                            # (co, n, th, a, tw, b)
    return y.reshape(outC, N, 2 * Th, 2 * Tw)


# ---------------------------------------------------------------------------
# Layer blocks (activations carried in CNHW = (C, N, H, W) layout)
# ---------------------------------------------------------------------------
def conv_block(x, w, b, stride, pad, act="relu"):
    outC = w.shape[0]
    N = x.shape[1]
    pT, Ho, Wo = im2col_T(x.astype(jnp.bfloat16), w.shape[2], stride, pad)
    y = conv_fused(pT, w.reshape(outC, -1), b, act=act)
    return y.reshape(outC, N, Ho, Wo)


def conv_bn_block(x, w, gamma, beta, stride, pad):
    outC = w.shape[0]
    N = x.shape[1]
    pT, Ho, Wo = im2col_T(x.astype(jnp.bfloat16), w.shape[2], stride, pad)
    y = conv_bn_relu(pT, w.reshape(outC, -1), gamma, beta, groups=1)
    return y.reshape(outC, N, Ho, Wo)


def convT_bn_block_dilated(x, w, gamma, beta, stride, pad, op):
    """ConvTranspose2d + BN + ReLU via zero-insert dilation (dc1: odd 7x7 output)."""
    inC, outC, k, _ = w.shape
    N = x.shape[1]
    xd = dilate_for_convT(x.astype(jnp.bfloat16), stride, pad, op, k)
    w_eq = jnp.flip(w, axis=(2, 3)).transpose(1, 0, 2, 3)
    pT, Ho, Wo = im2col_T(xd, k, 1, 0)
    y = conv_bn_relu(pT, w_eq.reshape(outC, -1), gamma, beta, groups=1)
    return y.reshape(outC, N, Ho, Wo)


def convT_parity_block(x, w, b=None, gamma=None, beta=None, act="relu"):
    """ConvTranspose2d(stride=2, padding=1, output_padding=1) via parity split (dc2 / dc3)."""
    inC, outC, k, _ = w.shape
    N = x.shape[1]
    P_big, W_big, Th, Tw = convT_parity_im2col(x.astype(jnp.bfloat16), w)
    if gamma is not None:
        y = conv_bn_relu(P_big, W_big, gamma, beta, groups=4)    # bias absorbed by BN
    else:
        bias_big = jnp.tile(b.astype(jnp.float32), 4)            # (4*outC,)
        y = conv_fused(P_big, W_big, bias_big, act=act)
    return _interleave_parity(y, outC, N, Th, Tw)


# ---------------------------------------------------------------------------
# Parameters (deterministic, PyTorch-default-style uniform init)
# ---------------------------------------------------------------------------
def init_params(key):
    keys = iter(jax.random.split(key, 32))

    def u(shape, fan_in):
        bound = 1.0 / float(fan_in) ** 0.5
        return jax.random.uniform(next(keys), shape, jnp.float32, -bound, bound)

    p = {}
    # encoder convs (outC, inC, k, k)
    p["ec1_w"], p["ec1_b"] = u((8, 1, 3, 3), 1 * 9), u((8,), 1 * 9)
    p["ec2_w"], p["ec2_b"] = u((16, 8, 3, 3), 8 * 9), u((16,), 8 * 9)
    p["ec3_w"], p["ec3_b"] = u((32, 16, 3, 3), 16 * 9), u((32,), 16 * 9)
    p["ebn2_g"], p["ebn2_b"] = jnp.ones((16,), jnp.float32), jnp.zeros((16,), jnp.float32)
    p["ebn3_g"], p["ebn3_b"] = jnp.ones((32,), jnp.float32), jnp.zeros((32,), jnp.float32)
    # linears, stored (in, out)
    p["el1_w"], p["el1_b"] = u((288, 128), 288), u((128,), 288)
    p["el2_w"], p["el2_b"] = u((128, 64), 128), u((64,), 128)
    p["el3_w"], p["el3_b"] = u((64, 16), 64), u((16,), 64)
    p["dl1_w"], p["dl1_b"] = u((16, 64), 16), u((64,), 16)
    p["dl2_w"], p["dl2_b"] = u((64, 288), 64), u((288,), 64)
    # decoder transposed convs (inC, outC, k, k)
    p["dc1_w"], p["dc1_b"] = u((32, 16, 3, 3), 16 * 9), u((16,), 16 * 9)
    p["dc2_w"], p["dc2_b"] = u((16, 8, 3, 3), 8 * 9), u((8,), 8 * 9)
    p["dc3_w"], p["dc3_b"] = u((8, 1, 3, 3), 1 * 9), u((1,), 1 * 9)
    p["dbn1_g"], p["dbn1_b"] = jnp.ones((16,), jnp.float32), jnp.zeros((16,), jnp.float32)
    p["dbn2_g"], p["dbn2_b"] = jnp.ones((8,), jnp.float32), jnp.zeros((8,), jnp.float32)
    return p


# ---------------------------------------------------------------------------
# Forward pass (mirrors Conv_Autoencoder.forward; BN in train-mode, batch stats)
# ---------------------------------------------------------------------------
def forward(params, x):
    p = params
    N = x.shape[0]
    xc = x.astype(jnp.float32).transpose(1, 0, 2, 3)                           # (1, N, 28, 28)

    # ---------------- encoder ----------------
    h = conv_block(xc, p["ec1_w"], p["ec1_b"], stride=2, pad=1, act="relu")    # (8, N, 14, 14)
    h = conv_bn_block(h, p["ec2_w"], p["ebn2_g"], p["ebn2_b"], stride=2, pad=1)  # (16, N, 7, 7)
    h = conv_bn_block(h, p["ec3_w"], p["ebn3_g"], p["ebn3_b"], stride=2, pad=0)  # (32, N, 3, 3)

    flat = h.transpose(1, 0, 2, 3).reshape(N, 288)                             # Flatten(start_dim=1)
    encoding, dec_flat = linear_stack(flat, p)                                 # (N,16), (N,288)

    # ---------------- decoder ----------------
    z = dec_flat.reshape(N, 32, 3, 3).transpose(1, 0, 2, 3)                    # Unflatten -> CNHW
    h = convT_bn_block_dilated(z, p["dc1_w"], p["dbn1_g"], p["dbn1_b"], 2, 0, 0)  # (16, N, 7, 7)
    h = convT_parity_block(h, p["dc2_w"], gamma=p["dbn2_g"], beta=p["dbn2_b"])    # (8, N, 14, 14)
    h = convT_parity_block(h, p["dc3_w"], b=p["dc3_b"], act="sigmoid")            # (1, N, 28, 28)
    decoding = h.transpose(1, 0, 2, 3)                                         # (N, 1, 28, 28)
    return encoding, decoding


# ---------------------------------------------------------------------------
# Pure-XLA reference (for numerical verification of the Pallas pipeline)
# ---------------------------------------------------------------------------
def reference_forward(params, x):
    p = params
    dn = ("NCHW", "OIHW", "NCHW")

    def conv2d(h, w, b, stride, pad):
        y = jax.lax.conv_general_dilated(h, w, (stride, stride),
                                         ((pad, pad), (pad, pad)), dimension_numbers=dn)
        return y + b.reshape(1, -1, 1, 1)

    def convT2d(h, w, b, stride, pad, op):
        k = w.shape[2]
        w_eq = jnp.flip(w, axis=(2, 3)).transpose(1, 0, 2, 3)
        y = jax.lax.conv_general_dilated(
            h, w_eq, (1, 1), ((k - 1 - pad, k - 1 - pad + op),) * 2,
            lhs_dilation=(stride, stride), dimension_numbers=dn)
        return y + b.reshape(1, -1, 1, 1)

    def bn(h, g, bt, eps=BN_EPS):
        mean = h.mean(axis=(0, 2, 3), keepdims=True)
        var = ((h - mean) ** 2).mean(axis=(0, 2, 3), keepdims=True)
        return (h - mean) * jax.lax.rsqrt(var + eps) * g.reshape(1, -1, 1, 1) + bt.reshape(1, -1, 1, 1)

    relu = lambda v: jnp.maximum(v, 0.0)
    h = relu(conv2d(x, p["ec1_w"], p["ec1_b"], 2, 1))
    h = relu(bn(conv2d(h, p["ec2_w"], p["ec2_b"], 2, 1), p["ebn2_g"], p["ebn2_b"]))
    h = relu(bn(conv2d(h, p["ec3_w"], p["ec3_b"], 2, 0), p["ebn3_g"], p["ebn3_b"]))
    flat = h.reshape(h.shape[0], -1)
    h = relu(flat @ p["el1_w"] + p["el1_b"])
    h = relu(h @ p["el2_w"] + p["el2_b"])
    enc = h @ p["el3_w"] + p["el3_b"]
    h = relu(enc @ p["dl1_w"] + p["dl1_b"])
    h = relu(h @ p["dl2_w"] + p["dl2_b"])
    z = h.reshape(-1, 32, 3, 3)
    h = relu(bn(convT2d(z, p["dc1_w"], p["dc1_b"], 2, 0, 0), p["dbn1_g"], p["dbn1_b"]))
    h = relu(bn(convT2d(h, p["dc2_w"], p["dc2_b"], 2, 1, 1), p["dbn2_g"], p["dbn2_b"]))
    dec = jax.nn.sigmoid(convT2d(h, p["dc3_w"], p["dc3_b"], 2, 1, 1))
    return enc, dec


# ---------------------------------------------------------------------------
if __name__ == "__main__":
    key = jax.random.PRNGKey(0)
    pkey, xkey = jax.random.split(key)
    params = init_params(pkey)
    x = jax.random.uniform(xkey, (2, 1, 28, 28), jnp.float32)   # small MNIST-like batch

    enc, dec = jax.jit(forward)(params, x)
    jax.block_until_ready((enc, dec))

    assert enc.shape == (2, 16), enc.shape
    assert dec.shape == (2, 1, 28, 28), dec.shape
    assert bool(jnp.all(jnp.isfinite(enc))) and bool(jnp.all(jnp.isfinite(dec)))
    assert bool(jnp.all((dec >= 0.0) & (dec <= 1.0)))           # sigmoid output range

    # numerical parity vs. a pure-XLA reference (bf16 matmul operands -> loose tolerance)
    ref_enc, ref_dec = reference_forward(params, x)
    enc_err = float(jnp.max(jnp.abs(enc - ref_enc)))
    dec_err = float(jnp.max(jnp.abs(dec - ref_dec)))
    enc_tol = 5e-2 * max(1.0, float(jnp.max(jnp.abs(ref_enc))))
    assert enc_err <= enc_tol, ("encoding mismatch", enc_err, enc_tol)
    assert dec_err <= 7.5e-2, ("decoding mismatch", dec_err)

    print("KERNEL_OK")
</pallas_src>

<mosaic_0001>
module attributes {stable_mosaic.version = 11 : i64} {
  func.func @_conv_bias_act_kernel(%arg0: i32, %arg1: memref<9x512xbf16, #tpu.memory_space<vmem>>, %arg2: memref<8x9xbf16, #tpu.memory_space<vmem>>, %arg3: memref<8x1xf32, #tpu.memory_space<vmem>>, %arg4: memref<8x512xf32, #tpu.memory_space<vmem>>) attributes {dimension_semantics = [#tpu.dimension_semantics<parallel>], iteration_bounds = array<i64: 1>, scalar_prefetch = 0 : i64, scratch_operands = 0 : i64, tpu.core_type = #tpu.core_type<tc>, window_params = [{transform_indices = @transform_0, window_bounds = array<i64: 9, 512>}, {pipeline_mode = #tpu.pipeline_mode<synchronous>, transform_indices = @transform_1, window_bounds = array<i64: 8, 9>}, {pipeline_mode = #tpu.pipeline_mode<synchronous>, transform_indices = @transform_2, window_bounds = array<i64: 8, 1>}, {transform_indices = @transform_3, window_bounds = array<i64: 8, 512>}]} {
    %c0 = arith.constant 0 : index
    %c0_0 = arith.constant 0 : index
    %0 = vector.load %arg2[%c0, %c0_0] : memref<8x9xbf16, #tpu.memory_space<vmem>>, vector<8x9xbf16>
    %c0_1 = arith.constant 0 : index
    %c0_2 = arith.constant 0 : index
    %1 = vector.load %arg1[%c0_1, %c0_2] : memref<9x512xbf16, #tpu.memory_space<vmem>>, vector<9x512xbf16>
    %cst = arith.constant dense<0.000000e+00> : vector<8x512xf32>
    %2 = tpu.matmul %0, %1, %cst {dimension_numbers = #tpu.dot_dimension_numbers<[1], [0], [0], [1], [0, 0, 1, 1], [], []>} : vector<8x9xbf16>, vector<9x512xbf16>, vector<8x512xf32> -> vector<8x512xf32>
    %c0_3 = arith.constant 0 : index
    %c0_4 = arith.constant 0 : index
    %3 = vector.load %arg3[%c0_3, %c0_4] : memref<8x1xf32, #tpu.memory_space<vmem>>, vector<8x1xf32>
    %4 = vector.broadcast %3 : vector<8x1xf32> to vector<8x512xf32>
    %5 = arith.addf %2, %4 : vector<8x512xf32>
    %cst_5 = arith.constant 0.000000e+00 : f32
    %6 = vector.broadcast %cst_5 : f32 to vector<8x512xf32>
    %7 = arith.maximumf %5, %6 : vector<8x512xf32>
    %c0_6 = arith.constant 0 : index
    %c0_7 = arith.constant 0 : index
    %8 = vector.load %arg4[%c0_6, %c0_7] : memref<8x512xf32, #tpu.memory_space<vmem>>, vector<8x512xf32>
    tpu.vector_store %arg4[%c0_6, %c0_7], %7 {strides = array<i32>} : memref<8x512xf32, #tpu.memory_space<vmem>>, vector<8x512xf32>,
    return
  }
  func.func @transform_0(%arg0: i32) -> (i32, i32) {
    %c0_i32 = arith.constant 0 : i32
    %c0_i32_0 = arith.constant 0 : i32
    return %c0_i32, %arg0 : i32, i32
  }
  func.func @transform_1(%arg0: i32) -> (i32, i32) {
    %c0_i32 = arith.constant 0 : i32
    %c0_i32_0 = arith.constant 0 : i32
    %c0_i32_1 = arith.constant 0 : i32
    return %c0_i32, %c0_i32_0 : i32, i32
  }
  func.func @transform_2(%arg0: i32) -> (i32, i32) {
    %c0_i32 = arith.constant 0 : i32
    %c0_i32_0 = arith.constant 0 : i32
    %c0_i32_1 = arith.constant 0 : i32
    return %c0_i32, %c0_i32_0 : i32, i32
  }
  func.func @transform_3(%arg0: i32) -> (i32, i32) {
    %c0_i32 = arith.constant 0 : i32
    %c0_i32_0 = arith.constant 0 : i32
    return %c0_i32, %arg0 : i32, i32
  }
}

module attributes {stable_mosaic.version = 11 : i64} {
  func.func @_scale_shift_relu_kernel(%arg0: i32, %arg1: memref<16x128xf32, #tpu.memory_space<vmem>>, %arg2: memref<16x1xf32, #tpu.memory_space<vmem>>, %arg3: memref<16x1xf32, #tpu.memory_space<vmem>>, %arg4: memref<16x128xf32, #tpu.memory_space<vmem>>) attributes {dimension_semantics = [#tpu.dimension_semantics<parallel>], iteration_bounds = array<i64: 1>, scalar_prefetch = 0 : i64, scratch_operands = 0 : i64, tpu.core_type = #tpu.core_type<tc>, window_params = [{transform_indices = @transform_0, window_bounds = array<i64: 16, 128>}, {pipeline_mode = #tpu.pipeline_mode<synchronous>, transform_indices = @transform_1, window_bounds = array<i64: 16, 1>}, {pipeline_mode = #tpu.pipeline_mode<synchronous>, transform_indices = @transform_2, window_bounds = array<i64: 16, 1>}, {transform_indices = @transform_3, window_bounds = array<i64: 16, 128>}]} {
    %c0 = arith.constant 0 : index
    %c0_0 = arith.constant 0 : index
    %0 = vector.load %arg1[%c0, %c0_0] : memref<16x128xf32, #tpu.memory_space<vmem>>, vector<16x128xf32>
    %c0_1 = arith.constant 0 : index
    %c0_2 = arith.constant 0 : index
    %1 = vector.load %arg2[%c0_1, %c0_2] : memref<16x1xf32, #tpu.memory_space<vmem>>, vector<16x1xf32>
    %2 = vector.broadcast %1 : vector<16x1xf32> to vector<16x128xf32>
    %3 = arith.mulf %0, %2 : vector<16x128xf32>
    %c0_3 = arith.constant 0 : index
    %c0_4 = arith.constant 0 : index
    %4 = vector.load %arg3[%c0_3, %c0_4] : memref<16x1xf32, #tpu.memory_space<vmem>>, vector<16x1xf32>
    %5 = vector.broadcast %4 : vector<16x1xf32> to vector<16x128xf32>
    %6 = arith.addf %3, %5 : vector<16x128xf32>
    %cst = arith.constant 0.000000e+00 : f32
    %7 = vector.broadcast %cst : f32 to vector<16x128xf32>
    %8 = arith.maximumf %6, %7 : vector<16x128xf32>
    %c0_5 = arith.constant 0 : index
    %c0_6 = arith.constant 0 : index
    %9 = vector.load %arg4[%c0_5, %c0_6] : memref<16x128xf32, #tpu.memory_space<vmem>>, vector<16x128xf32>
    tpu.vector_store %arg4[%c0_5, %c0_6], %8 {strides = array<i32>} : memref<16x128xf32, #tpu.memory_space<vmem>>, vector<16x128xf32>,
    return
  }
  func.func @transform_0(%arg0: i32) -> (i32, i32) {
    %c0_i32 = arith.constant 0 : i32
    %c0_i32_0 = arith.constant 0 : i32
    return %c0_i32, %arg0 : i32, i32
  }
  func.func @transform_1(%arg0: i32) -> (i32, i32) {
    %c0_i32 = arith.constant 0 : i32
    %c0_i32_0 = arith.constant 0 : i32
    %c0_i32_1 = arith.constant 0 : i32
    return %c0_i32, %c0_i32_0 : i32, i32
  }
  func.func @transform_2(%arg0: i32) -> (i32, i32) {
    %c0_i32 = arith.constant 0 : i32
    %c0_i32_0 = arith.constant 0 : i32
    %c0_i32_1 = arith.constant 0 : i32
    return %c0_i32, %c0_i32_0 : i32, i32
  }
  func.func @transform_3(%arg0: i32) -> (i32, i32) {
    %c0_i32 = arith.constant 0 : i32
    %c0_i32_0 = arith.constant 0 : i32
    return %c0_i32, %arg0 : i32, i32
  }
}

module attributes {stable_mosaic.version = 11 : i64} {
  func.func @_conv_stats_kernel(%arg0: i32, %arg1: memref<72x128xbf16, #tpu.memory_space<vmem>>, %arg2: memref<16x72xbf16, #tpu.memory_space<vmem>>, %arg3: memref<16x128xf32, #tpu.memory_space<vmem>>, %arg4: memref<16x1xf32, #tpu.memory_space<vmem>>, %arg5: memref<16x1xf32, #tpu.memory_space<vmem>>) attributes {dimension_semantics = [#tpu.dimension_semantics<arbitrary>], iteration_bounds = array<i64: 1>, scalar_prefetch = 0 : i64, scratch_operands = 0 : i64, tpu.core_type = #tpu.core_type<tc>, window_params = [{transform_indices = @transform_0, window_bounds = array<i64: 72, 128>}, {pipeline_mode = #tpu.pipeline_mode<synchronous>, transform_indices = @transform_1, window_bounds = array<i64: 16, 72>}, {transform_indices = @transform_2, window_bounds = array<i64: 16, 128>}, {pipeline_mode = #tpu.pipeline_mode<synchronous>, transform_indices = @transform_3, window_bounds = array<i64: 16, 1>}, {pipeline_mode = #tpu.pipeline_mode<synchronous>, transform_indices = @transform_4, window_bounds = array<i64: 16, 1>}]} {
    %c0 = arith.constant 0 : index
    %c0_0 = arith.constant 0 : index
    %0 = vector.load %arg2[%c0, %c0_0] : memref<16x72xbf16, #tpu.memory_space<vmem>>, vector<16x72xbf16>
    %c0_1 = arith.constant 0 : index
    %c0_2 = arith.constant 0 : index
    %1 = vector.load %arg1[%c0_1, %c0_2] : memref<72x128xbf16, #tpu.memory_space<vmem>>, vector<72x128xbf16>
    %cst = arith.constant dense<0.000000e+00> : vector<16x128xf32>
    %2 = tpu.matmul %0, %1, %cst {dimension_numbers = #tpu.dot_dimension_numbers<[1], [0], [0], [1], [0, 0, 1, 1], [], []>} : vector<16x72xbf16>, vector<72x128xbf16>, vector<16x128xf32> -> vector<16x128xf32>
    %c0_3 = arith.constant 0 : index
    %c0_4 = arith.constant 0 : index
    %3 = vector.load %arg3[%c0_3, %c0_4] : memref<16x128xf32, #tpu.memory_space<vmem>>, vector<16x128xf32>
    tpu.vector_store %arg3[%c0_3, %c0_4], %2 {strides = array<i32>} : memref<16x128xf32, #tpu.memory_space<vmem>>, vector<16x128xf32>,
    %4 = tpu.iota {dimensions = array<i32: 1>} : vector<16x128xi32>
    %c128_i32 = arith.constant 128 : i32
    %5 = arith.muli %arg0, %c128_i32 : i32
    %6 = vector.broadcast %5 : i32 to vector<16x128xi32>
    %7 = arith.addi %4, %6 : vector<16x128xi32>
    %c98_i32 = arith.constant 98 : i32
    %8 = vector.broadcast %c98_i32 : i32 to vector<16x128xi32>
    %9 = arith.cmpi slt, %7, %8 : vector<16x128xi32>
    %cst_5 = arith.constant 0.000000e+00 : f32
    %10 = vector.broadcast %cst_5 : f32 to vector<16x128xf32>
    %11 = arith.select %9, %2, %10 : vector<16x128xi1>, vector<16x128xf32>
    %c0_i32 = arith.constant 0 : i32
    %12 = arith.cmpi eq, %arg0, %c0_i32 : i32
    %13 = arith.extui %12 : i1 to i32
    %c0_i32_6 = arith.constant 0 : i32
    %14 = arith.cmpi ne, %13, %c0_i32_6 : i32
    scf.if %14 {
      %cst_17 = arith.constant 0.000000e+00 : f32
      %26 = vector.broadcast %cst_17 : f32 to vector<16x1xf32>
      %c0_18 = arith.constant 0 : index
      %c0_19 = arith.constant 0 : index
      %27 = vector.load %arg4[%c0_18, %c0_19] : memref<16x1xf32, #tpu.memory_space<vmem>>, vector<16x1xf32>
      tpu.vector_store %arg4[%c0_18, %c0_19], %26 {strides = array<i32>} : memref<16x1xf32, #tpu.memory_space<vmem>>, vector<16x1xf32>,
      %cst_20 = arith.constant 0.000000e+00 : f32
      %28 = vector.broadcast %cst_20 : f32 to vector<16x1xf32>
      %c0_21 = arith.constant 0 : index
      %c0_22 = arith.constant 0 : index
      %29 = vector.load %arg5[%c0_21, %c0_22] : memref<16x1xf32, #tpu.memory_space<vmem>>, vector<16x1xf32>
      tpu.vector_store %arg5[%c0_21, %c0_22], %28 {strides = array<i32>} : memref<16x1xf32, #tpu.memory_space<vmem>>, vector<16x1xf32>,
    } else {
    }
    %c0_7 = arith.constant 0 : index
    %c0_8 = arith.constant 0 : index
    %15 = vector.load %arg4[%c0_7, %c0_8] : memref<16x1xf32, #tpu.memory_space<vmem>>, vector<16x1xf32>
    %cst_9 = arith.constant dense<0.000000e+00> : vector<16xf32>
    %16 = vector.multi_reduction <add>, %11, %cst_9 [1] : vector<16x128xf32> to vector<16xf32>
    %17 = vector.shape_cast %16 : vector<16xf32> to vector<16x1xf32>
    %18 = arith.addf %15, %17 : vector<16x1xf32>
    %c0_10 = arith.constant 0 : index
    %c0_11 = arith.constant 0 : index
    %19 = vector.load %arg4[%c0_10, %c0_11] : memref<16x1xf32, #tpu.memory_space<vmem>>, vector<16x1xf32>
    tpu.vector_store %arg4[%c0_10, %c0_11], %18 {strides = array<i32>} : memref<16x1xf32, #tpu.memory_space<vmem>>, vector<16x1xf32>,
    %c0_12 = arith.constant 0 : index
    %c0_13 = arith.constant 0 : index
    %20 = vector.load %arg5[%c0_12, %c0_13] : memref<16x1xf32, #tpu.memory_space<vmem>>, vector<16x1xf32>
    %21 = arith.mulf %11, %11 : vector<16x128xf32>
    %cst_14 = arith.constant dense<0.000000e+00> : vector<16xf32>
    %22 = vector.multi_reduction <add>, %21, %cst_14 [1] : vector<16x128xf32> to vector<16xf32>
    %23 = vector.shape_cast %22 : vector<16xf32> to vector<16x1xf32>
    %24 = arith.addf %20, %23 : vector<16x1xf32>
    %c0_15 = arith.constant 0 : index
    %c0_16 = arith.constant 0 : index
    %25 = vector.load %arg5[%c0_15, %c0_16] : memref<16x1xf32, #tpu.memory_space<vmem>>, vector<16x1xf32>
    tpu.vector_store %arg5[%c0_15, %c0_16], %24 {strides = array<i32>} : memref<16x1xf32, #tpu.memory_space<vmem>>, vector<16x1xf32>,
    return
  }
  func.func @transform_0(%arg0: i32) -> (i32, i32) {
    %c0_i32 = arith.constant 0 : i32
    %c0_i32_0 = arith.constant 0 : i32
    return %c0_i32, %arg0 : i32, i32
  }
  func.func @transform_1(%arg0: i32) -> (i32, i32) {
    %c0_i32 = arith.constant 0 : i32
    %c0_i32_0 = arith.constant 0 : i32
    %c0_i32_1 = arith.constant 0 : i32
    return %c0_i32, %c0_i32_0 : i32, i32
  }
  func.func @transform_2(%arg0: i32) -> (i32, i32) {
    %c0_i32 = arith.constant 0 : i32
    %c0_i32_0 = arith.constant 0 : i32
    return %c0_i32, %arg0 : i32, i32
  }
  func.func @transform_3(%arg0: i32) -> (i32, i32) {
    %c0_i32 = arith.constant 0 : i32
    %c0_i32_0 = arith.constant 0 : i32
    %c0_i32_1 = arith.constant 0 : i32
    return %c0_i32, %c0_i32_0 : i32, i32
  }
  func.func @transform_4(%arg0: i32) -> (i32, i32) {
    %c0_i32 = arith.constant 0 : i32
    %c0_i32_0 = arith.constant 0 : i32
    %c0_i32_1 = arith.constant 0 : i32
    return %c0_i32, %c0_i32_0 : i32, i32
  }
}

module attributes {stable_mosaic.version = 11 : i64} {
  func.func @_conv_stats_kernel(%arg0: i32, %arg1: memref<144x128xbf16, #tpu.memory_space<vmem>>, %arg2: memref<32x144xbf16, #tpu.memory_space<vmem>>, %arg3: memref<32x128xf32, #tpu.memory_space<vmem>>, %arg4: memref<32x1xf32, #tpu.memory_space<vmem>>, %arg5: memref<32x1xf32, #tpu.memory_space<vmem>>) attributes {dimension_semantics = [#tpu.dimension_semantics<arbitrary>], iteration_bounds = array<i64: 1>, scalar_prefetch = 0 : i64, scratch_operands = 0 : i64, tpu.core_type = #tpu.core_type<tc>, window_params = [{transform_indices = @transform_0, window_bounds = array<i64: 144, 128>}, {pipeline_mode = #tpu.pipeline_mode<synchronous>, transform_indices = @transform_1, window_bounds = array<i64: 32, 144>}, {transform_indices = @transform_2, window_bounds = array<i64: 32, 128>}, {pipeline_mode = #tpu.pipeline_mode<synchronous>, transform_indices = @transform_3, window_bounds = array<i64: 32, 1>}, {pipeline_mode = #tpu.pipeline_mode<synchronous>, transform_indices = @transform_4, window_bounds = array<i64: 32, 1>}]} {
    %c0 = arith.constant 0 : index
    %c0_0 = arith.constant 0 : index
    %0 = vector.load %arg2[%c0, %c0_0] : memref<32x144xbf16, #tpu.memory_space<vmem>>, vector<32x144xbf16>
    %c0_1 = arith.constant 0 : index
    %c0_2 = arith.constant 0 : index
    %1 = vector.load %arg1[%c0_1, %c0_2] : memref<144x128xbf16, #tpu.memory_space<vmem>>, vector<144x128xbf16>
    %cst = arith.constant dense<0.000000e+00> : vector<32x128xf32>
    %2 = tpu.matmul %0, %1, %cst {dimension_numbers = #tpu.dot_dimension_numbers<[1], [0], [0], [1], [0, 0, 1, 1], [], []>} : vector<32x144xbf16>, vector<144x128xbf16>, vector<32x128xf32> -> vector<32x128xf32>
    %c0_3 = arith.constant 0 : index
    %c0_4 = arith.constant 0 : index
    %3 = vector.load %arg3[%c0_3, %c0_4] : memref<32x128xf32, #tpu.memory_space<vmem>>, vector<32x128xf32>
    tpu.vector_store %arg3[%c0_3, %c0_4], %2 {strides = array<i32>} : memref<32x128xf32, #tpu.memory_space<vmem>>, vector<32x128xf32>,
    %4 = tpu.iota {dimensions = array<i32: 1>} : vector<32x128xi32>
    %c128_i32 = arith.constant 128 : i32
    %5 = arith.muli %arg0, %c128_i32 : i32
    %6 = vector.broadcast %5 : i32 to vector<32x128xi32>
    %7 = arith.addi %4, %6 : vector<32x128xi32>
    %c18_i32 = arith.constant 18 : i32
    %8 = vector.broadcast %c18_i32 : i32 to vector<32x128xi32>
    %9 = arith.cmpi slt, %7, %8 : vector<32x128xi32>
    %cst_5 = arith.constant 0.000000e+00 : f32
    %10 = vector.broadcast %cst_5 : f32 to vector<32x128xf32>
    %11 = arith.select %9, %2, %10 : vector<32x128xi1>, vector<32x128xf32>
    %c0_i32 = arith.constant 0 : i32
    %12 = arith.cmpi eq, %arg0, %c0_i32 : i32
    %13 = arith.extui %12 : i1 to i32
    %c0_i32_6 = arith.constant 0 : i32
    %14 = arith.cmpi ne, %13, %c0_i32_6 : i32
    scf.if %14 {
      %cst_17 = arith.constant 0.000000e+00 : f32
      %26 = vector.broadcast %cst_17 : f32 to vector<32x1xf32>
      %c0_18 = arith.constant 0 : index
      %c0_19 = arith.constant 0 : index
      %27 = vector.load %arg4[%c0_18, %c0_19] : memref<32x1xf32, #tpu.memory_space<vmem>>, vector<32x1xf32>
      tpu.vector_store %arg4[%c0_18, %c0_19], %26 {strides = array<i32>} : memref<32x1xf32, #tpu.memory_space<vmem>>, vector<32x1xf32>,
      %cst_20 = arith.constant 0.000000e+00 : f32
      %28 = vector.broadcast %cst_20 : f32 to vector<32x1xf32>
      %c0_21 = arith.constant 0 : index
      %c0_22 = arith.constant 0 : index
      %29 = vector.load %arg5[%c0_21, %c0_22] : memref<32x1xf32, #tpu.memory_space<vmem>>, vector<32x1xf32>
      tpu.vector_store %arg5[%c0_21, %c0_22], %28 {strides = array<i32>} : memref<32x1xf32, #tpu.memory_space<vmem>>, vector<32x1xf32>,
    } else {
    }
    %c0_7 = arith.constant 0 : index
    %c0_8 = arith.constant 0 : index
    %15 = vector.load %arg4[%c0_7, %c0_8] : memref<32x1xf32, #tpu.memory_space<vmem>>, vector<32x1xf32>
    %cst_9 = arith.constant dense<0.000000e+00> : vector<32xf32>
    %16 = vector.multi_reduction <add>, %11, %cst_9 [1] : vector<32x128xf32> to vector<32xf32>
    %17 = vector.shape_cast %16 : vector<32xf32> to vector<32x1xf32>
    %18 = arith.addf %15, %17 : vector<32x1xf32>
    %c0_10 = arith.constant 0 : index
    %c0_11 = arith.constant 0 : index
    %19 = vector.load %arg4[%c0_10, %c0_11] : memref<32x1xf32, #tpu.memory_space<vmem>>, vector<32x1xf32>
    tpu.vector_store %arg4[%c0_10, %c0_11], %18 {strides = array<i32>} : memref<32x1xf32, #tpu.memory_space<vmem>>, vector<32x1xf32>,
    %c0_12 = arith.constant 0 : index
    %c0_13 = arith.constant 0 : index
    %20 = vector.load %arg5[%c0_12, %c0_13] : memref<32x1xf32, #tpu.memory_space<vmem>>, vector<32x1xf32>
    %21 = arith.mulf %11, %11 : vector<32x128xf32>
    %cst_14 = arith.constant dense<0.000000e+00> : vector<32xf32>
    %22 = vector.multi_reduction <add>, %21, %cst_14 [1] : vector<32x128xf32> to vector<32xf32>
    %23 = vector.shape_cast %22 : vector<32xf32> to vector<32x1xf32>
    %24 = arith.addf %20, %23 : vector<32x1xf32>
    %c0_15 = arith.constant 0 : index
    %c0_16 = arith.constant 0 : index
    %25 = vector.load %arg5[%c0_15, %c0_16] : memref<32x1xf32, #tpu.memory_space<vmem>>, vector<32x1xf32>
    tpu.vector_store %arg5[%c0_15, %c0_16], %24 {strides = array<i32>} : memref<32x1xf32, #tpu.memory_space<vmem>>, vector<32x1xf32>,
    return
  }
  func.func @transform_0(%arg0: i32) -> (i32, i32) {
    %c0_i32 = arith.constant 0 : i32
    %c0_i32_0 = arith.constant 0 : i32
    return %c0_i32, %arg0 : i32, i32
  }
  func.func @transform_1(%arg0: i32) -> (i32, i32) {
    %c0_i32 = arith.constant 0 : i32
    %c0_i32_0 = arith.constant 0 : i32
    %c0_i32_1 = arith.constant 0 : i32
    return %c0_i32, %c0_i32_0 : i32, i32
  }
  func.func @transform_2(%arg0: i32) -> (i32, i32) {
    %c0_i32 = arith.constant 0 : i32
    %c0_i32_0 = arith.constant 0 : i32
    return %c0_i32, %arg0 : i32, i32
  }
  func.func @transform_3(%arg0: i32) -> (i32, i32) {
    %c0_i32 = arith.constant 0 : i32
    %c0_i32_0 = arith.constant 0 : i32
    %c0_i32_1 = arith.constant 0 : i32
    return %c0_i32, %c0_i32_0 : i32, i32
  }
  func.func @transform_4(%arg0: i32) -> (i32, i32) {
    %c0_i32 = arith.constant 0 : i32
    %c0_i32_0 = arith.constant 0 : i32
    %c0_i32_1 = arith.constant 0 : i32
    return %c0_i32, %c0_i32_0 : i32, i32
  }
}

module attributes {stable_mosaic.version = 11 : i64} {
  func.func @_scale_shift_relu_kernel(%arg0: i32, %arg1: memref<32x128xf32, #tpu.memory_space<vmem>>, %arg2: memref<32x1xf32, #tpu.memory_space<vmem>>, %arg3: memref<32x1xf32, #tpu.memory_space<vmem>>, %arg4: memref<32x128xf32, #tpu.memory_space<vmem>>) attributes {dimension_semantics = [#tpu.dimension_semantics<parallel>], iteration_bounds = array<i64: 1>, scalar_prefetch = 0 : i64, scratch_operands = 0 : i64, tpu.core_type = #tpu.core_type<tc>, window_params = [{transform_indices = @transform_0, window_bounds = array<i64: 32, 128>}, {pipeline_mode = #tpu.pipeline_mode<synchronous>, transform_indices = @transform_1, window_bounds = array<i64: 32, 1>}, {pipeline_mode = #tpu.pipeline_mode<synchronous>, transform_indices = @transform_2, window_bounds = array<i64: 32, 1>}, {transform_indices = @transform_3, window_bounds = array<i64: 32, 128>}]} {
    %c0 = arith.constant 0 : index
    %c0_0 = arith.constant 0 : index
    %0 = vector.load %arg1[%c0, %c0_0] : memref<32x128xf32, #tpu.memory_space<vmem>>, vector<32x128xf32>
    %c0_1 = arith.constant 0 : index
    %c0_2 = arith.constant 0 : index
    %1 = vector.load %arg2[%c0_1, %c0_2] : memref<32x1xf32, #tpu.memory_space<vmem>>, vector<32x1xf32>
    %2 = vector.broadcast %1 : vector<32x1xf32> to vector<32x128xf32>
    %3 = arith.mulf %0, %2 : vector<32x128xf32>
    %c0_3 = arith.constant 0 : index
    %c0_4 = arith.constant 0 : index
    %4 = vector.load %arg3[%c0_3, %c0_4] : memref<32x1xf32, #tpu.memory_space<vmem>>, vector<32x1xf32>
    %5 = vector.broadcast %4 : vector<32x1xf32> to vector<32x128xf32>
    %6 = arith.addf %3, %5 : vector<32x128xf32>
    %cst = arith.constant 0.000000e+00 : f32
    %7 = vector.broadcast %cst : f32 to vector<32x128xf32>
    %8 = arith.maximumf %6, %7 : vector<32x128xf32>
    %c0_5 = arith.constant 0 : index
    %c0_6 = arith.constant 0 : index
    %9 = vector.load %arg4[%c0_5, %c0_6] : memref<32x128xf32, #tpu.memory_space<vmem>>, vector<32x128xf32>
    tpu.vector_store %arg4[%c0_5, %c0_6], %8 {strides = array<i32>} : memref<32x128xf32, #tpu.memory_space<vmem>>, vector<32x128xf32>,
    return
  }
  func.func @transform_0(%arg0: i32) -> (i32, i32) {
    %c0_i32 = arith.constant 0 : i32
    %c0_i32_0 = arith.constant 0 : i32
    return %c0_i32, %arg0 : i32, i32
  }
  func.func @transform_1(%arg0: i32) -> (i32, i32) {
    %c0_i32 = arith.constant 0 : i32
    %c0_i32_0 = arith.constant 0 : i32
    %c0_i32_1 = arith.constant 0 : i32
    return %c0_i32, %c0_i32_0 : i32, i32
  }
  func.func @transform_2(%arg0: i32) -> (i32, i32) {
    %c0_i32 = arith.constant 0 : i32
    %c0_i32_0 = arith.constant 0 : i32
    %c0_i32_1 = arith.constant 0 : i32
    return %c0_i32, %c0_i32_0 : i32, i32
  }
  func.func @transform_3(%arg0: i32) -> (i32, i32) {
    %c0_i32 = arith.constant 0 : i32
    %c0_i32_0 = arith.constant 0 : i32
    return %c0_i32, %arg0 : i32, i32
  }
}

module attributes {stable_mosaic.version = 11 : i64} {
  func.func @_linear_stack_kernel(%arg0: i32, %arg1: memref<8x288xf32, #tpu.memory_space<vmem>>, %arg2: memref<288x128xbf16, #tpu.memory_space<vmem>>, %arg3: memref<1x128xf32, #tpu.memory_space<vmem>>, %arg4: memref<128x64xbf16, #tpu.memory_space<vmem>>, %arg5: memref<1x64xf32, #tpu.memory_space<vmem>>, %arg6: memref<64x16xbf16, #tpu.memory_space<vmem>>, %arg7: memref<1x16xf32, #tpu.memory_space<vmem>>, %arg8: memref<16x64xbf16, #tpu.memory_space<vmem>>, %arg9: memref<1x64xf32, #tpu.memory_space<vmem>>, %arg10: memref<64x288xbf16, #tpu.memory_space<vmem>>, %arg11: memref<1x288xf32, #tpu.memory_space<vmem>>, %arg12: memref<8x16xf32, #tpu.memory_space<vmem>>, %arg13: memref<8x288xf32, #tpu.memory_space<vmem>>) attributes {dimension_semantics = [#tpu.dimension_semantics<parallel>], iteration_bounds = array<i64: 1>, scalar_prefetch = 0 : i64, scratch_operands = 0 : i64, tpu.core_type = #tpu.core_type<tc>, window_params = [{transform_indices = @transform_0, window_bounds = array<i64: 8, 288>}, {pipeline_mode = #tpu.pipeline_mode<synchronous>, transform_indices = @transform_1, window_bounds = array<i64: 288, 128>}, {pipeline_mode = #tpu.pipeline_mode<synchronous>, transform_indices = @transform_2, window_bounds = array<i64: 1, 128>}, {pipeline_mode = #tpu.pipeline_mode<synchronous>, transform_indices = @transform_3, window_bounds = array<i64: 128, 64>}, {pipeline_mode = #tpu.pipeline_mode<synchronous>, transform_indices = @transform_4, window_bounds = array<i64: 1, 64>}, {pipeline_mode = #tpu.pipeline_mode<synchronous>, transform_indices = @transform_5, window_bounds = array<i64: 64, 16>}, {pipeline_mode = #tpu.pipeline_mode<synchronous>, transform_indices = @transform_6, window_bounds = array<i64: 1, 16>}, {pipeline_mode = #tpu.pipeline_mode<synchronous>, transform_indices = @transform_7, window_bounds = array<i64: 16, 64>}, {pipeline_mode = #tpu.pipeline_mode<synchronous>, transform_indices = @transform_8, window_bounds = array<i64: 1, 64>}, {pipeline_mode = #tpu.pipeline_mode<synchronous>, transform_indices = @transform_9, window_bounds = array<i64: 64, 288>}, {pipeline_mode = #tpu.pipeline_mode<synchronous>, transform_indices = @transform_10, window_bounds = array<i64: 1, 288>}, {transform_indices = @transform_11, window_bounds = array<i64: 8, 16>}, {transform_indices = @transform_12, window_bounds = array<i64: 8, 288>}]} {
    %c0 = arith.constant 0 : index
    %c0_0 = arith.constant 0 : index
    %0 = vector.load %arg1[%c0, %c0_0] : memref<8x288xf32, #tpu.memory_space<vmem>>, vector<8x288xf32>
    %1 = arith.truncf %0 : vector<8x288xf32> to vector<8x288xbf16>
    %c0_1 = arith.constant 0 : index
    %c0_2 = arith.constant 0 : index
    %2 = vector.load %arg2[%c0_1, %c0_2] : memref<288x128xbf16, #tpu.memory_space<vmem>>, vector<288x128xbf16>
    %cst = arith.constant dense<0.000000e+00> : vector<8x128xf32>
    %3 = tpu.matmul %1, %2, %cst {dimension_numbers = #tpu.dot_dimension_numbers<[1], [0], [0], [1], [0, 0, 1, 1], [], []>} : vector<8x288xbf16>, vector<288x128xbf16>, vector<8x128xf32> -> vector<8x128xf32>
    %c0_3 = arith.constant 0 : index
    %c0_4 = arith.constant 0 : index
    %4 = vector.load %arg3[%c0_3, %c0_4] : memref<1x128xf32, #tpu.memory_space<vmem>>, vector<1x128xf32>
    %5 = vector.broadcast %4 : vector<1x128xf32> to vector<8x128xf32>
    %6 = arith.addf %3, %5 : vector<8x128xf32>
    %cst_5 = arith.constant 0.000000e+00 : f32
    %7 = vector.broadcast %cst_5 : f32 to vector<8x128xf32>
    %8 = arith.maximumf %6, %7 : vector<8x128xf32>
    %9 = arith.truncf %8 : vector<8x128xf32> to vector<8x128xbf16>
    %c0_6 = arith.constant 0 : index
    %c0_7 = arith.constant 0 : index
    %10 = vector.load %arg4[%c0_6, %c0_7] : memref<128x64xbf16, #tpu.memory_space<vmem>>, vector<128x64xbf16>
    %cst_8 = arith.constant dense<0.000000e+00> : vector<8x64xf32>
    %11 = tpu.matmul %9, %10, %cst_8 {dimension_numbers = #tpu.dot_dimension_numbers<[1], [0], [0], [1], [0, 0, 1, 1], [], []>} : vector<8x128xbf16>, vector<128x64xbf16>, vector<8x64xf32> -> vector<8x64xf32>
    %c0_9 = arith.constant 0 : index
    %c0_10 = arith.constant 0 : index
    %12 = vector.load %arg5[%c0_9, %c0_10] : memref<1x64xf32, #tpu.memory_space<vmem>>, vector<1x64xf32>
    %13 = vector.broadcast %12 : vector<1x64xf32> to vector<8x64xf32>
    %14 = arith.addf %11, %13 : vector<8x64xf32>
    %cst_11 = arith.constant 0.000000e+00 : f32
    %15 = vector.broadcast %cst_11 : f32 to vector<8x64xf32>
    %16 = arith.maximumf %14, %15 : vector<8x64xf32>
    %17 = arith.truncf %16 : vector<8x64xf32> to vector<8x64xbf16>
    %c0_12 = arith.constant 0 : index
    %c0_13 = arith.constant 0 : index
    %18 = vector.load %arg6[%c0_12, %c0_13] : memref<64x16xbf16, #tpu.memory_space<vmem>>, vector<64x16xbf16>
    %cst_14 = arith.constant dense<0.000000e+00> : vector<8x16xf32>
    %19 = tpu.matmul %17, %18, %cst_14 {dimension_numbers = #tpu.dot_dimension_numbers<[1], [0], [0], [1], [0, 0, 1, 1], [], []>} : vector<8x64xbf16>, vector<64x16xbf16>, vector<8x16xf32> -> vector<8x16xf32>
    %c0_15 = arith.constant 0 : index
    %c0_16 = arith.constant 0 : index
    %20 = vector.load %arg7[%c0_15, %c0_16] : memref<1x16xf32, #tpu.memory_space<vmem>>, vector<1x16xf32>
    %21 = vector.broadcast %20 : vector<1x16xf32> to vector<8x16xf32>
    %22 = arith.addf %19, %21 : vector<8x16xf32>
    %c0_17 = arith.constant 0 : index
    %c0_18 = arith.constant 0 : index
    %23 = vector.load %arg12[%c0_17, %c0_18] : memref<8x16xf32, #tpu.memory_space<vmem>>, vector<8x16xf32>
    tpu.vector_store %arg12[%c0_17, %c0_18], %22 {strides = array<i32>} : memref<8x16xf32, #tpu.memory_space<vmem>>, vector<8x16xf32>,
    %24 = arith.truncf %22 : vector<8x16xf32> to vector<8x16xbf16>
    %c0_19 = arith.constant 0 : index
    %c0_20 = arith.constant 0 : index
    %25 = vector.load %arg8[%c0_19, %c0_20] : memref<16x64xbf16, #tpu.memory_space<vmem>>, vector<16x64xbf16>
    %cst_21 = arith.constant dense<0.000000e+00> : vector<8x64xf32>
    %26 = tpu.matmul %24, %25, %cst_21 {dimension_numbers = #tpu.dot_dimension_numbers<[1], [0], [0], [1], [0, 0, 1, 1], [], []>} : vector<8x16xbf16>, vector<16x64xbf16>, vector<8x64xf32> -> vector<8x64xf32>
    %c0_22 = arith.constant 0 : index
    %c0_23 = arith.constant 0 : index
    %27 = vector.load %arg9[%c0_22, %c0_23] : memref<1x64xf32, #tpu.memory_space<vmem>>, vector<1x64xf32>
    %28 = vector.broadcast %27 : vector<1x64xf32> to vector<8x64xf32>
    %29 = arith.addf %26, %28 : vector<8x64xf32>
    %cst_24 = arith.constant 0.000000e+00 : f32
    %30 = vector.broadcast %cst_24 : f32 to vector<8x64xf32>
    %31 = arith.maximumf %29, %30 : vector<8x64xf32>
    %32 = arith.truncf %31 : vector<8x64xf32> to vector<8x64xbf16>
    %c0_25 = arith.constant 0 : index
    %c0_26 = arith.constant 0 : index
    %33 = vector.load %arg10[%c0_25, %c0_26] : memref<64x288xbf16, #tpu.memory_space<vmem>>, vector<64x288xbf16>
    %cst_27 = arith.constant dense<0.000000e+00> : vector<8x288xf32>
    %34 = tpu.matmul %32, %33, %cst_27 {dimension_numbers = #tpu.dot_dimension_numbers<[1], [0], [0], [1], [0, 0, 1, 1], [], []>} : vector<8x64xbf16>, vector<64x288xbf16>, vector<8x288xf32> -> vector<8x288xf32>
    %c0_28 = arith.constant 0 : index
    %c0_29 = arith.constant 0 : index
    %35 = vector.load %arg11[%c0_28, %c0_29] : memref<1x288xf32, #tpu.memory_space<vmem>>, vector<1x288xf32>
    %36 = vector.broadcast %35 : vector<1x288xf32> to vector<8x288xf32>
    %37 = arith.addf %34, %36 : vector<8x288xf32>
    %cst_30 = arith.constant 0.000000e+00 : f32
    %38 = vector.broadcast %cst_30 : f32 to vector<8x288xf32>
    %39 = arith.maximumf %37, %38 : vector<8x288xf32>
    %c0_31 = arith.constant 0 : index
    %c0_32 = arith.constant 0 : index
    %40 = vector.load %arg13[%c0_31, %c0_32] : memref<8x288xf32, #tpu.memory_space<vmem>>, vector<8x288xf32>
    tpu.vector_store %arg13[%c0_31, %c0_32], %39 {strides = array<i32>} : memref<8x288xf32, #tpu.memory_space<vmem>>, vector<8x288xf32>,
    return
  }
  func.func @transform_0(%arg0: i32) -> (i32, i32) {
    %c0_i32 = arith.constant 0 : i32
    %c0_i32_0 = arith.constant 0 : i32
    return %arg0, %c0_i32 : i32, i32
  }
  func.func @transform_1(%arg0: i32) -> (i32, i32) {
    %c0_i32 = arith.constant 0 : i32
    %c0_i32_0 = arith.constant 0 : i32
    %c0_i32_1 = arith.constant 0 : i32
    return %c0_i32, %c0_i32_0 : i32, i32
  }
  func.func @transform_2(%arg0: i32) -> (i32, i32) {
    %c0_i32 = arith.constant 0 : i32
    %c0_i32_0 = arith.constant 0 : i32
    %c0_i32_1 = arith.constant 0 : i32
    return %c0_i32, %c0_i32_0 : i32, i32
  }
  func.func @transform_3(%arg0: i32) -> (i32, i32) {
    %c0_i32 = arith.constant 0 : i32
    %c0_i32_0 = arith.constant 0 : i32
    %c0_i32_1 = arith.constant 0 : i32
    return %c0_i32, %c0_i32_0 : i32, i32
  }
  func.func @transform_4(%arg0: i32) -> (i32, i32) {
    %c0_i32 = arith.constant 0 : i32
    %c0_i32_0 = arith.constant 0 : i32
    %c0_i32_1 = arith.constant 0 : i32
    return %c0_i32, %c0_i32_0 : i32, i32
  }
  func.func @transform_5(%arg0: i32) -> (i32, i32) {
    %c0_i32 = arith.constant 0 : i32
    %c0_i32_0 = arith.constant 0 : i32
    %c0_i32_1 = arith.constant 0 : i32
    return %c0_i32, %c0_i32_0 : i32, i32
  }
  func.func @transform_6(%arg0: i32) -> (i32, i32) {
    %c0_i32 = arith.constant 0 : i32
    %c0_i32_0 = arith.constant 0 : i32
    %c0_i32_1 = arith.constant 0 : i32
    return %c0_i32, %c0_i32_0 : i32, i32
  }
  func.func @transform_7(%arg0: i32) -> (i32, i32) {
    %c0_i32 = arith.constant 0 : i32
    %c0_i32_0 = arith.constant 0 : i32
    %c0_i32_1 = arith.constant 0 : i32
    return %c0_i32, %c0_i32_0 : i32, i32
  }
  func.func @transform_8(%arg0: i32) -> (i32, i32) {
    %c0_i32 = arith.constant 0 : i32
    %c0_i32_0 = arith.constant 0 : i32
    %c0_i32_1 = arith.constant 0 : i32
    return %c0_i32, %c0_i32_0 : i32, i32
  }
  func.func @transform_9(%arg0: i32) -> (i32, i32) {
    %c0_i32 = arith.constant 0 : i32
    %c0_i32_0 = arith.constant 0 : i32
    %c0_i32_1 = arith.constant 0 : i32
    return %c0_i32, %c0_i32_0 : i32, i32
  }
  func.func @transform_10(%arg0: i32) -> (i32, i32) {
    %c0_i32 = arith.constant 0 : i32
    %c0_i32_0 = arith.constant 0 : i32
    %c0_i32_1 = arith.constant 0 : i32
    return %c0_i32, %c0_i32_0 : i32, i32
  }
  func.func @transform_11(%arg0: i32) -> (i32, i32) {
    %c0_i32 = arith.constant 0 : i32
    %c0_i32_0 = arith.constant 0 : i32
    return %arg0, %c0_i32 : i32, i32
  }
  func.func @transform_12(%arg0: i32) -> (i32, i32) {
    %c0_i32 = arith.constant 0 : i32
    %c0_i32_0 = arith.constant 0 : i32
    return %arg0, %c0_i32 : i32, i32
  }
}

module attributes {stable_mosaic.version = 11 : i64} {
  func.func @_conv_stats_kernel(%arg0: i32, %arg1: memref<288x128xbf16, #tpu.memory_space<vmem>>, %arg2: memref<16x288xbf16, #tpu.memory_space<vmem>>, %arg3: memref<16x128xf32, #tpu.memory_space<vmem>>, %arg4: memref<16x1xf32, #tpu.memory_space<vmem>>, %arg5: memref<16x1xf32, #tpu.memory_space<vmem>>) attributes {dimension_semantics = [#tpu.dimension_semantics<arbitrary>], iteration_bounds = array<i64: 1>, scalar_prefetch = 0 : i64, scratch_operands = 0 : i64, tpu.core_type = #tpu.core_type<tc>, window_params = [{transform_indices = @transform_0, window_bounds = array<i64: 288, 128>}, {pipeline_mode = #tpu.pipeline_mode<synchronous>, transform_indices = @transform_1, window_bounds = array<i64: 16, 288>}, {transform_indices = @transform_2, window_bounds = array<i64: 16, 128>}, {pipeline_mode = #tpu.pipeline_mode<synchronous>, transform_indices = @transform_3, window_bounds = array<i64: 16, 1>}, {pipeline_mode = #tpu.pipeline_mode<synchronous>, transform_indices = @transform_4, window_bounds = array<i64: 16, 1>}]} {
    %c0 = arith.constant 0 : index
    %c0_0 = arith.constant 0 : index
    %0 = vector.load %arg2[%c0, %c0_0] : memref<16x288xbf16, #tpu.memory_space<vmem>>, vector<16x288xbf16>
    %c0_1 = arith.constant 0 : index
    %c0_2 = arith.constant 0 : index
    %1 = vector.load %arg1[%c0_1, %c0_2] : memref<288x128xbf16, #tpu.memory_space<vmem>>, vector<288x128xbf16>
    %cst = arith.constant dense<0.000000e+00> : vector<16x128xf32>
    %2 = tpu.matmul %0, %1, %cst {dimension_numbers = #tpu.dot_dimension_numbers<[1], [0], [0], [1], [0, 0, 1, 1], [], []>} : vector<16x288xbf16>, vector<288x128xbf16>, vector<16x128xf32> -> vector<16x128xf32>
    %c0_3 = arith.constant 0 : index
    %c0_4 = arith.constant 0 : index
    %3 = vector.load %arg3[%c0_3, %c0_4] : memref<16x128xf32, #tpu.memory_space<vmem>>, vector<16x128xf32>
    tpu.vector_store %arg3[%c0_3, %c0_4], %2 {strides = array<i32>} : memref<16x128xf32, #tpu.memory_space<vmem>>, vector<16x128xf32>,
    %4 = tpu.iota {dimensions = array<i32: 1>} : vector<16x128xi32>
    %c128_i32 = arith.constant 128 : i32
    %5 = arith.muli %arg0, %c128_i32 : i32
    %6 = vector.broadcast %5 : i32 to vector<16x128xi32>
    %7 = arith.addi %4, %6 : vector<16x128xi32>
    %c98_i32 = arith.constant 98 : i32
    %8 = vector.broadcast %c98_i32 : i32 to vector<16x128xi32>
    %9 = arith.cmpi slt, %7, %8 : vector<16x128xi32>
    %cst_5 = arith.constant 0.000000e+00 : f32
    %10 = vector.broadcast %cst_5 : f32 to vector<16x128xf32>
    %11 = arith.select %9, %2, %10 : vector<16x128xi1>, vector<16x128xf32>
    %c0_i32 = arith.constant 0 : i32
    %12 = arith.cmpi eq, %arg0, %c0_i32 : i32
    %13 = arith.extui %12 : i1 to i32
    %c0_i32_6 = arith.constant 0 : i32
    %14 = arith.cmpi ne, %13, %c0_i32_6 : i32
    scf.if %14 {
      %cst_17 = arith.constant 0.000000e+00 : f32
      %26 = vector.broadcast %cst_17 : f32 to vector<16x1xf32>
      %c0_18 = arith.constant 0 : index
      %c0_19 = arith.constant 0 : index
      %27 = vector.load %arg4[%c0_18, %c0_19] : memref<16x1xf32, #tpu.memory_space<vmem>>, vector<16x1xf32>
      tpu.vector_store %arg4[%c0_18, %c0_19], %26 {strides = array<i32>} : memref<16x1xf32, #tpu.memory_space<vmem>>, vector<16x1xf32>,
      %cst_20 = arith.constant 0.000000e+00 : f32
      %28 = vector.broadcast %cst_20 : f32 to vector<16x1xf32>
      %c0_21 = arith.constant 0 : index
      %c0_22 = arith.constant 0 : index
      %29 = vector.load %arg5[%c0_21, %c0_22] : memref<16x1xf32, #tpu.memory_space<vmem>>, vector<16x1xf32>
      tpu.vector_store %arg5[%c0_21, %c0_22], %28 {strides = array<i32>} : memref<16x1xf32, #tpu.memory_space<vmem>>, vector<16x1xf32>,
    } else {
    }
    %c0_7 = arith.constant 0 : index
    %c0_8 = arith.constant 0 : index
    %15 = vector.load %arg4[%c0_7, %c0_8] : memref<16x1xf32, #tpu.memory_space<vmem>>, vector<16x1xf32>
    %cst_9 = arith.constant dense<0.000000e+00> : vector<16xf32>
    %16 = vector.multi_reduction <add>, %11, %cst_9 [1] : vector<16x128xf32> to vector<16xf32>
    %17 = vector.shape_cast %16 : vector<16xf32> to vector<16x1xf32>
    %18 = arith.addf %15, %17 : vector<16x1xf32>
    %c0_10 = arith.constant 0 : index
    %c0_11 = arith.constant 0 : index
    %19 = vector.load %arg4[%c0_10, %c0_11] : memref<16x1xf32, #tpu.memory_space<vmem>>, vector<16x1xf32>
    tpu.vector_store %arg4[%c0_10, %c0_11], %18 {strides = array<i32>} : memref<16x1xf32, #tpu.memory_space<vmem>>, vector<16x1xf32>,
    %c0_12 = arith.constant 0 : index
    %c0_13 = arith.constant 0 : index
    %20 = vector.load %arg5[%c0_12, %c0_13] : memref<16x1xf32, #tpu.memory_space<vmem>>, vector<16x1xf32>
    %21 = arith.mulf %11, %11 : vector<16x128xf32>
    %cst_14 = arith.constant dense<0.000000e+00> : vector<16xf32>
    %22 = vector.multi_reduction <add>, %21, %cst_14 [1] : vector<16x128xf32> to vector<16xf32>
    %23 = vector.shape_cast %22 : vector<16xf32> to vector<16x1xf32>
    %24 = arith.addf %20, %23 : vector<16x1xf32>
    %c0_15 = arith.constant 0 : index
    %c0_16 = arith.constant 0 : index
    %25 = vector.load %arg5[%c0_15, %c0_16] : memref<16x1xf32, #tpu.memory_space<vmem>>, vector<16x1xf32>
    tpu.vector_store %arg5[%c0_15, %c0_16], %24 {strides = array<i32>} : memref<16x1xf32, #tpu.memory_space<vmem>>, vector<16x1xf32>,
    return
  }
  func.func @transform_0(%arg0: i32) -> (i32, i32) {
    %c0_i32 = arith.constant 0 : i32
    %c0_i32_0 = arith.constant 0 : i32
    return %c0_i32, %arg0 : i32, i32
  }
  func.func @transform_1(%arg0: i32) -> (i32, i32) {
    %c0_i32 = arith.constant 0 : i32
    %c0_i32_0 = arith.constant 0 : i32
    %c0_i32_1 = arith.constant 0 : i32
    return %c0_i32, %c0_i32_0 : i32, i32
  }
  func.func @transform_2(%arg0: i32) -> (i32, i32) {
    %c0_i32 = arith.constant 0 : i32
    %c0_i32_0 = arith.constant 0 : i32
    return %c0_i32, %arg0 : i32, i32
  }
  func.func @transform_3(%arg0: i32) -> (i32, i32) {
    %c0_i32 = arith.constant 0 : i32
    %c0_i32_0 = arith.constant 0 : i32
    %c0_i32_1 = arith.constant 0 : i32
    return %c0_i32, %c0_i32_0 : i32, i32
  }
  func.func @transform_4(%arg0: i32) -> (i32, i32) {
    %c0_i32 = arith.constant 0 : i32
    %c0_i32_0 = arith.constant 0 : i32
    %c0_i32_1 = arith.constant 0 : i32
    return %c0_i32, %c0_i32_0 : i32, i32
  }
}

module attributes {stable_mosaic.version = 11 : i64} {
  func.func @_conv_stats_kernel(%arg0: i32, %arg1: memref<144x128xbf16, #tpu.memory_space<vmem>>, %arg2: memref<32x144xbf16, #tpu.memory_space<vmem>>, %arg3: memref<32x128xf32, #tpu.memory_space<vmem>>, %arg4: memref<32x1xf32, #tpu.memory_space<vmem>>, %arg5: memref<32x1xf32, #tpu.memory_space<vmem>>) attributes {dimension_semantics = [#tpu.dimension_semantics<arbitrary>], iteration_bounds = array<i64: 1>, scalar_prefetch = 0 : i64, scratch_operands = 0 : i64, tpu.core_type = #tpu.core_type<tc>, window_params = [{transform_indices = @transform_0, window_bounds = array<i64: 144, 128>}, {pipeline_mode = #tpu.pipeline_mode<synchronous>, transform_indices = @transform_1, window_bounds = array<i64: 32, 144>}, {transform_indices = @transform_2, window_bounds = array<i64: 32, 128>}, {pipeline_mode = #tpu.pipeline_mode<synchronous>, transform_indices = @transform_3, window_bounds = array<i64: 32, 1>}, {pipeline_mode = #tpu.pipeline_mode<synchronous>, transform_indices = @transform_4, window_bounds = array<i64: 32, 1>}]} {
    %c0 = arith.constant 0 : index
    %c0_0 = arith.constant 0 : index
    %0 = vector.load %arg2[%c0, %c0_0] : memref<32x144xbf16, #tpu.memory_space<vmem>>, vector<32x144xbf16>
    %c0_1 = arith.constant 0 : index
    %c0_2 = arith.constant 0 : index
    %1 = vector.load %arg1[%c0_1, %c0_2] : memref<144x128xbf16, #tpu.memory_space<vmem>>, vector<144x128xbf16>
    %cst = arith.constant dense<0.000000e+00> : vector<32x128xf32>
    %2 = tpu.matmul %0, %1, %cst {dimension_numbers = #tpu.dot_dimension_numbers<[1], [0], [0], [1], [0, 0, 1, 1], [], []>} : vector<32x144xbf16>, vector<144x128xbf16>, vector<32x128xf32> -> vector<32x128xf32>
    %c0_3 = arith.constant 0 : index
    %c0_4 = arith.constant 0 : index
    %3 = vector.load %arg3[%c0_3, %c0_4] : memref<32x128xf32, #tpu.memory_space<vmem>>, vector<32x128xf32>
    tpu.vector_store %arg3[%c0_3, %c0_4], %2 {strides = array<i32>} : memref<32x128xf32, #tpu.memory_space<vmem>>, vector<32x128xf32>,
    %4 = tpu.iota {dimensions = array<i32: 1>} : vector<32x128xi32>
    %c128_i32 = arith.constant 128 : i32
    %5 = arith.muli %arg0, %c128_i32 : i32
    %6 = vector.broadcast %5 : i32 to vector<32x128xi32>
    %7 = arith.addi %4, %6 : vector<32x128xi32>
    %c98_i32 = arith.constant 98 : i32
    %8 = vector.broadcast %c98_i32 : i32 to vector<32x128xi32>
    %9 = arith.cmpi slt, %7, %8 : vector<32x128xi32>
    %cst_5 = arith.constant 0.000000e+00 : f32
    %10 = vector.broadcast %cst_5 : f32 to vector<32x128xf32>
    %11 = arith.select %9, %2, %10 : vector<32x128xi1>, vector<32x128xf32>
    %c0_i32 = arith.constant 0 : i32
    %12 = arith.cmpi eq, %arg0, %c0_i32 : i32
    %13 = arith.extui %12 : i1 to i32
    %c0_i32_6 = arith.constant 0 : i32
    %14 = arith.cmpi ne, %13, %c0_i32_6 : i32
    scf.if %14 {
      %cst_17 = arith.constant 0.000000e+00 : f32
      %26 = vector.broadcast %cst_17 : f32 to vector<32x1xf32>
      %c0_18 = arith.constant 0 : index
      %c0_19 = arith.constant 0 : index
      %27 = vector.load %arg4[%c0_18, %c0_19] : memref<32x1xf32, #tpu.memory_space<vmem>>, vector<32x1xf32>
      tpu.vector_store %arg4[%c0_18, %c0_19], %26 {strides = array<i32>} : memref<32x1xf32, #tpu.memory_space<vmem>>, vector<32x1xf32>,
      %cst_20 = arith.constant 0.000000e+00 : f32
      %28 = vector.broadcast %cst_20 : f32 to vector<32x1xf32>
      %c0_21 = arith.constant 0 : index
      %c0_22 = arith.constant 0 : index
      %29 = vector.load %arg5[%c0_21, %c0_22] : memref<32x1xf32, #tpu.memory_space<vmem>>, vector<32x1xf32>
      tpu.vector_store %arg5[%c0_21, %c0_22], %28 {strides = array<i32>} : memref<32x1xf32, #tpu.memory_space<vmem>>, vector<32x1xf32>,
    } else {
    }
    %c0_7 = arith.constant 0 : index
    %c0_8 = arith.constant 0 : index
    %15 = vector.load %arg4[%c0_7, %c0_8] : memref<32x1xf32, #tpu.memory_space<vmem>>, vector<32x1xf32>
    %cst_9 = arith.constant dense<0.000000e+00> : vector<32xf32>
    %16 = vector.multi_reduction <add>, %11, %cst_9 [1] : vector<32x128xf32> to vector<32xf32>
    %17 = vector.shape_cast %16 : vector<32xf32> to vector<32x1xf32>
    %18 = arith.addf %15, %17 : vector<32x1xf32>
    %c0_10 = arith.constant 0 : index
    %c0_11 = arith.constant 0 : index
    %19 = vector.load %arg4[%c0_10, %c0_11] : memref<32x1xf32, #tpu.memory_space<vmem>>, vector<32x1xf32>
    tpu.vector_store %arg4[%c0_10, %c0_11], %18 {strides = array<i32>} : memref<32x1xf32, #tpu.memory_space<vmem>>, vector<32x1xf32>,
    %c0_12 = arith.constant 0 : index
    %c0_13 = arith.constant 0 : index
    %20 = vector.load %arg5[%c0_12, %c0_13] : memref<32x1xf32, #tpu.memory_space<vmem>>, vector<32x1xf32>
    %21 = arith.mulf %11, %11 : vector<32x128xf32>
    %cst_14 = arith.constant dense<0.000000e+00> : vector<32xf32>
    %22 = vector.multi_reduction <add>, %21, %cst_14 [1] : vector<32x128xf32> to vector<32xf32>
    %23 = vector.shape_cast %22 : vector<32xf32> to vector<32x1xf32>
    %24 = arith.addf %20, %23 : vector<32x1xf32>
    %c0_15 = arith.constant 0 : index
    %c0_16 = arith.constant 0 : index
    %25 = vector.load %arg5[%c0_15, %c0_16] : memref<32x1xf32, #tpu.memory_space<vmem>>, vector<32x1xf32>
    tpu.vector_store %arg5[%c0_15, %c0_16], %24 {strides = array<i32>} : memref<32x1xf32, #tpu.memory_space<vmem>>, vector<32x1xf32>,
    return
  }
  func.func @transform_0(%arg0: i32) -> (i32, i32) {
    %c0_i32 = arith.constant 0 : i32
    %c0_i32_0 = arith.constant 0 : i32
    return %c0_i32, %arg0 : i32, i32
  }
  func.func @transform_1(%arg0: i32) -> (i32, i32) {
    %c0_i32 = arith.constant 0 : i32
    %c0_i32_0 = arith.constant 0 : i32
    %c0_i32_1 = arith.constant 0 : i32
    return %c0_i32, %c0_i32_0 : i32, i32
  }
  func.func @transform_2(%arg0: i32) -> (i32, i32) {
    %c0_i32 = arith.constant 0 : i32
    %c0_i32_0 = arith.constant 0 : i32
    return %c0_i32, %arg0 : i32, i32
  }
  func.func @transform_3(%arg0: i32) -> (i32, i32) {
    %c0_i32 = arith.constant 0 : i32
    %c0_i32_0 = arith.constant 0 : i32
    %c0_i32_1 = arith.constant 0 : i32
    return %c0_i32, %c0_i32_0 : i32, i32
  }
  func.func @transform_4(%arg0: i32) -> (i32, i32) {
    %c0_i32 = arith.constant 0 : i32
    %c0_i32_0 = arith.constant 0 : i32
    %c0_i32_1 = arith.constant 0 : i32
    return %c0_i32, %c0_i32_0 : i32, i32
  }
}

module attributes {stable_mosaic.version = 11 : i64} {
  func.func @_conv_bias_act_kernel(%arg0: i32, %arg1: memref<72x512xbf16, #tpu.memory_space<vmem>>, %arg2: memref<4x72xbf16, #tpu.memory_space<vmem>>, %arg3: memref<4x1xf32, #tpu.memory_space<vmem>>, %arg4: memref<4x512xf32, #tpu.memory_space<vmem>>) attributes {dimension_semantics = [#tpu.dimension_semantics<parallel>], iteration_bounds = array<i64: 1>, scalar_prefetch = 0 : i64, scratch_operands = 0 : i64, tpu.core_type = #tpu.core_type<tc>, window_params = [{transform_indices = @transform_0, window_bounds = array<i64: 72, 512>}, {pipeline_mode = #tpu.pipeline_mode<synchronous>, transform_indices = @transform_1, window_bounds = array<i64: 4, 72>}, {pipeline_mode = #tpu.pipeline_mode<synchronous>, transform_indices = @transform_2, window_bounds = array<i64: 4, 1>}, {transform_indices = @transform_3, window_bounds = array<i64: 4, 512>}]} {
    %c0 = arith.constant 0 : index
    %c0_0 = arith.constant 0 : index
    %0 = vector.load %arg2[%c0, %c0_0] : memref<4x72xbf16, #tpu.memory_space<vmem>>, vector<4x72xbf16>
    %c0_1 = arith.constant 0 : index
    %c0_2 = arith.constant 0 : index
    %1 = vector.load %arg1[%c0_1, %c0_2] : memref<72x512xbf16, #tpu.memory_space<vmem>>, vector<72x512xbf16>
    %cst = arith.constant dense<0.000000e+00> : vector<4x512xf32>
    %2 = tpu.matmul %0, %1, %cst {dimension_numbers = #tpu.dot_dimension_numbers<[1], [0], [0], [1], [0, 0, 1, 1], [], []>} : vector<4x72xbf16>, vector<72x512xbf16>, vector<4x512xf32> -> vector<4x512xf32>
    %c0_3 = arith.constant 0 : index
    %c0_4 = arith.constant 0 : index
    %3 = vector.load %arg3[%c0_3, %c0_4] : memref<4x1xf32, #tpu.memory_space<vmem>>, vector<4x1xf32>
    %4 = vector.broadcast %3 : vector<4x1xf32> to vector<4x512xf32>
    %5 = arith.addf %2, %4 : vector<4x512xf32>
    %cst_5 = arith.constant 0.000000e+00 : f32
    %6 = vector.broadcast %cst_5 : f32 to vector<4x512xf32>
    %7 = arith.subf %6, %5 : vector<4x512xf32>
    %8 = math.exp %7 : vector<4x512xf32>
    %cst_6 = arith.constant 1.000000e+00 : f32
    %9 = vector.broadcast %cst_6 : f32 to vector<4x512xf32>
    %10 = arith.addf %9, %8 : vector<4x512xf32>
    %cst_7 = arith.constant 1.000000e+00 : f32
    %11 = vector.broadcast %cst_7 : f32 to vector<4x512xf32>
    %12 = arith.divf %11, %10 : vector<4x512xf32>
    %c0_8 = arith.constant 0 : index
    %c0_9 = arith.constant 0 : index
    %13 = vector.load %arg4[%c0_8, %c0_9] : memref<4x512xf32, #tpu.memory_space<vmem>>, vector<4x512xf32>
    tpu.vector_store %arg4[%c0_8, %c0_9], %12 {strides = array<i32>} : memref<4x512xf32, #tpu.memory_space<vmem>>, vector<4x512xf32>,
    return
  }
  func.func @transform_0(%arg0: i32) -> (i32, i32) {
    %c0_i32 = arith.constant 0 : i32
    %c0_i32_0 = arith.constant 0 : i32
    return %c0_i32, %arg0 : i32, i32
  }
  func.func @transform_1(%arg0: i32) -> (i32, i32) {
    %c0_i32 = arith.constant 0 : i32
    %c0_i32_0 = arith.constant 0 : i32
    %c0_i32_1 = arith.constant 0 : i32
    return %c0_i32, %c0_i32_0 : i32, i32
  }
  func.func @transform_2(%arg0: i32) -> (i32, i32) {
    %c0_i32 = arith.constant 0 : i32
    %c0_i32_0 = arith.constant 0 : i32
    %c0_i32_1 = arith.constant 0 : i32
    return %c0_i32, %c0_i32_0 : i32, i32
  }
  func.func @transform_3(%arg0: i32) -> (i32, i32) {
    %c0_i32 = arith.constant 0 : i32
    %c0_i32_0 = arith.constant 0 : i32
    return %c0_i32, %arg0 : i32, i32
  }
}

</mosaic_0001>

<llo_original>
// kernel: forward.11
$region0: #{forward.11}
  #allocation0 [shape = 'u32[]', space=smem, size = 0x4, offset = 0x4, fixed_abs, tag = 'smem constant byte address 0x4 - core index']
  #allocation1 [shape = 'u32[144,128]{1,0:T(1,128)}', space=vmem, size = 0x12000, scoped, tag = 'internal scratch']
  %s0 = inlined_call_operand.vmem [shape: bf16[9,512], index: 0, kind: input, shape index: {}]
  %s1 = inlined_call_operand.vmem [shape: bf16[8,9], index: 1, kind: input, shape index: {}]
  %s2 = inlined_call_operand.vmem [shape: f32[8,1], index: 2, kind: input, shape index: {}]
  %s3 = inlined_call_operand.vmem [shape: f32[8,512], index: 3, kind: output, shape index: {}]
  %s4 = sld [smem:[#allocation0]]
  $region22: #{forward.11} parent=0
    _
  %s6 = ssub.s32 1, %s4
  %s7 = scalar_select 0, %s6, %s4
  // Predicated region
  $region2: #{forward.11} parent=0 // pred_check
    _
  $region3: #{forward.11} parent=0 // pred_check_branch
    %9 = sbr.rel (0) target = $region5
  $region4: #{forward.11} parent=0 // pred_region
    _
  $region5: #{forward.11} parent=0 // pred_fallthru
    _
  // Predicated region
  $region6: #{forward.11} parent=0 // pred_check
    _
  $region7: #{forward.11} parent=0 // pred_check_branch
    %11 = sbr.rel (0) target = $region9
  $region8: #{forward.11} parent=0 // pred_region
    _
  $region9: #{forward.11} parent=0 // pred_fallthru
    _
  // Predicated region
  $region10: #{forward.11} parent=0 // pred_check
    _
  $region11: #{forward.11} parent=0 // pred_check_branch
    %13 = sbr.rel (0) target = $region13
  $region12: #{forward.11} parent=0 // pred_region
    _
  $region13: #{forward.11} parent=0 // pred_fallthru
    _
  %v15 = vld [vmem:[%s1] sm:$0xf]
  %v16 = vld [vmem:[%s0] sm:$0xff]
  %v17 = vld [vmem:[%s0 + $0x8] sm:$0xff]
  %v18 = vld [vmem:[%s0 + $0x10] sm:$0x11]
  %v19 = vld [vmem:[%s0 + $0x18] sm:$0x11]
  %v20 = vld [vmem:[%s2] sm:$0xff]
  %22 = vset.pattern.permute.xlu0 0
  %23 = vperm.xlu0 %22, %v20
  %v24 = vpop.permute.xlu0 %23
  %v30 = vunpack.c.l.b16 %v16
  %v31 = vunpack.c.h.b16 %v16
  %v32 = vunpack.c.l.b16 %v17
  %v33 = vunpack.c.h.b16 %v17
  %v34 = vunpack.c.l.b16 %v18
  %v35 = vunpack.c.h.b16 %v18
  %v36 = vunpack.c.l.b16 %v19
  %v37 = vunpack.c.h.b16 %v19
  %v38 = vpack.c.b16 %v34, %v30
  %v39 = vpack.c.b16 %v35, %v31
  %v40 = vpack.c.b16 %v36, %v32
  %v41 = vpack.c.b16 %v37, %v33
  %vm42 = vcmask 72704
  %v44 = vsel %vm42, %v15, 0
  %vm46 = vcmask 1043456
  %vm47 = vcmask 1044480
  %v48 = vsel %vm46, 4294967295, 65535
  %v49 = vsel %vm47, %v48, 0
  %v51 = vand.u32 %v38, %v49
  %v54 = vand.u32 %v39, %v49
  %v57 = vand.u32 %v40, %v49
  %v60 = vand.u32 %v41, %v49
  %62 = vmatprep.subr.bf16.mxu0 %v54
  %63 = vmatpush1.bf16.msra.mxu0 %v51
  %64 = vmatprep.subr.bf16.mxu0 0
  %65 = vmatpush1.bf16.msra.mxu0 0
  %66 = vmatprep.subr.bf16.mxu0 0
  %67 = vmatpush1.bf16.msra.mxu0 0
  %68 = vmatprep.subr.bf16.mxu0 0
  %69 = vmatpush1.bf16.msra.mxu0 0
  %70 = vmatprep.subr.bf16.mxu0 0
  %71 = vmatpush1.bf16.msra.mxu0 0
  %72 = vmatprep.subr.bf16.mxu0 0
  %73 = vmatpush1.bf16.msra.mxu0 0
  %74 = vmatprep.subr.bf16.mxu0 0
  %75 = vmatpush1.bf16.msra.mxu0 0
  %76 = vmatprep.subr.bf16.mxu0 0
  %77 = vmatpush1.bf16.msra.mxu0 0
  %78 = vmatprep.subr.bf16.mxu0 0
  %79 = vmatpush1.bf16.msra.mxu0 0
  %80 = vmatprep.subr.bf16.mxu0 0
  %81 = vmatpush1.bf16.msra.mxu0 0
  %82 = vmatprep.subr.bf16.mxu0 0
  %83 = vmatpush1.bf16.msra.mxu0 0
  %84 = vmatprep.subr.bf16.mxu0 0
  %85 = vmatpush1.bf16.msra.mxu0 0
  %86 = vmatprep.subr.bf16.mxu0 0
  %87 = vmatpush1.bf16.msra.mxu0 0
  %88 = vmatprep.subr.bf16.mxu0 0
  %89 = vmatpush1.bf16.msra.mxu0 0
  %90 = vmatprep.subr.bf16.mxu0 0
  %91 = vmatpush1.bf16.msra.mxu0 0
  %92 = vmatprep.subr.bf16.mxu0 0
  %93 = vmatpush1.bf16.msra.mxu0 0
  %94 = vmatprep.mubr.bf16.mxu0 0
  %95 = vmatmul.mubr.bf16.gmra.mrb[0].mxu0 %v44
  %v96 = vpop.f32.mrb[0].mxu0
  %v97 = vadd.f32 %v24, %v96
  %v98 = vpop.f32.mrb[0].mxu0
  %v99 = vadd.f32 %v24, %v98
  %v100 = vpop.f32.mrb[0].mxu0
  %v101 = vpop.f32.mrb[0].mxu0
  %102 = vdwg.mxu0
  %103 = vmatprep.subr.bf16.mxu0 %v60
  %104 = vmatpush1.bf16.msra.mxu0 %v57
  %105 = vmatprep.subr.bf16.mxu0 0
  %106 = vmatpush1.bf16.msra.mxu0 0
  %107 = vmatprep.subr.bf16.mxu0 0
  %108 = vmatpush1.bf16.msra.mxu0 0
  %109 = vmatprep.subr.bf16.mxu0 0
  %110 = vmatpush1.bf16.msra.mxu0 0
  %111 = vmatprep.subr.bf16.mxu0 0
  %112 = vmatpush1.bf16.msra.mxu0 0
  %113 = vmatprep.subr.bf16.mxu0 0
  %114 = vmatpush1.bf16.msra.mxu0 0
  %115 = vmatprep.subr.bf16.mxu0 0
  %116 = vmatpush1.bf16.msra.mxu0 0
  %117 = vmatprep.subr.bf16.mxu0 0
  %118 = vmatpush1.bf16.msra.mxu0 0
  %119 = vmatprep.subr.bf16.mxu0 0
  %120 = vmatpush1.bf16.msra.mxu0 0
  %121 = vmatprep.subr.bf16.mxu0 0
  %122 = vmatpush1.bf16.msra.mxu0 0
  %123 = vmatprep.subr.bf16.mxu0 0
  %124 = vmatpush1.bf16.msra.mxu0 0
  %125 = vmatprep.subr.bf16.mxu0 0
  %126 = vmatpush1.bf16.msra.mxu0 0
  %127 = vmatprep.subr.bf16.mxu0 0
  %128 = vmatpush1.bf16.msra.mxu0 0
  %129 = vmatprep.subr.bf16.mxu0 0
  %130 = vmatpush1.bf16.msra.mxu0 0
  %131 = vmatprep.subr.bf16.mxu0 0
  %132 = vmatpush1.bf16.msra.mxu0 0
  %133 = vmatprep.subr.bf16.mxu0 0
  %134 = vmatpush1.bf16.msra.mxu0 0
  %135 = vmatprep.mubr.bf16.mxu0 0
  %136 = vmatmul.mubr.bf16.gmra.mrb[0].mxu0 %v44
  %v137 = vpop.f32.mrb[0].mxu0
  %v138 = vadd.f32 %v24, %v137
  %v139 = vpop.f32.mrb[0].mxu0
  %v140 = vadd.f32 %v24, %v139
  %v141 = vpop.f32.mrb[0].mxu0
  %v142 = vpop.f32.mrb[0].mxu0
  %143 = vdwg.mxu0
  %v144 = vmax.f32 %v97, 0.0
  %v145 = vmax.f32 %v99, 0.0
  %v146 = vmax.f32 %v138, 0.0
  %v147 = vmax.f32 %v140, 0.0
  %148 = vst [vmem:[%s3] sm:$0xff] %v144
  %149 = vst [vmem:[%s3 + $0x8] sm:$0xff] %v145
  %150 = vst [vmem:[%s3 + $0x10] sm:$0xff] %v146
  %151 = vst [vmem:[%s3 + $0x18] sm:$0xff] %v147
  // Predicated region
  $region14: #{forward.11} parent=0 // pred_check
    _
  $region15: #{forward.11} parent=0 // pred_check_branch
    %153 = sbr.rel (0) target = $region17
  $region16: #{forward.11} parent=0 // pred_region
    _
  $region17: #{forward.11} parent=0 // pred_fallthru
    _
  // Predicated region
  $region18: #{forward.11} parent=0 // pred_check
    _
  $region19: #{forward.11} parent=0 // pred_check_branch
    %155 = sbr.rel (0) target = $region21
  $region20: #{forward.11} parent=0 // pred_region
    _
  $region21: #{forward.11} parent=0 // pred_fallthru
    _

// kernel: forward.13
$region0: #{forward.13}
  #allocation0 [shape = 'u32[]', space=smem, size = 0x4, offset = 0x4, fixed_abs, tag = 'smem constant byte address 0x4 - core index']
  #allocation1 [shape = 'u32[144,128]{1,0:T(1,128)}', space=vmem, size = 0x12000, scoped, tag = 'internal scratch']
  %s0 = inlined_call_operand.vmem [shape: f32[16,128], index: 0, kind: input, shape index: {}]
  %s1 = inlined_call_operand.vmem [shape: f32[16,1], index: 1, kind: input, shape index: {}]
  %s2 = inlined_call_operand.vmem [shape: f32[16,1], index: 2, kind: input, shape index: {}]
  %s3 = inlined_call_operand.vmem [shape: f32[16,128], index: 3, kind: output, shape index: {}]
  %s4 = sld [smem:[#allocation0]]
  $region22: #{forward.13} parent=0
    _
  %s6 = ssub.s32 1, %s4
  %s7 = scalar_select 0, %s6, %s4
  // Predicated region
  $region2: #{forward.13} parent=0 // pred_check
    _
  $region3: #{forward.13} parent=0 // pred_check_branch
    %9 = sbr.rel (0) target = $region5
  $region4: #{forward.13} parent=0 // pred_region
    _
  $region5: #{forward.13} parent=0 // pred_fallthru
    _
  // Predicated region
  $region6: #{forward.13} parent=0 // pred_check
    _
  $region7: #{forward.13} parent=0 // pred_check_branch
    %11 = sbr.rel (0) target = $region9
  $region8: #{forward.13} parent=0 // pred_region
    _
  $region9: #{forward.13} parent=0 // pred_fallthru
    _
  // Predicated region
  $region10: #{forward.13} parent=0 // pred_check
    _
  $region11: #{forward.13} parent=0 // pred_check_branch
    %13 = sbr.rel (0) target = $region13
  $region12: #{forward.13} parent=0 // pred_region
    _
  $region13: #{forward.13} parent=0 // pred_fallthru
    _
  %v14 = vld [vmem:[%s0] sm:$0xff]
  %v15 = vld [vmem:[%s0 + $0x8] sm:$0xff]
  %v16 = vld [vmem:[%s1] sm:$0xff]
  %v17 = vld [vmem:[%s1 + $0x8] sm:$0xff]
  %19 = vset.pattern.permute.xlu0 0
  %20 = vperm.xlu0 %19, %v16
  %v21 = vpop.permute.xlu0 %20
  %24 = vset.pattern.permute.xlu0 0
  %25 = vperm.xlu0 %24, %v17
  %v26 = vpop.permute.xlu0 %25
  %v28 = vmul.f32 %v14, %v21
  %v29 = vmul.f32 %v15, %v26
  %v30 = vld [vmem:[%s2] sm:$0xff]
  %v31 = vld [vmem:[%s2 + $0x8] sm:$0xff]
  %33 = vset.pattern.permute.xlu0 0
  %34 = vperm.xlu0 %33, %v30
  %v35 = vpop.permute.xlu0 %34
  %38 = vset.pattern.permute.xlu0 0
  %39 = vperm.xlu0 %38, %v31
  %v40 = vpop.permute.xlu0 %39
  %v42 = vadd.f32 %v28, %v35
  %v43 = vadd.f32 %v29, %v40
  %v44 = vmax.f32 %v42, 0.0
  %v45 = vmax.f32 %v43, 0.0
  %46 = vst [vmem:[%s3] sm:$0xff] %v44
  %47 = vst [vmem:[%s3 + $0x8] sm:$0xff] %v45
  // Predicated region
  $region14: #{forward.13} parent=0 // pred_check
    _
  $region15: #{forward.13} parent=0 // pred_check_branch
    %49 = sbr.rel (0) target = $region17
  $region16: #{forward.13} parent=0 // pred_region
    _
  $region17: #{forward.13} parent=0 // pred_fallthru
    _
  // Predicated region
  $region18: #{forward.13} parent=0 // pred_check
    _
  $region19: #{forward.13} parent=0 // pred_check_branch
    %51 = sbr.rel (0) target = $region21
  $region20: #{forward.13} parent=0 // pred_region
    _
  $region21: #{forward.13} parent=0 // pred_fallthru
    _

// kernel: forward.12
$region0: #{forward.12}
  #allocation0 [shape = 'u32[]', space=smem, size = 0x4, offset = 0x4, fixed_abs, tag = 'smem constant byte address 0x4 - core index']
  #allocation1 [shape = 'u32[144,128]{1,0:T(1,128)}', space=vmem, size = 0x12000, scoped, tag = 'internal scratch']
  %s0 = inlined_call_operand.vmem [shape: bf16[72,128], index: 0, kind: input, shape index: {}]
  %s1 = inlined_call_operand.vmem [shape: bf16[16,72], index: 1, kind: input, shape index: {}]
  %s2 = inlined_call_operand.vmem [shape: f32[16,128], index: 2, kind: output, shape index: {0}]
  %s3 = inlined_call_operand.vmem [shape: f32[16,1], index: 3, kind: output, shape index: {1}]
  %s4 = inlined_call_operand.vmem [shape: f32[16,1], index: 4, kind: output, shape index: {2}]
  %5 = xla_tuple %s2, %s3, %s4
  %s6 = sld [smem:[#allocation0]]
  $region38: #{forward.12} parent=0
    _
  %s8 = ssub.s32 1, %s6
  %s9 = scalar_select 0, %s8, %s6
  // Predicated region
  $region2: #{forward.12} parent=0 // pred_check
    _
  $region3: #{forward.12} parent=0 // pred_check_branch
    %11 = sbr.rel (0) target = $region5
  $region4: #{forward.12} parent=0 // pred_region
    _
  $region5: #{forward.12} parent=0 // pred_fallthru
    _
  // Predicated region
  $region6: #{forward.12} parent=0 // pred_check
    _
  $region7: #{forward.12} parent=0 // pred_check_branch
    %13 = sbr.rel (0) target = $region9
  $region8: #{forward.12} parent=0 // pred_region
    _
  $region9: #{forward.12} parent=0 // pred_fallthru
    _
  %v15 = vld [vmem:[%s1] sm:$0xf]
  %v16 = vld [vmem:[%s1 + $0x4] sm:$0xf]
  %v17 = vld [vmem:[%s0] sm:$0xf]
  %v18 = vld [vmem:[%s0 + $0x4] sm:$0xf]
  %v19 = vld [vmem:[%s0 + $0x8] sm:$0xf]
  %v20 = vld [vmem:[%s0 + $0xc] sm:$0xf]
  %v21 = vld [vmem:[%s0 + $0x10] sm:$0xf]
  %v22 = vld [vmem:[%s0 + $0x14] sm:$0xf]
  %v23 = vld [vmem:[%s0 + $0x18] sm:$0xf]
  %v24 = vld [vmem:[%s0 + $0x1c] sm:$0xf]
  %v25 = vld [vmem:[%s0 + $0x20] sm:$0xf]
  %v28 = vunpack.c.l.b16 %v15
  %v29 = vunpack.c.l.b16 %v16
  %v30 = vpack.c.b16 %v29, %v28
  %v40 = vunpack.c.l.b16 %v17
  %v41 = vunpack.c.l.b16 %v18
  %v42 = vunpack.c.l.b16 %v19
  %v43 = vunpack.c.l.b16 %v20
  %v44 = vunpack.c.l.b16 %v21
  %v45 = vunpack.c.l.b16 %v22
  %v46 = vunpack.c.l.b16 %v23
  %v47 = vunpack.c.l.b16 %v24
  %v48 = vunpack.c.l.b16 %v25
  %v49 = vpack.c.b16 %v41, %v40
  %v50 = vpack.c.b16 %v43, %v42
  %v51 = vpack.c.b16 %v45, %v44
  %v52 = vpack.c.b16 %v47, %v46
  %v53 = vpack.c.b16 %v48, %v48
  %vm58 = vcmask 588800
  %v60 = vsel %vm58, %v30, 0
  %vm62 = vcmask 1043456
  %v64 = vsel %vm62, %v53, 0
  %66 = vmatprep.subr.bf16.mxu0 0
  %67 = vmatpush1.bf16.msra.mxu0 %v49
  %68 = vmatprep.subr.bf16.mxu0 0
  %69 = vmatpush1.bf16.msra.mxu0 %v50
  %70 = vmatprep.subr.bf16.mxu0 0
  %71 = vmatpush1.bf16.msra.mxu0 %v51
  %72 = vmatprep.subr.bf16.mxu0 0
  %73 = vmatpush1.bf16.msra.mxu0 %v52
  %74 = vmatprep.subr.bf16.mxu0 0
  %75 = vmatpush1.bf16.msra.mxu0 %v64
  %76 = vmatprep.subr.bf16.mxu0 0
  %77 = vmatpush1.bf16.msra.mxu0 0
  %78 = vmatprep.subr.bf16.mxu0 0
  %79 = vmatpush1.bf16.msra.mxu0 0
  %80 = vmatprep.subr.bf16.mxu0 0
  %81 = vmatpush1.bf16.msra.mxu0 0
  %82 = vmatprep.subr.bf16.mxu0 0
  %83 = vmatpush1.bf16.msra.mxu0 0
  %84 = vmatprep.subr.bf16.mxu0 0
  %85 = vmatpush1.bf16.msra.mxu0 0
  %86 = vmatprep.subr.bf16.mxu0 0
  %87 = vmatpush1.bf16.msra.mxu0 0
  %88 = vmatprep.subr.bf16.mxu0 0
  %89 = vmatpush1.bf16.msra.mxu0 0
  %90 = vmatprep.subr.bf16.mxu0 0
  %91 = vmatpush1.bf16.msra.mxu0 0
  %92 = vmatprep.subr.bf16.mxu0 0
  %93 = vmatpush1.bf16.msra.mxu0 0
  %94 = vmatprep.subr.bf16.mxu0 0
  %95 = vmatpush1.bf16.msra.mxu0 0
  %96 = vmatprep.subr.bf16.mxu0 0
  %97 = vmatpush1.bf16.msra.mxu0 0
  %98 = vmatprep.mubr.bf16.mxu0 0
  %99 = vmatmul.mubr.bf16.gmra.mrb[0].mxu0 %v60
  %v100 = vpop.f32.mrb[0].mxu0
  %v101 = vadd.f32 0.0, %v100
  %v102 = vpop.f32.mrb[0].mxu0
  %v103 = vpop.f32.mrb[0].mxu0
  %v104 = vadd.f32 0.0, %v103
  %v105 = vpop.f32.mrb[0].mxu0
  %106 = vdwg.mxu0
  %107 = vst [vmem:[%s2] sm:$0xff] %v101
  %108 = vst [vmem:[%s2 + $0x8] sm:$0xff] %v104
  %v109 = vlaneseq
  %v110 = vand.u32 %v109, 127
  %s111 = smul.u32 0, 128
  %v112 = vstv %s111
  %v113 = vadd.s32 %v110, %v112
  %vm114 = vcmp.lt.s32.totalorder %v113, 98
  %v115 = vsel %vm114, %v101, 0.0
  %v116 = vsel %vm114, %v104, 0.0
  %p117 = scmp.eq.s32.totalorder 0, 0
  // Predicated region
  $region10: #{forward.12} parent=0 // pred_check
    %p118 = pneg %p117
  $region11: #{forward.12} parent=0 // pred_check_branch
    %120 = sbr.rel (%p118) target = $region13
  $region12: #{forward.12} parent=0 // pred_region
    %vm121 = vcmask 7168
    %122 = vst.msk [vmem:[%s3] sm:$0xff] %vm121, 0.0
    %123 = vst.msk [vmem:[%s3 + $0x8] sm:$0xff] %vm121, 0.0
    %124 = vst.msk [vmem:[%s4] sm:$0xff] %vm121, 0.0
    %125 = vst.msk [vmem:[%s4 + $0x8] sm:$0xff] %vm121, 0.0
  $region13: #{forward.12} parent=0 // pred_fallthru
    _
  %v126 = vld [vmem:[%s3] sm:$0xff]
  %v127 = vld [vmem:[%s3 + $0x8] sm:$0xff]
  %128 = vadd.xlane.f32.xlu0 %v115
  %v129 = vpop.xlane.xlu0 %128
  %130 = vadd.xlane.f32.xlu0 %v116
  %v131 = vpop.xlane.xlu0 %130
  %v132 = vadd.f32 %v126, %v129
  %v133 = vadd.f32 %v127, %v131
  %vm134 = vcmask 7168
  %135 = vst.msk [vmem:[%s3] sm:$0xff] %vm134, %v132
  %136 = vst.msk [vmem:[%s3 + $0x8] sm:$0xff] %vm134, %v133
  %v137 = vld [vmem:[%s4] sm:$0xff]
  %v138 = vld [vmem:[%s4 + $0x8] sm:$0xff]
  %v139 = vmul.f32 %v115, %v115
  %v140 = vmul.f32 %v116, %v116
  %141 = vadd.xlane.f32.xlu0 %v139
  %v142 = vpop.xlane.xlu0 %141
  %143 = vadd.xlane.f32.xlu0 %v140
  %v144 = vpop.xlane.xlu0 %143
  %v145 = vadd.f32 %v137, %v142
  %v146 = vadd.f32 %v138, %v144
  %147 = vst.msk [vmem:[%s4] sm:$0xff] %vm134, %v145
  %148 = vst.msk [vmem:[%s4 + $0x8] sm:$0xff] %vm134, %v146
  // Predicated region
  $region14: #{forward.12} parent=0 // pred_check
    _
  $region15: #{forward.12} parent=0 // pred_check_branch
    %150 = sbr.rel (0) target = $region17
  $region16: #{forward.12} parent=0 // pred_region
    _
  $region17: #{forward.12} parent=0 // pred_fallthru
    _
  // Predicated region
  $region18: #{forward.12} parent=0 // pred_check
    _
  $region19: #{forward.12} parent=0 // pred_check_branch
    %152 = sbr.rel (0) target = $region21
  $region20: #{forward.12} parent=0 // pred_region
    _
  $region21: #{forward.12} parent=0 // pred_fallthru
    _
  // Predicated region
  $region22: #{forward.12} parent=0 // pred_check
    _
  $region23: #{forward.12} parent=0 // pred_check_branch
    %154 = sbr.rel (0) target = $region25
  $region24: #{forward.12} parent=0 // pred_region
    _
  $region25: #{forward.12} parent=0 // pred_fallthru
    _
  // Predicated region
  $region26: #{forward.12} parent=0 // pred_check
    _
  $region27: #{forward.12} parent=0 // pred_check_branch
    %156 = sbr.rel (0) target = $region29
  $region28: #{forward.12} parent=0 // pred_region
    _
  $region29: #{forward.12} parent=0 // pred_fallthru
    _
  // Predicated region
  $region30: #{forward.12} parent=0 // pred_check
    _
  $region31: #{forward.12} parent=0 // pred_check_branch
    %158 = sbr.rel (0) target = $region33
  $region32: #{forward.12} parent=0 // pred_region
    _
  $region33: #{forward.12} parent=0 // pred_fallthru
    _
  // Predicated region
  $region34: #{forward.12} parent=0 // pred_check
    _
  $region35: #{forward.12} parent=0 // pred_check_branch
    %160 = sbr.rel (0) target = $region37
  $region36: #{forward.12} parent=0 // pred_region
    _
  $region37: #{forward.12} parent=0 // pred_fallthru
    _

// kernel: forward.14
$region0: #{forward.14}
  #allocation0 [shape = 'u32[]', space=smem, size = 0x4, offset = 0x4, fixed_abs, tag = 'smem constant byte address 0x4 - core index']
  #allocation1 [shape = 'u32[144,128]{1,0:T(1,128)}', space=vmem, size = 0x12000, scoped, tag = 'internal scratch']
  %s0 = inlined_call_operand.vmem [shape: bf16[144,128], index: 0, kind: input, shape index: {}]
  %s1 = inlined_call_operand.vmem [shape: bf16[32,144], index: 1, kind: input, shape index: {}]
  %s2 = inlined_call_operand.vmem [shape: f32[32,128], index: 2, kind: output, shape index: {0}]
  %s3 = inlined_call_operand.vmem [shape: f32[32,1], index: 3, kind: output, shape index: {1}]
  %s4 = inlined_call_operand.vmem [shape: f32[32,1], index: 4, kind: output, shape index: {2}]
  %5 = xla_tuple %s2, %s3, %s4
  %s6 = sld [smem:[#allocation0]]
  $region38: #{forward.14} parent=0
    _
  %s8 = ssub.s32 1, %s6
  %s9 = scalar_select 0, %s8, %s6
  // Predicated region
  $region2: #{forward.14} parent=0 // pred_check
    _
  $region3: #{forward.14} parent=0 // pred_check_branch
    %11 = sbr.rel (0) target = $region5
  $region4: #{forward.14} parent=0 // pred_region
    _
  $region5: #{forward.14} parent=0 // pred_fallthru
    _
  // Predicated region
  $region6: #{forward.14} parent=0 // pred_check
    _
  $region7: #{forward.14} parent=0 // pred_check_branch
    %13 = sbr.rel (0) target = $region9
  $region8: #{forward.14} parent=0 // pred_region
    _
  $region9: #{forward.14} parent=0 // pred_fallthru
    _
  %v15 = vld [vmem:[%s1] sm:$0xff]
  %v16 = vld [vmem:[%s1 + $0x8] sm:$0xff]
  %v17 = vld [vmem:[%s1 + $0x10] sm:$0xff]
  %v18 = vld [vmem:[%s1 + $0x18] sm:$0xff]
  %v19 = vld [vmem:[%s0] sm:$0xf]
  %v20 = vld [vmem:[%s0 + $0x4] sm:$0xf]
  %v21 = vld [vmem:[%s0 + $0x8] sm:$0xf]
  %v22 = vld [vmem:[%s0 + $0xc] sm:$0xf]
  %v23 = vld [vmem:[%s0 + $0x10] sm:$0xf]
  %v24 = vld [vmem:[%s0 + $0x14] sm:$0xf]
  %v25 = vld [vmem:[%s0 + $0x18] sm:$0xf]
  %v26 = vld [vmem:[%s0 + $0x1c] sm:$0xf]
  %v27 = vld [vmem:[%s0 + $0x20] sm:$0xf]
  %v28 = vld [vmem:[%s0 + $0x24] sm:$0xf]
  %v29 = vld [vmem:[%s0 + $0x28] sm:$0xf]
  %v30 = vld [vmem:[%s0 + $0x2c] sm:$0xf]
  %v31 = vld [vmem:[%s0 + $0x30] sm:$0xf]
  %v32 = vld [vmem:[%s0 + $0x34] sm:$0xf]
  %v33 = vld [vmem:[%s0 + $0x38] sm:$0xf]
  %v34 = vld [vmem:[%s0 + $0x3c] sm:$0xf]
  %v35 = vld [vmem:[%s0 + $0x40] sm:$0xf]
  %v36 = vld [vmem:[%s0 + $0x44] sm:$0xf]
  %v41 = vunpack.c.l.b16 %v15
  %v42 = vunpack.c.h.b16 %v15
  %v43 = vunpack.c.l.b16 %v16
  %v44 = vunpack.c.h.b16 %v16
  %v45 = vunpack.c.l.b16 %v17
  %v46 = vunpack.c.h.b16 %v17
  %v47 = vunpack.c.l.b16 %v18
  %v48 = vunpack.c.h.b16 %v18
  %v49 = vpack.c.b16 %v43, %v41
  %v50 = vpack.c.b16 %v44, %v42
  %v51 = vpack.c.b16 %v47, %v45
  %v52 = vpack.c.b16 %v48, %v46
  %v73 = vunpack.c.l.b16 %v19
  %v74 = vunpack.c.l.b16 %v20
  %v75 = vunpack.c.l.b16 %v21
  %v76 = vunpack.c.l.b16 %v22
  %v77 = vunpack.c.l.b16 %v23
  %v78 = vunpack.c.l.b16 %v24
  %v79 = vunpack.c.l.b16 %v25
  %v80 = vunpack.c.l.b16 %v26
  %v81 = vunpack.c.l.b16 %v27
  %v82 = vunpack.c.l.b16 %v28
  %v83 = vunpack.c.l.b16 %v29
  %v84 = vunpack.c.l.b16 %v30
  %v85 = vunpack.c.l.b16 %v31
  %v86 = vunpack.c.l.b16 %v32
  %v87 = vunpack.c.l.b16 %v33
  %v88 = vunpack.c.l.b16 %v34
  %v89 = vunpack.c.l.b16 %v35
  %v90 = vunpack.c.l.b16 %v36
  %v91 = vpack.c.b16 %v74, %v73
  %v92 = vpack.c.b16 %v76, %v75
  %v93 = vpack.c.b16 %v78, %v77
  %v94 = vpack.c.b16 %v80, %v79
  %v95 = vpack.c.b16 %v82, %v81
  %v96 = vpack.c.b16 %v84, %v83
  %v97 = vpack.c.b16 %v86, %v85
  %v98 = vpack.c.b16 %v88, %v87
  %v99 = vpack.c.b16 %v90, %v89
  %vm109 = vcmask 130048
  %v111 = vsel %vm109, %v50, 0
  %v114 = vsel %vm109, %v52, 0
  %116 = vmatprep.subr.bf16.mxu0 0
  %117 = vmatpush1.bf16.msra.mxu0 %v91
  %118 = vmatprep.subr.bf16.mxu0 0
  %119 = vmatpush1.bf16.msra.mxu0 %v92
  %120 = vmatprep.subr.bf16.mxu0 0
  %121 = vmatpush1.bf16.msra.mxu0 %v93
  %122 = vmatprep.subr.bf16.mxu0 0
  %123 = vmatpush1.bf16.msra.mxu0 %v94
  %124 = vmatprep.subr.bf16.mxu0 0
  %125 = vmatpush1.bf16.msra.mxu0 %v95
  %126 = vmatprep.subr.bf16.mxu0 0
  %127 = vmatpush1.bf16.msra.mxu0 %v96
  %128 = vmatprep.subr.bf16.mxu0 0
  %129 = vmatpush1.bf16.msra.mxu0 %v97
  %130 = vmatprep.subr.bf16.mxu0 0
  %131 = vmatpush1.bf16.msra.mxu0 %v98
  %132 = vmatprep.subr.bf16.mxu0 0
  %133 = vmatpush1.bf16.msra.mxu0 %v99
  %134 = vmatprep.subr.bf16.mxu0 0
  %135 = vmatpush1.bf16.msra.mxu0 0
  %136 = vmatprep.subr.bf16.mxu0 0
  %137 = vmatpush1.bf16.msra.mxu0 0
  %138 = vmatprep.subr.bf16.mxu0 0
  %139 = vmatpush1.bf16.msra.mxu0 0
  %140 = vmatprep.subr.bf16.mxu0 0
  %141 = vmatpush1.bf16.msra.mxu0 0
  %142 = vmatprep.subr.bf16.mxu0 0
  %143 = vmatpush1.bf16.msra.mxu0 0
  %144 = vmatprep.subr.bf16.mxu0 0
  %145 = vmatpush1.bf16.msra.mxu0 0
  %146 = vmatprep.subr.bf16.mxu0 0
  %147 = vmatpush1.bf16.msra.mxu0 0
  %148 = vmatprep.mubr.bf16.mxu0 %v111
  %149 = vmatmul.mubr.bf16.gmra.mrb[0].mxu0 %v49
  %v150 = vpop.f32.mrb[0].mxu0
  %v151 = vadd.f32 0.0, %v150
  %v152 = vpop.f32.mrb[0].mxu0
  %v153 = vpop.f32.mrb[0].mxu0
  %v154 = vadd.f32 0.0, %v153
  %v155 = vpop.f32.mrb[0].mxu0
  %156 = vmatprep.mubr.bf16.mxu0 %v114
  %157 = vmatmul.mubr.bf16.gmra.mrb[0].mxu0 %v51
  %v158 = vpop.f32.mrb[0].mxu0
  %v159 = vadd.f32 0.0, %v158
  %v160 = vpop.f32.mrb[0].mxu0
  %v161 = vpop.f32.mrb[0].mxu0
  %v162 = vadd.f32 0.0, %v161
  %v163 = vpop.f32.mrb[0].mxu0
  %164 = vdwg.mxu0
  %165 = vst [vmem:[%s2] sm:$0xff] %v151
  %166 = vst [vmem:[%s2 + $0x8] sm:$0xff] %v154
  %167 = vst [vmem:[%s2 + $0x10] sm:$0xff] %v159
  %168 = vst [vmem:[%s2 + $0x18] sm:$0xff] %v162
  %v169 = vlaneseq
  %v170 = vand.u32 %v169, 127
  %s171 = smul.u32 0, 128
  %v172 = vstv %s171
  %v173 = vadd.s32 %v170, %v172
  %vm174 = vcmp.lt.s32.totalorder %v173, 18
  %v175 = vsel %vm174, %v151, 0.0
  %v176 = vsel %vm174, %v154, 0.0
  %v177 = vsel %vm174, %v159, 0.0
  %v178 = vsel %vm174, %v162, 0.0
  %p179 = scmp.eq.s32.totalorder 0, 0
  // Predicated region
  $region10: #{forward.14} parent=0 // pred_check
    %p180 = pneg %p179
  $region11: #{forward.14} parent=0 // pred_check_branch
    %182 = sbr.rel (%p180) target = $region13
  $region12: #{forward.14} parent=0 // pred_region
    %vm183 = vcmask 7168
    %184 = vst.msk [vmem:[%s3] sm:$0xff] %vm183, 0.0
    %185 = vst.msk [vmem:[%s3 + $0x8] sm:$0xff] %vm183, 0.0
    %186 = vst.msk [vmem:[%s3 + $0x10] sm:$0xff] %vm183, 0.0
    %187 = vst.msk [vmem:[%s3 + $0x18] sm:$0xff] %vm183, 0.0
    %188 = vst.msk [vmem:[%s4] sm:$0xff] %vm183, 0.0
    %189 = vst.msk [vmem:[%s4 + $0x8] sm:$0xff] %vm183, 0.0
    %190 = vst.msk [vmem:[%s4 + $0x10] sm:$0xff] %vm183, 0.0
    %191 = vst.msk [vmem:[%s4 + $0x18] sm:$0xff] %vm183, 0.0
  $region13: #{forward.14} parent=0 // pred_fallthru
    _
  %v192 = vld [vmem:[%s3] sm:$0xff]
  %v193 = vld [vmem:[%s3 + $0x8] sm:$0xff]
  %v194 = vld [vmem:[%s3 + $0x10] sm:$0xff]
  %v195 = vld [vmem:[%s3 + $0x18] sm:$0xff]
  %196 = vadd.xlane.f32.xlu0 %v175
  %v197 = vpop.xlane.xlu0 %196
  %198 = vadd.xlane.f32.xlu0 %v176
  %v199 = vpop.xlane.xlu0 %198
  %200 = vadd.xlane.f32.xlu0 %v177
  %v201 = vpop.xlane.xlu0 %200
  %202 = vadd.xlane.f32.xlu0 %v178
  %v203 = vpop.xlane.xlu0 %202
  %v204 = vadd.f32 %v192, %v197
  %v205 = vadd.f32 %v193, %v199
  %v206 = vadd.f32 %v194, %v201
  %v207 = vadd.f32 %v195, %v203
  %vm208 = vcmask 7168
  %209 = vst.msk [vmem:[%s3] sm:$0xff] %vm208, %v204
  %210 = vst.msk [vmem:[%s3 + $0x8] sm:$0xff] %vm208, %v205
  %211 = vst.msk [vmem:[%s3 + $0x10] sm:$0xff] %vm208, %v206
  %212 = vst.msk [vmem:[%s3 + $0x18] sm:$0xff] %vm208, %v207
  %v213 = vld [vmem:[%s4] sm:$0xff]
  %v214 = vld [vmem:[%s4 + $0x8] sm:$0xff]
  %v215 = vld [vmem:[%s4 + $0x10] sm:$0xff]
  %v216 = vld [vmem:[%s4 + $0x18] sm:$0xff]
  %v217 = vmul.f32 %v175, %v175
  %v218 = vmul.f32 %v176, %v176
  %v219 = vmul.f32 %v177, %v177
  %v220 = vmul.f32 %v178, %v178
  %221 = vadd.xlane.f32.xlu0 %v217
  %v222 = vpop.xlane.xlu0 %221
  %223 = vadd.xlane.f32.xlu0 %v218
  %v224 = vpop.xlane.xlu0 %223
  %225 = vadd.xlane.f32.xlu0 %v219
  %v226 = vpop.xlane.xlu0 %225
  %227 = vadd.xlane.f32.xlu0 %v220
  %v228 = vpop.xlane.xlu0 %227
  %v229 = vadd.f32 %v213, %v222
  %v230 = vadd.f32 %v214, %v224
  %v231 = vadd.f32 %v215, %v226
  %v232 = vadd.f32 %v216, %v228
  %233 = vst.msk [vmem:[%s4] sm:$0xff] %vm208, %v229
  %234 = vst.msk [vmem:[%s4 + $0x8] sm:$0xff] %vm208, %v230
  %235 = vst.msk [vmem:[%s4 + $0x10] sm:$0xff] %vm208, %v231
  %236 = vst.msk [vmem:[%s4 + $0x18] sm:$0xff] %vm208, %v232
  // Predicated region
  $region14: #{forward.14} parent=0 // pred_check
    _
  $region15: #{forward.14} parent=0 // pred_check_branch
    %238 = sbr.rel (0) target = $region17
  $region16: #{forward.14} parent=0 // pred_region
    _
  $region17: #{forward.14} parent=0 // pred_fallthru
    _
  // Predicated region
  $region18: #{forward.14} parent=0 // pred_check
    _
  $region19: #{forward.14} parent=0 // pred_check_branch
    %240 = sbr.rel (0) target = $region21
  $region20: #{forward.14} parent=0 // pred_region
    _
  $region21: #{forward.14} parent=0 // pred_fallthru
    _
  // Predicated region
  $region22: #{forward.14} parent=0 // pred_check
    _
  $region23: #{forward.14} parent=0 // pred_check_branch
    %242 = sbr.rel (0) target = $region25
  $region24: #{forward.14} parent=0 // pred_region
    _
  $region25: #{forward.14} parent=0 // pred_fallthru
    _
  // Predicated region
  $region26: #{forward.14} parent=0 // pred_check
    _
  $region27: #{forward.14} parent=0 // pred_check_branch
    %244 = sbr.rel (0) target = $region29
  $region28: #{forward.14} parent=0 // pred_region
    _
  $region29: #{forward.14} parent=0 // pred_fallthru
    _
  // Predicated region
  $region30: #{forward.14} parent=0 // pred_check
    _
  $region31: #{forward.14} parent=0 // pred_check_branch
    %246 = sbr.rel (0) target = $region33
  $region32: #{forward.14} parent=0 // pred_region
    _
  $region33: #{forward.14} parent=0 // pred_fallthru
    _
  // Predicated region
  $region34: #{forward.14} parent=0 // pred_check
    _
  $region35: #{forward.14} parent=0 // pred_check_branch
    %248 = sbr.rel (0) target = $region37
  $region36: #{forward.14} parent=0 // pred_region
    _
  $region37: #{forward.14} parent=0 // pred_fallthru
    _

// kernel: forward.15
$region0: #{forward.15}
  #allocation0 [shape = 'u32[]', space=smem, size = 0x4, offset = 0x4, fixed_abs, tag = 'smem constant byte address 0x4 - core index']
  #allocation1 [shape = 'u32[144,128]{1,0:T(1,128)}', space=vmem, size = 0x12000, scoped, tag = 'internal scratch']
  %s0 = inlined_call_operand.vmem [shape: f32[32,128], index: 0, kind: input, shape index: {}]
  %s1 = inlined_call_operand.vmem [shape: f32[32,1], index: 1, kind: input, shape index: {}]
  %s2 = inlined_call_operand.vmem [shape: f32[32,1], index: 2, kind: input, shape index: {}]
  %s3 = inlined_call_operand.vmem [shape: f32[32,128], index: 3, kind: output, shape index: {}]
  %s4 = sld [smem:[#allocation0]]
  $region22: #{forward.15} parent=0
    _
  %s6 = ssub.s32 1, %s4
  %s7 = scalar_select 0, %s6, %s4
  // Predicated region
  $region2: #{forward.15} parent=0 // pred_check
    _
  $region3: #{forward.15} parent=0 // pred_check_branch
    %9 = sbr.rel (0) target = $region5
  $region4: #{forward.15} parent=0 // pred_region
    _
  $region5: #{forward.15} parent=0 // pred_fallthru
    _
  // Predicated region
  $region6: #{forward.15} parent=0 // pred_check
    _
  $region7: #{forward.15} parent=0 // pred_check_branch
    %11 = sbr.rel (0) target = $region9
  $region8: #{forward.15} parent=0 // pred_region
    _
  $region9: #{forward.15} parent=0 // pred_fallthru
    _
  // Predicated region
  $region10: #{forward.15} parent=0 // pred_check
    _
  $region11: #{forward.15} parent=0 // pred_check_branch
    %13 = sbr.rel (0) target = $region13
  $region12: #{forward.15} parent=0 // pred_region
    _
  $region13: #{forward.15} parent=0 // pred_fallthru
    _
  %v14 = vld [vmem:[%s0] sm:$0xff]
  %v15 = vld [vmem:[%s0 + $0x8] sm:$0xff]
  %v16 = vld [vmem:[%s0 + $0x10] sm:$0xff]
  %v17 = vld [vmem:[%s0 + $0x18] sm:$0xff]
  %v18 = vld [vmem:[%s1] sm:$0xff]
  %v19 = vld [vmem:[%s1 + $0x8] sm:$0xff]
  %v20 = vld [vmem:[%s1 + $0x10] sm:$0xff]
  %v21 = vld [vmem:[%s1 + $0x18] sm:$0xff]
  %23 = vset.pattern.permute.xlu0 0
  %24 = vperm.xlu0 %23, %v18
  %v25 = vpop.permute.xlu0 %24
  %28 = vset.pattern.permute.xlu0 0
  %29 = vperm.xlu0 %28, %v19
  %v30 = vpop.permute.xlu0 %29
  %33 = vset.pattern.permute.xlu0 0
  %34 = vperm.xlu0 %33, %v20
  %v35 = vpop.permute.xlu0 %34
  %38 = vset.pattern.permute.xlu0 0
  %39 = vperm.xlu0 %38, %v21
  %v40 = vpop.permute.xlu0 %39
  %v42 = vmul.f32 %v14, %v25
  %v43 = vmul.f32 %v15, %v30
  %v44 = vmul.f32 %v16, %v35
  %v45 = vmul.f32 %v17, %v40
  %v46 = vld [vmem:[%s2] sm:$0xff]
  %v47 = vld [vmem:[%s2 + $0x8] sm:$0xff]
  %v48 = vld [vmem:[%s2 + $0x10] sm:$0xff]
  %v49 = vld [vmem:[%s2 + $0x18] sm:$0xff]
  %51 = vset.pattern.permute.xlu0 0
  %52 = vperm.xlu0 %51, %v46
  %v53 = vpop.permute.xlu0 %52
  %56 = vset.pattern.permute.xlu0 0
  %57 = vperm.xlu0 %56, %v47
  %v58 = vpop.permute.xlu0 %57
  %61 = vset.pattern.permute.xlu0 0
  %62 = vperm.xlu0 %61, %v48
  %v63 = vpop.permute.xlu0 %62
  %66 = vset.pattern.permute.xlu0 0
  %67 = vperm.xlu0 %66, %v49
  %v68 = vpop.permute.xlu0 %67
  %v70 = vadd.f32 %v42, %v53
  %v71 = vadd.f32 %v43, %v58
  %v72 = vadd.f32 %v44, %v63
  %v73 = vadd.f32 %v45, %v68
  %v74 = vmax.f32 %v70, 0.0
  %v75 = vmax.f32 %v71, 0.0
  %v76 = vmax.f32 %v72, 0.0
  %v77 = vmax.f32 %v73, 0.0
  %78 = vst [vmem:[%s3] sm:$0xff] %v74
  %79 = vst [vmem:[%s3 + $0x8] sm:$0xff] %v75
  %80 = vst [vmem:[%s3 + $0x10] sm:$0xff] %v76
  %81 = vst [vmem:[%s3 + $0x18] sm:$0xff] %v77
  // Predicated region
  $region14: #{forward.15} parent=0 // pred_check
    _
  $region15: #{forward.15} parent=0 // pred_check_branch
    %83 = sbr.rel (0) target = $region17
  $region16: #{forward.15} parent=0 // pred_region
    _
  $region17: #{forward.15} parent=0 // pred_fallthru
    _
  // Predicated region
  $region18: #{forward.15} parent=0 // pred_check
    _
  $region19: #{forward.15} parent=0 // pred_check_branch
    %85 = sbr.rel (0) target = $region21
  $region20: #{forward.15} parent=0 // pred_region
    _
  $region21: #{forward.15} parent=0 // pred_fallthru
    _

// kernel: forward.16
$region0: #{forward.16}
  #allocation0 [shape = 'u32[]', space=smem, size = 0x4, offset = 0x4, fixed_abs, tag = 'smem constant byte address 0x4 - core index']
  #allocation1 [shape = 'u32[144,128]{1,0:T(1,128)}', space=vmem, size = 0x12000, scoped, tag = 'internal scratch']
  %s0 = inlined_call_operand.vmem [shape: f32[8,288], index: 0, kind: input, shape index: {}]
  %s1 = inlined_call_operand.vmem [shape: bf16[288,128], index: 1, kind: input, shape index: {}]
  %s2 = inlined_call_operand.vmem [shape: f32[1,128], index: 2, kind: input, shape index: {}]
  %s3 = inlined_call_operand.vmem [shape: bf16[128,64], index: 3, kind: input, shape index: {}]
  %s4 = inlined_call_operand.vmem [shape: f32[1,64], index: 4, kind: input, shape index: {}]
  %s5 = inlined_call_operand.vmem [shape: bf16[64,16], index: 5, kind: input, shape index: {}]
  %s6 = inlined_call_operand.vmem [shape: f32[1,16], index: 6, kind: input, shape index: {}]
  %s7 = inlined_call_operand.vmem [shape: bf16[16,64], index: 7, kind: input, shape index: {}]
  %s8 = inlined_call_operand.vmem [shape: f32[1,64], index: 8, kind: input, shape index: {}]
  %s9 = inlined_call_operand.vmem [shape: bf16[64,288], index: 9, kind: input, shape index: {}]
  %s10 = inlined_call_operand.vmem [shape: f32[1,288], index: 10, kind: input, shape index: {}]
  %s11 = inlined_call_operand.vmem [shape: f32[8,16], index: 11, kind: output, shape index: {0}]
  %s12 = inlined_call_operand.vmem [shape: f32[8,288], index: 12, kind: output, shape index: {1}]
  %13 = xla_tuple %s11, %s12
  %s14 = sld [smem:[#allocation0]]
  $region62: #{forward.16} parent=0
    _
  %s16 = ssub.s32 1, %s14
  %s17 = scalar_select 0, %s16, %s14
  // Predicated region
  $region2: #{forward.16} parent=0 // pred_check
    _
  $region3: #{forward.16} parent=0 // pred_check_branch
    %19 = sbr.rel (0) target = $region5
  $region4: #{forward.16} parent=0 // pred_region
    _
  $region5: #{forward.16} parent=0 // pred_fallthru
    _
  // Predicated region
  $region6: #{forward.16} parent=0 // pred_check
    _
  $region7: #{forward.16} parent=0 // pred_check_branch
    %21 = sbr.rel (0) target = $region9
  $region8: #{forward.16} parent=0 // pred_region
    _
  $region9: #{forward.16} parent=0 // pred_fallthru
    _
  // Predicated region
  $region10: #{forward.16} parent=0 // pred_check
    _
  $region11: #{forward.16} parent=0 // pred_check_branch
    %23 = sbr.rel (0) target = $region13
  $region12: #{forward.16} parent=0 // pred_region
    _
  $region13: #{forward.16} parent=0 // pred_fallthru
    _
  // Predicated region
  $region14: #{forward.16} parent=0 // pred_check
    _
  $region15: #{forward.16} parent=0 // pred_check_branch
    %25 = sbr.rel (0) target = $region17
  $region16: #{forward.16} parent=0 // pred_region
    _
  $region17: #{forward.16} parent=0 // pred_fallthru
    _
  // Predicated region
  $region18: #{forward.16} parent=0 // pred_check
    _
  $region19: #{forward.16} parent=0 // pred_check_branch
    %27 = sbr.rel (0) target = $region21
  $region20: #{forward.16} parent=0 // pred_region
    _
  $region21: #{forward.16} parent=0 // pred_fallthru
    _
  // Predicated region
  $region22: #{forward.16} parent=0 // pred_check
    _
  $region23: #{forward.16} parent=0 // pred_check_branch
    %29 = sbr.rel (0) target = $region25
  $region24: #{forward.16} parent=0 // pred_region
    _
  $region25: #{forward.16} parent=0 // pred_fallthru
    _
  // Predicated region
  $region26: #{forward.16} parent=0 // pred_check
    _
  $region27: #{forward.16} parent=0 // pred_check_branch
    %31 = sbr.rel (0) target = $region29
  $region28: #{forward.16} parent=0 // pred_region
    _
  $region29: #{forward.16} parent=0 // pred_fallthru
    _
  // Predicated region
  $region30: #{forward.16} parent=0 // pred_check
    _
  $region31: #{forward.16} parent=0 // pred_check_branch
    %33 = sbr.rel (0) target = $region33
  $region32: #{forward.16} parent=0 // pred_region
    _
  $region33: #{forward.16} parent=0 // pred_fallthru
    _
  // Predicated region
  $region34: #{forward.16} parent=0 // pred_check
    _
  $region35: #{forward.16} parent=0 // pred_check_branch
    %35 = sbr.rel (0) target = $region37
  $region36: #{forward.16} parent=0 // pred_region
    _
  $region37: #{forward.16} parent=0 // pred_fallthru
    _
  // Predicated region
  $region38: #{forward.16} parent=0 // pred_check
    _
  $region39: #{forward.16} parent=0 // pred_check_branch
    %37 = sbr.rel (0) target = $region41
  $region40: #{forward.16} parent=0 // pred_region
    _
  $region41: #{forward.16} parent=0 // pred_fallthru
    _
  // Predicated region
  $region42: #{forward.16} parent=0 // pred_check
    _
  $region43: #{forward.16} parent=0 // pred_check_branch
    %39 = sbr.rel (0) target = $region45
  $region44: #{forward.16} parent=0 // pred_region
    _
  $region45: #{forward.16} parent=0 // pred_fallthru
    _
  %v41 = vld [vmem:[%s0] sm:$0xff]
  %v42 = vld [vmem:[%s0 + $0x8] sm:$0xff]
  %v43 = vld [vmem:[%s0 + $0x10] sm:$0xff]
  %v44 = vpack.c.bf16 %v41, %v41
  %v45 = vpack.c.bf16 %v42, %v42
  %v46 = vpack.c.bf16 %v43, %v43
  %v47 = vld [vmem:[%s1] sm:$0xf]
  %v48 = vld [vmem:[%s1 + $0x4] sm:$0xf]
  %v49 = vld [vmem:[%s1 + $0x8] sm:$0xf]
  %v50 = vld [vmem:[%s1 + $0xc] sm:$0xf]
  %v51 = vld [vmem:[%s1 + $0x10] sm:$0xf]
  %v52 = vld [vmem:[%s1 + $0x14] sm:$0xf]
  %v53 = vld [vmem:[%s1 + $0x18] sm:$0xf]
  %v54 = vld [vmem:[%s1 + $0x1c] sm:$0xf]
  %v55 = vld [vmem:[%s1 + $0x20] sm:$0xf]
  %v56 = vld [vmem:[%s1 + $0x24] sm:$0xf]
  %v57 = vld [vmem:[%s1 + $0x28] sm:$0xf]
  %v58 = vld [vmem:[%s1 + $0x2c] sm:$0xf]
  %v59 = vld [vmem:[%s1 + $0x30] sm:$0xf]
  %v60 = vld [vmem:[%s1 + $0x34] sm:$0xf]
  %v61 = vld [vmem:[%s1 + $0x38] sm:$0xf]
  %v62 = vld [vmem:[%s1 + $0x3c] sm:$0xf]
  %v63 = vld [vmem:[%s1 + $0x40] sm:$0xf]
  %v64 = vld [vmem:[%s1 + $0x44] sm:$0xf]
  %v65 = vld [vmem:[%s1 + $0x48] sm:$0xf]
  %v66 = vld [vmem:[%s1 + $0x4c] sm:$0xf]
  %v67 = vld [vmem:[%s1 + $0x50] sm:$0xf]
  %v68 = vld [vmem:[%s1 + $0x54] sm:$0xf]
  %v69 = vld [vmem:[%s1 + $0x58] sm:$0xf]
  %v70 = vld [vmem:[%s1 + $0x5c] sm:$0xf]
  %v71 = vld [vmem:[%s1 + $0x60] sm:$0xf]
  %v72 = vld [vmem:[%s1 + $0x64] sm:$0xf]
  %v73 = vld [vmem:[%s1 + $0x68] sm:$0xf]
  %v74 = vld [vmem:[%s1 + $0x6c] sm:$0xf]
  %v75 = vld [vmem:[%s1 + $0x70] sm:$0xf]
  %v76 = vld [vmem:[%s1 + $0x74] sm:$0xf]
  %v77 = vld [vmem:[%s1 + $0x78] sm:$0xf]
  %v78 = vld [vmem:[%s1 + $0x7c] sm:$0xf]
  %v79 = vld [vmem:[%s1 + $0x80] sm:$0xf]
  %v80 = vld [vmem:[%s1 + $0x84] sm:$0xf]
  %v81 = vld [vmem:[%s1 + $0x88] sm:$0xf]
  %v82 = vld [vmem:[%s1 + $0x8c] sm:$0xf]
  %v83 = vld [vmem:[%s2] sm:$0x1]
  %v85 = vlaneseq
  %v86 = vshrl.u32 %v85, 7
  %v87 = vsub.s32 0, %v86
  %v88 = vrot.slane %v83, %v87
  %v126 = vunpack.c.l.b16 %v47
  %v127 = vunpack.c.l.b16 %v48
  %v128 = vunpack.c.l.b16 %v49
  %v129 = vunpack.c.l.b16 %v50
  %v130 = vunpack.c.l.b16 %v51
  %v131 = vunpack.c.l.b16 %v52
  %v132 = vunpack.c.l.b16 %v53
  %v133 = vunpack.c.l.b16 %v54
  %v134 = vunpack.c.l.b16 %v55
  %v135 = vunpack.c.l.b16 %v56
  %v136 = vunpack.c.l.b16 %v57
  %v137 = vunpack.c.l.b16 %v58
  %v138 = vunpack.c.l.b16 %v59
  %v139 = vunpack.c.l.b16 %v60
  %v140 = vunpack.c.l.b16 %v61
  %v141 = vunpack.c.l.b16 %v62
  %v142 = vunpack.c.l.b16 %v63
  %v143 = vunpack.c.l.b16 %v64
  %v144 = vunpack.c.l.b16 %v65
  %v145 = vunpack.c.l.b16 %v66
  %v146 = vunpack.c.l.b16 %v67
  %v147 = vunpack.c.l.b16 %v68
  %v148 = vunpack.c.l.b16 %v69
  %v149 = vunpack.c.l.b16 %v70
  %v150 = vunpack.c.l.b16 %v71
  %v151 = vunpack.c.l.b16 %v72
  %v152 = vunpack.c.l.b16 %v73
  %v153 = vunpack.c.l.b16 %v74
  %v154 = vunpack.c.l.b16 %v75
  %v155 = vunpack.c.l.b16 %v76
  %v156 = vunpack.c.l.b16 %v77
  %v157 = vunpack.c.l.b16 %v78
  %v158 = vunpack.c.l.b16 %v79
  %v159 = vunpack.c.l.b16 %v80
  %v160 = vunpack.c.l.b16 %v81
  %v161 = vunpack.c.l.b16 %v82
  %v162 = vpack.c.b16 %v127, %v126
  %v163 = vpack.c.b16 %v129, %v128
  %v164 = vpack.c.b16 %v131, %v130
  %v165 = vpack.c.b16 %v133, %v132
  %v166 = vpack.c.b16 %v135, %v134
  %v167 = vpack.c.b16 %v137, %v136
  %v168 = vpack.c.b16 %v139, %v138
  %v169 = vpack.c.b16 %v141, %v140
  %v170 = vpack.c.b16 %v143, %v142
  %v171 = vpack.c.b16 %v145, %v144
  %v172 = vpack.c.b16 %v147, %v146
  %v173 = vpack.c.b16 %v149, %v148
  %v174 = vpack.c.b16 %v151, %v150
  %v175 = vpack.c.b16 %v153, %v152
  %v176 = vpack.c.b16 %v155, %v154
  %v177 = vpack.c.b16 %v157, %v156
  %v178 = vpack.c.b16 %v159, %v158
  %v179 = vpack.c.b16 %v161, %v160
  %vm198 = vcmask 261120
  %v200 = vsel %vm198, %v46, 0
  %202 = vmatprep.subr.bf16.mxu0 0
  %203 = vmatpush1.bf16.msra.mxu0 %v162
  %204 = vmatprep.subr.bf16.mxu0 0
  %205 = vmatpush1.bf16.msra.mxu0 %v163
  %206 = vmatprep.subr.bf16.mxu0 0
  %207 = vmatpush1.bf16.msra.mxu0 %v164
  %208 = vmatprep.subr.bf16.mxu0 0
  %209 = vmatpush1.bf16.msra.mxu0 %v165
  %210 = vmatprep.subr.bf16.mxu0 0
  %211 = vmatpush1.bf16.msra.mxu0 %v166
  %212 = vmatprep.subr.bf16.mxu0 0
  %213 = vmatpush1.bf16.msra.mxu0 %v167
  %214 = vmatprep.subr.bf16.mxu0 0
  %215 = vmatpush1.bf16.msra.mxu0 %v168
  %216 = vmatprep.subr.bf16.mxu0 0
  %217 = vmatpush1.bf16.msra.mxu0 %v169
  %218 = vmatprep.subr.bf16.mxu0 0
  %219 = vmatpush1.bf16.msra.mxu0 %v170
  %220 = vmatprep.subr.bf16.mxu0 0
  %221 = vmatpush1.bf16.msra.mxu0 %v171
  %222 = vmatprep.subr.bf16.mxu0 0
  %223 = vmatpush1.bf16.msra.mxu0 %v172
  %224 = vmatprep.subr.bf16.mxu0 0
  %225 = vmatpush1.bf16.msra.mxu0 %v173
  %226 = vmatprep.subr.bf16.mxu0 0
  %227 = vmatpush1.bf16.msra.mxu0 %v174
  %228 = vmatprep.subr.bf16.mxu0 0
  %229 = vmatpush1.bf16.msra.mxu0 %v175
  %230 = vmatprep.subr.bf16.mxu0 0
  %231 = vmatpush1.bf16.msra.mxu0 %v176
  %232 = vmatprep.subr.bf16.mxu0 0
  %233 = vmatpush1.bf16.msra.mxu0 %v177
  %234 = vmatprep.mubr.bf16.mxu0 %v45
  %235 = vmatmul.mubr.bf16.gmra.mrb[0].mxu0 %v44
  %v236 = vpop.f32.mrb[0].mxu0
  %v237 = vadd.f32 %v88, %v236
  %v238 = vpop.f32.mrb[0].mxu0
  %v239 = vpop.f32.mrb[0].mxu0
  %v240 = vpop.f32.mrb[0].mxu0
  %241 = vdwg.mxu0
  %242 = vmatprep.subr.bf16.mxu0 0
  %243 = vmatpush1.bf16.msra.mxu0 %v178
  %244 = vmatprep.subr.bf16.mxu0 0
  %245 = vmatpush1.bf16.msra.mxu0 %v179
  %246 = vmatprep.subr.bf16.mxu0 0
  %247 = vmatpush1.bf16.msra.mxu0 0
  %248 = vmatprep.subr.bf16.mxu0 0
  %249 = vmatpush1.bf16.msra.mxu0 0
  %250 = vmatprep.subr.bf16.mxu0 0
  %251 = vmatpush1.bf16.msra.mxu0 0
  %252 = vmatprep.subr.bf16.mxu0 0
  %253 = vmatpush1.bf16.msra.mxu0 0
  %254 = vmatprep.subr.bf16.mxu0 0
  %255 = vmatpush1.bf16.msra.mxu0 0
  %256 = vmatprep.subr.bf16.mxu0 0
  %257 = vmatpush1.bf16.msra.mxu0 0
  %258 = vmatprep.subr.bf16.mxu0 0
  %259 = vmatpush1.bf16.msra.mxu0 0
  %260 = vmatprep.subr.bf16.mxu0 0
  %261 = vmatpush1.bf16.msra.mxu0 0
  %262 = vmatprep.subr.bf16.mxu0 0
  %263 = vmatpush1.bf16.msra.mxu0 0
  %264 = vmatprep.subr.bf16.mxu0 0
  %265 = vmatpush1.bf16.msra.mxu0 0
  %266 = vmatprep.subr.bf16.mxu0 0
  %267 = vmatpush1.bf16.msra.mxu0 0
  %268 = vmatprep.subr.bf16.mxu0 0
  %269 = vmatpush1.bf16.msra.mxu0 0
  %270 = vmatprep.subr.bf16.mxu0 0
  %271 = vmatpush1.bf16.msra.mxu0 0
  %272 = vmatprep.subr.bf16.mxu0 0
  %273 = vmatpush1.bf16.msra.mxu0 0
  %274 = vmatprep.mubr.bf16.mxu0 0
  %275 = vmatmul.mubr.bf16.gmra.mrb[0].mxu0 %v200
  %v276 = vpop.f32.mrb[0].mxu0
  %v277 = vadd.f32 %v237, %v276
  %v278 = vpop.f32.mrb[0].mxu0
  %v279 = vpop.f32.mrb[0].mxu0
  %v280 = vpop.f32.mrb[0].mxu0
  %281 = vdwg.mxu0
  %v282 = vmax.f32 %v277, 0.0
  %v283 = vpack.c.bf16 %v282, %v282
  %v284 = vld [vmem:[%s3] sm:$0xf]
  %v285 = vld [vmem:[%s3 + $0x4] sm:$0xf]
  %v286 = vld [vmem:[%s3 + $0x8] sm:$0xf]
  %v287 = vld [vmem:[%s3 + $0xc] sm:$0xf]
  %v288 = vld [vmem:[%s3 + $0x10] sm:$0xf]
  %v289 = vld [vmem:[%s3 + $0x14] sm:$0xf]
  %v290 = vld [vmem:[%s3 + $0x18] sm:$0xf]
  %v291 = vld [vmem:[%s3 + $0x1c] sm:$0xf]
  %v292 = vld [vmem:[%s3 + $0x20] sm:$0xf]
  %v293 = vld [vmem:[%s3 + $0x24] sm:$0xf]
  %v294 = vld [vmem:[%s3 + $0x28] sm:$0xf]
  %v295 = vld [vmem:[%s3 + $0x2c] sm:$0xf]
  %v296 = vld [vmem:[%s3 + $0x30] sm:$0xf]
  %v297 = vld [vmem:[%s3 + $0x34] sm:$0xf]
  %v298 = vld [vmem:[%s3 + $0x38] sm:$0xf]
  %v299 = vld [vmem:[%s3 + $0x3c] sm:$0xf]
  %v300 = vld [vmem:[%s4] sm:$0x1]
  %v302 = vlaneseq
  %v303 = vshrl.u32 %v302, 7
  %v304 = vsub.s32 0, %v303
  %v305 = vrot.slane %v300, %v304
  %v323 = vunpack.c.l.b16 %v284
  %v324 = vunpack.c.l.b16 %v285
  %v325 = vunpack.c.l.b16 %v286
  %v326 = vunpack.c.l.b16 %v287
  %v327 = vunpack.c.l.b16 %v288
  %v328 = vunpack.c.l.b16 %v289
  %v329 = vunpack.c.l.b16 %v290
  %v330 = vunpack.c.l.b16 %v291
  %v331 = vunpack.c.l.b16 %v292
  %v332 = vunpack.c.l.b16 %v293
  %v333 = vunpack.c.l.b16 %v294
  %v334 = vunpack.c.l.b16 %v295
  %v335 = vunpack.c.l.b16 %v296
  %v336 = vunpack.c.l.b16 %v297
  %v337 = vunpack.c.l.b16 %v298
  %v338 = vunpack.c.l.b16 %v299
  %v339 = vpack.c.b16 %v324, %v323
  %v340 = vpack.c.b16 %v326, %v325
  %v341 = vpack.c.b16 %v328, %v327
  %v342 = vpack.c.b16 %v330, %v329
  %v343 = vpack.c.b16 %v332, %v331
  %v344 = vpack.c.b16 %v334, %v333
  %v345 = vpack.c.b16 %v336, %v335
  %v346 = vpack.c.b16 %v338, %v337
  %355 = vmatprep.subr.bf16.mxu0 0
  %356 = vmatpush1.bf16.msra.mxu0 %v339
  %357 = vmatprep.subr.bf16.mxu0 0
  %358 = vmatpush1.bf16.msra.mxu0 %v340
  %359 = vmatprep.subr.bf16.mxu0 0
  %360 = vmatpush1.bf16.msra.mxu0 %v341
  %361 = vmatprep.subr.bf16.mxu0 0
  %362 = vmatpush1.bf16.msra.mxu0 %v342
  %363 = vmatprep.subr.bf16.mxu0 0
  %364 = vmatpush1.bf16.msra.mxu0 %v343
  %365 = vmatprep.subr.bf16.mxu0 0
  %366 = vmatpush1.bf16.msra.mxu0 %v344
  %367 = vmatprep.subr.bf16.mxu0 0
  %368 = vmatpush1.bf16.msra.mxu0 %v345
  %369 = vmatprep.subr.bf16.mxu0 0
  %370 = vmatpush1.bf16.msra.mxu0 %v346
  %371 = vmatprep.subr.bf16.mxu0 0
  %372 = vmatpush1.bf16.msra.mxu0 0
  %373 = vmatprep.subr.bf16.mxu0 0
  %374 = vmatpush1.bf16.msra.mxu0 0
  %375 = vmatprep.subr.bf16.mxu0 0
  %376 = vmatpush1.bf16.msra.mxu0 0
  %377 = vmatprep.subr.bf16.mxu0 0
  %378 = vmatpush1.bf16.msra.mxu0 0
  %379 = vmatprep.subr.bf16.mxu0 0
  %380 = vmatpush1.bf16.msra.mxu0 0
  %381 = vmatprep.subr.bf16.mxu0 0
  %382 = vmatpush1.bf16.msra.mxu0 0
  %383 = vmatprep.subr.bf16.mxu0 0
  %384 = vmatpush1.bf16.msra.mxu0 0
  %385 = vmatprep.subr.bf16.mxu0 0
  %386 = vmatpush1.bf16.msra.mxu0 0
  %387 = vmatprep.mubr.bf16.mxu0 0
  %388 = vmatmul.mubr.bf16.gmra.mrb[0].mxu0 %v283
  %v389 = vpop.f32.mrb[0].mxu0
  %v390 = vadd.f32 %v305, %v389
  %v391 = vpop.f32.mrb[0].mxu0
  %v392 = vpop.f32.mrb[0].mxu0
  %v393 = vpop.f32.mrb[0].mxu0
  %394 = vdwg.mxu0
  %v395 = vmax.f32 %v390, 0.0
  %v396 = vpack.c.bf16 %v395, %v395
  %v397 = vld [vmem:[%s5] sm:$0xf]
  %v398 = vld [vmem:[%s5 + $0x4] sm:$0xf]
  %v399 = vld [vmem:[%s5 + $0x8] sm:$0xf]
  %v400 = vld [vmem:[%s5 + $0xc] sm:$0xf]
  %v401 = vld [vmem:[%s5 + $0x10] sm:$0xf]
  %v402 = vld [vmem:[%s5 + $0x14] sm:$0xf]
  %v403 = vld [vmem:[%s5 + $0x18] sm:$0xf]
  %v404 = vld [vmem:[%s5 + $0x1c] sm:$0xf]
  %v405 = vld [vmem:[%s6] sm:$0x1]
  %v407 = vlaneseq
  %v408 = vshrl.u32 %v407, 7
  %v409 = vsub.s32 0, %v408
  %v410 = vrot.slane %v405, %v409
  %v420 = vunpack.c.l.b16 %v397
  %v421 = vunpack.c.l.b16 %v398
  %v422 = vunpack.c.l.b16 %v399
  %v423 = vunpack.c.l.b16 %v400
  %v424 = vunpack.c.l.b16 %v401
  %v425 = vunpack.c.l.b16 %v402
  %v426 = vunpack.c.l.b16 %v403
  %v427 = vunpack.c.l.b16 %v404
  %v428 = vpack.c.b16 %v421, %v420
  %v429 = vpack.c.b16 %v423, %v422
  %v430 = vpack.c.b16 %v425, %v424
  %v431 = vpack.c.b16 %v427, %v426
  %vm436 = vcmask 523264
  %v438 = vsel %vm436, %v396, 0
  %440 = vmatprep.subr.bf16.mxu0 0
  %441 = vmatpush1.bf16.msra.mxu0 %v428
  %442 = vmatprep.subr.bf16.mxu0 0
  %443 = vmatpush1.bf16.msra.mxu0 %v429
  %444 = vmatprep.subr.bf16.mxu0 0
  %445 = vmatpush1.bf16.msra.mxu0 %v430
  %446 = vmatprep.subr.bf16.mxu0 0
  %447 = vmatpush1.bf16.msra.mxu0 %v431
  %448 = vmatprep.subr.bf16.mxu0 0
  %449 = vmatpush1.bf16.msra.mxu0 0
  %450 = vmatprep.subr.bf16.mxu0 0
  %451 = vmatpush1.bf16.msra.mxu0 0
  %452 = vmatprep.subr.bf16.mxu0 0
  %453 = vmatpush1.bf16.msra.mxu0 0
  %454 = vmatprep.subr.bf16.mxu0 0
  %455 = vmatpush1.bf16.msra.mxu0 0
  %456 = vmatprep.subr.bf16.mxu0 0
  %457 = vmatpush1.bf16.msra.mxu0 0
  %458 = vmatprep.subr.bf16.mxu0 0
  %459 = vmatpush1.bf16.msra.mxu0 0
  %460 = vmatprep.subr.bf16.mxu0 0
  %461 = vmatpush1.bf16.msra.mxu0 0
  %462 = vmatprep.subr.bf16.mxu0 0
  %463 = vmatpush1.bf16.msra.mxu0 0
  %464 = vmatprep.subr.bf16.mxu0 0
  %465 = vmatpush1.bf16.msra.mxu0 0
  %466 = vmatprep.subr.bf16.mxu0 0
  %467 = vmatpush1.bf16.msra.mxu0 0
  %468 = vmatprep.subr.bf16.mxu0 0
  %469 = vmatpush1.bf16.msra.mxu0 0
  %470 = vmatprep.subr.bf16.mxu0 0
  %471 = vmatpush1.bf16.msra.mxu0 0
  %472 = vmatprep.mubr.bf16.mxu0 0
  %473 = vmatmul.mubr.bf16.gmra.mrb[0].mxu0 %v438
  %v474 = vpop.f32.mrb[0].mxu0
  %v475 = vadd.f32 %v410, %v474
  %v476 = vpop.f32.mrb[0].mxu0
  %v477 = vpop.f32.mrb[0].mxu0
  %v478 = vpop.f32.mrb[0].mxu0
  %479 = vdwg.mxu0
  %vm480 = vcmask 130048
  %481 = vst.msk [vmem:[%s11] sm:$0xff] %vm480, %v475
  %v482 = vpack.c.bf16 %v475, %v475
  %v483 = vld [vmem:[%s7] sm:$0xf]
  %v484 = vld [vmem:[%s7 + $0x4] sm:$0xf]
  %v485 = vld [vmem:[%s8] sm:$0x1]
  %v487 = vlaneseq
  %v488 = vshrl.u32 %v487, 7
  %v489 = vsub.s32 0, %v488
  %v490 = vrot.slane %v485, %v489
  %v494 = vunpack.c.l.b16 %v483
  %v495 = vunpack.c.l.b16 %v484
  %v496 = vpack.c.b16 %v495, %v494
  %v499 = vsel %vm480, %v482, 0
  %501 = vmatprep.subr.bf16.mxu0 0
  %502 = vmatpush1.bf16.msra.mxu0 %v496
  %503 = vmatprep.subr.bf16.mxu0 0
  %504 = vmatpush1.bf16.msra.mxu0 0
  %505 = vmatprep.subr.bf16.mxu0 0
  %506 = vmatpush1.bf16.msra.mxu0 0
  %507 = vmatprep.subr.bf16.mxu0 0
  %508 = vmatpush1.bf16.msra.mxu0 0
  %509 = vmatprep.subr.bf16.mxu0 0
  %510 = vmatpush1.bf16.msra.mxu0 0
  %511 = vmatprep.subr.bf16.mxu0 0
  %512 = vmatpush1.bf16.msra.mxu0 0
  %513 = vmatprep.subr.bf16.mxu0 0
  %514 = vmatpush1.bf16.msra.mxu0 0
  %515 = vmatprep.subr.bf16.mxu0 0
  %516 = vmatpush1.bf16.msra.mxu0 0
  %517 = vmatprep.subr.bf16.mxu0 0
  %518 = vmatpush1.bf16.msra.mxu0 0
  %519 = vmatprep.subr.bf16.mxu0 0
  %520 = vmatpush1.bf16.msra.mxu0 0
  %521 = vmatprep.subr.bf16.mxu0 0
  %522 = vmatpush1.bf16.msra.mxu0 0
  %523 = vmatprep.subr.bf16.mxu0 0
  %524 = vmatpush1.bf16.msra.mxu0 0
  %525 = vmatprep.subr.bf16.mxu0 0
  %526 = vmatpush1.bf16.msra.mxu0 0
  %527 = vmatprep.subr.bf16.mxu0 0
  %528 = vmatpush1.bf16.msra.mxu0 0
  %529 = vmatprep.subr.bf16.mxu0 0
  %530 = vmatpush1.bf16.msra.mxu0 0
  %531 = vmatprep.subr.bf16.mxu0 0
  %532 = vmatpush1.bf16.msra.mxu0 0
  %533 = vmatprep.mubr.bf16.mxu0 0
  %534 = vmatmul.mubr.bf16.gmra.mrb[0].mxu0 %v499
  %v535 = vpop.f32.mrb[0].mxu0
  %v536 = vadd.f32 %v490, %v535
  %v537 = vpop.f32.mrb[0].mxu0
  %v538 = vpop.f32.mrb[0].mxu0
  %v539 = vpop.f32.mrb[0].mxu0
  %540 = vdwg.mxu0
  %v541 = vmax.f32 %v536, 0.0
  %v542 = vpack.c.bf16 %v541, %v541
  %v543 = vld [vmem:[%s9] sm:$0xff]
  %v544 = vld [vmem:[%s9 + $0x8] sm:$0xf]
  %v545 = vld [vmem:[%s9 + $0xc] sm:$0xff]
  %v546 = vld [vmem:[%s9 + $0x14] sm:$0xf]
  %v547 = vld [vmem:[%s9 + $0x18] sm:$0xff]
  %v548 = vld [vmem:[%s9 + $0x20] sm:$0xf]
  %v549 = vld [vmem:[%s9 + $0x24] sm:$0xff]
  %v550 = vld [vmem:[%s9 + $0x2c] sm:$0xf]
  %v551 = vld [vmem:[%s9 + $0x30] sm:$0xff]
  %v552 = vld [vmem:[%s9 + $0x38] sm:$0xf]
  %v553 = vld [vmem:[%s9 + $0x3c] sm:$0xff]
  %v554 = vld [vmem:[%s9 + $0x44] sm:$0xf]
  %v555 = vld [vmem:[%s9 + $0x48] sm:$0xff]
  %v556 = vld [vmem:[%s9 + $0x50] sm:$0xf]
  %v557 = vld [vmem:[%s9 + $0x54] sm:$0xff]
  %v558 = vld [vmem:[%s9 + $0x5c] sm:$0xf]
  %v559 = vld [vmem:[%s10] sm:$0x7]
  %v561 = vlaneseq
  %v562 = vshrl.u32 %v561, 7
  %v563 = vsub.s32 0, %v562
  %v564 = vrot.slane %v559, %v563
  %v565 = vlaneseq
  %v566 = vshrl.u32 %v565, 7
  %v567 = vsub.s32 1, %v566
  %v568 = vrot.slane %v559, %v567
  %v569 = vlaneseq
  %v570 = vshrl.u32 %v569, 7
  %v571 = vsub.s32 2, %v570
  %v572 = vrot.slane %v559, %v571
  %v592 = vunpack.c.l.b16 %v543
  %v593 = vunpack.c.h.b16 %v543
  %v594 = vunpack.c.l.b16 %v544
  %v595 = vunpack.c.l.b16 %v545
  %v596 = vunpack.c.h.b16 %v545
  %v597 = vunpack.c.l.b16 %v546
  %v598 = vunpack.c.l.b16 %v547
  %v599 = vunpack.c.h.b16 %v547
  %v600 = vunpack.c.l.b16 %v548
  %v601 = vunpack.c.l.b16 %v549
  %v602 = vunpack.c.h.b16 %v549
  %v603 = vunpack.c.l.b16 %v550
  %v604 = vunpack.c.l.b16 %v551
  %v605 = vunpack.c.h.b16 %v551
  %v606 = vunpack.c.l.b16 %v552
  %v607 = vunpack.c.l.b16 %v553
  %v608 = vunpack.c.h.b16 %v553
  %v609 = vunpack.c.l.b16 %v554
  %v610 = vunpack.c.l.b16 %v555
  %v611 = vunpack.c.h.b16 %v555
  %v612 = vunpack.c.l.b16 %v556
  %v613 = vunpack.c.l.b16 %v557
  %v614 = vunpack.c.h.b16 %v557
  %v615 = vunpack.c.l.b16 %v558
  %v616 = vpack.c.b16 %v595, %v592
  %v617 = vpack.c.b16 %v596, %v593
  %v618 = vpack.c.b16 %v597, %v594
  %v619 = vpack.c.b16 %v601, %v598
  %v620 = vpack.c.b16 %v602, %v599
  %v621 = vpack.c.b16 %v603, %v600
  %v622 = vpack.c.b16 %v607, %v604
  %v623 = vpack.c.b16 %v608, %v605
  %v624 = vpack.c.b16 %v609, %v606
  %v625 = vpack.c.b16 %v613, %v610
  %v626 = vpack.c.b16 %v614, %v611
  %v627 = vpack.c.b16 %v615, %v612
  %v641 = vsel %vm436, %v542, 0
  %643 = vmatprep.subr.bf16.mxu0 %v617
  %644 = vmatpush1.bf16.msra.mxu0 %v616
  %645 = vmatprep.subr.bf16.mxu0 %v620
  %646 = vmatpush1.bf16.msra.mxu0 %v619
  %647 = vmatprep.subr.bf16.mxu0 %v623
  %648 = vmatpush1.bf16.msra.mxu0 %v622
  %649 = vmatprep.subr.bf16.mxu0 %v626
  %650 = vmatpush1.bf16.msra.mxu0 %v625
  %651 = vmatprep.subr.bf16.mxu0 0
  %652 = vmatpush1.bf16.msra.mxu0 0
  %653 = vmatprep.subr.bf16.mxu0 0
  %654 = vmatpush1.bf16.msra.mxu0 0
  %655 = vmatprep.subr.bf16.mxu0 0
  %656 = vmatpush1.bf16.msra.mxu0 0
  %657 = vmatprep.subr.bf16.mxu0 0
  %658 = vmatpush1.bf16.msra.mxu0 0
  %659 = vmatprep.subr.bf16.mxu0 0
  %660 = vmatpush1.bf16.msra.mxu0 0
  %661 = vmatprep.subr.bf16.mxu0 0
  %662 = vmatpush1.bf16.msra.mxu0 0
  %663 = vmatprep.subr.bf16.mxu0 0
  %664 = vmatpush1.bf16.msra.mxu0 0
  %665 = vmatprep.subr.bf16.mxu0 0
  %666 = vmatpush1.bf16.msra.mxu0 0
  %667 = vmatprep.subr.bf16.mxu0 0
  %668 = vmatpush1.bf16.msra.mxu0 0
  %669 = vmatprep.subr.bf16.mxu0 0
  %670 = vmatpush1.bf16.msra.mxu0 0
  %671 = vmatprep.subr.bf16.mxu0 0
  %672 = vmatpush1.bf16.msra.mxu0 0
  %673 = vmatprep.subr.bf16.mxu0 0
  %674 = vmatpush1.bf16.msra.mxu0 0
  %675 = vmatprep.mubr.bf16.mxu0 0
  %676 = vmatmul.mubr.bf16.gmra.mrb[0].mxu0 %v641
  %v677 = vpop.f32.mrb[0].mxu0
  %v678 = vadd.f32 %v564, %v677
  %v679 = vpop.f32.mrb[0].mxu0
  %v680 = vadd.f32 %v568, %v679
  %v681 = vpop.f32.mrb[0].mxu0
  %v682 = vpop.f32.mrb[0].mxu0
  %683 = vdwg.mxu0
  %684 = vmatprep.subr.bf16.mxu0 0
  %685 = vmatpush1.bf16.msra.mxu0 %v618
  %686 = vmatprep.subr.bf16.mxu0 0
  %687 = vmatpush1.bf16.msra.mxu0 %v621
  %688 = vmatprep.subr.bf16.mxu0 0
  %689 = vmatpush1.bf16.msra.mxu0 %v624
  %690 = vmatprep.subr.bf16.mxu0 0
  %691 = vmatpush1.bf16.msra.mxu0 %v627
  %692 = vmatprep.subr.bf16.mxu0 0
  %693 = vmatpush1.bf16.msra.mxu0 0
  %694 = vmatprep.subr.bf16.mxu0 0
  %695 = vmatpush1.bf16.msra.mxu0 0
  %696 = vmatprep.subr.bf16.mxu0 0
  %697 = vmatpush1.bf16.msra.mxu0 0
  %698 = vmatprep.subr.bf16.mxu0 0
  %699 = vmatpush1.bf16.msra.mxu0 0
  %700 = vmatprep.subr.bf16.mxu0 0
  %701 = vmatpush1.bf16.msra.mxu0 0
  %702 = vmatprep.subr.bf16.mxu0 0
  %703 = vmatpush1.bf16.msra.mxu0 0
  %704 = vmatprep.subr.bf16.mxu0 0
  %705 = vmatpush1.bf16.msra.mxu0 0
  %706 = vmatprep.subr.bf16.mxu0 0
  %707 = vmatpush1.bf16.msra.mxu0 0
  %708 = vmatprep.subr.bf16.mxu0 0
  %709 = vmatpush1.bf16.msra.mxu0 0
  %710 = vmatprep.subr.bf16.mxu0 0
  %711 = vmatpush1.bf16.msra.mxu0 0
  %712 = vmatprep.subr.bf16.mxu0 0
  %713 = vmatpush1.bf16.msra.mxu0 0
  %714 = vmatprep.subr.bf16.mxu0 0
  %715 = vmatpush1.bf16.msra.mxu0 0
  %716 = vmatprep.mubr.bf16.mxu0 0
  %717 = vmatmul.mubr.bf16.gmra.mrb[0].mxu0 %v641
  %v718 = vpop.f32.mrb[0].mxu0
  %v719 = vadd.f32 %v572, %v718
  %v720 = vpop.f32.mrb[0].mxu0
  %v721 = vpop.f32.mrb[0].mxu0
  %v722 = vpop.f32.mrb[0].mxu0
  %723 = vdwg.mxu0
  %v724 = vmax.f32 %v678, 0.0
  %v725 = vmax.f32 %v680, 0.0
  %v726 = vmax.f32 %v719, 0.0
  %727 = vst [vmem:[%s12] sm:$0xff] %v724
  %728 = vst [vmem:[%s12 + $0x8] sm:$0xff] %v725
  %729 = vst.msk [vmem:[%s12 + $0x10] sm:$0xff] %vm198, %v726
  // Predicated region
  $region46: #{forward.16} parent=0 // pred_check
    _
  $region47: #{forward.16} parent=0 // pred_check_branch
    %731 = sbr.rel (0) target = $region49
  $region48: #{forward.16} parent=0 // pred_region
    _
  $region49: #{forward.16} parent=0 // pred_fallthru
    _
  // Predicated region
  $region50: #{forward.16} parent=0 // pred_check
    _
  $region51: #{forward.16} parent=0 // pred_check_branch
    %733 = sbr.rel (0) target = $region53
  $region52: #{forward.16} parent=0 // pred_region
    _
  $region53: #{forward.16} parent=0 // pred_fallthru
    _
  // Predicated region
  $region54: #{forward.16} parent=0 // pred_check
    _
  $region55: #{forward.16} parent=0 // pred_check_branch
    %735 = sbr.rel (0) target = $region57
  $region56: #{forward.16} parent=0 // pred_region
    _
  $region57: #{forward.16} parent=0 // pred_fallthru
    _
  // Predicated region
  $region58: #{forward.16} parent=0 // pred_check
    _
  $region59: #{forward.16} parent=0 // pred_check_branch
    %737 = sbr.rel (0) target = $region61
  $region60: #{forward.16} parent=0 // pred_region
    _
  $region61: #{forward.16} parent=0 // pred_fallthru
    _

// kernel: forward.17
$region0: #{forward.17}
  #allocation0 [shape = 'u32[]', space=smem, size = 0x4, offset = 0x4, fixed_abs, tag = 'smem constant byte address 0x4 - core index']
  #allocation1 [shape = 'u32[144,128]{1,0:T(1,128)}', space=vmem, size = 0x12000, scoped, tag = 'internal scratch']
  %s0 = inlined_call_operand.vmem [shape: bf16[288,128], index: 0, kind: input, shape index: {}]
  %s1 = inlined_call_operand.vmem [shape: bf16[16,288], index: 1, kind: input, shape index: {}]
  %s2 = inlined_call_operand.vmem [shape: f32[16,128], index: 2, kind: output, shape index: {0}]
  %s3 = inlined_call_operand.vmem [shape: f32[16,1], index: 3, kind: output, shape index: {1}]
  %s4 = inlined_call_operand.vmem [shape: f32[16,1], index: 4, kind: output, shape index: {2}]
  %5 = xla_tuple %s2, %s3, %s4
  %s6 = sld [smem:[#allocation0]]
  $region38: #{forward.17} parent=0
    _
  %s8 = ssub.s32 1, %s6
  %s9 = scalar_select 0, %s8, %s6
  // Predicated region
  $region2: #{forward.17} parent=0 // pred_check
    _
  $region3: #{forward.17} parent=0 // pred_check_branch
    %11 = sbr.rel (0) target = $region5
  $region4: #{forward.17} parent=0 // pred_region
    _
  $region5: #{forward.17} parent=0 // pred_fallthru
    _
  // Predicated region
  $region6: #{forward.17} parent=0 // pred_check
    _
  $region7: #{forward.17} parent=0 // pred_check_branch
    %13 = sbr.rel (0) target = $region9
  $region8: #{forward.17} parent=0 // pred_region
    _
  $region9: #{forward.17} parent=0 // pred_fallthru
    _
  %v15 = vld [vmem:[%s1] sm:$0xff]
  %v16 = vld [vmem:[%s1 + $0x8] sm:$0xf]
  %v17 = vld [vmem:[%s1 + $0xc] sm:$0xff]
  %v18 = vld [vmem:[%s1 + $0x14] sm:$0xf]
  %v19 = vld [vmem:[%s0] sm:$0xf]
  %v20 = vld [vmem:[%s0 + $0x4] sm:$0xf]
  %v21 = vld [vmem:[%s0 + $0x8] sm:$0xf]
  %v22 = vld [vmem:[%s0 + $0xc] sm:$0xf]
  %v23 = vld [vmem:[%s0 + $0x10] sm:$0xf]
  %v24 = vld [vmem:[%s0 + $0x14] sm:$0xf]
  %v25 = vld [vmem:[%s0 + $0x18] sm:$0xf]
  %v26 = vld [vmem:[%s0 + $0x1c] sm:$0xf]
  %v27 = vld [vmem:[%s0 + $0x20] sm:$0xf]
  %v28 = vld [vmem:[%s0 + $0x24] sm:$0xf]
  %v29 = vld [vmem:[%s0 + $0x28] sm:$0xf]
  %v30 = vld [vmem:[%s0 + $0x2c] sm:$0xf]
  %v31 = vld [vmem:[%s0 + $0x30] sm:$0xf]
  %v32 = vld [vmem:[%s0 + $0x34] sm:$0xf]
  %v33 = vld [vmem:[%s0 + $0x38] sm:$0xf]
  %v34 = vld [vmem:[%s0 + $0x3c] sm:$0xf]
  %v35 = vld [vmem:[%s0 + $0x40] sm:$0xf]
  %v36 = vld [vmem:[%s0 + $0x44] sm:$0xf]
  %v37 = vld [vmem:[%s0 + $0x48] sm:$0xf]
  %v38 = vld [vmem:[%s0 + $0x4c] sm:$0xf]
  %v39 = vld [vmem:[%s0 + $0x50] sm:$0xf]
  %v40 = vld [vmem:[%s0 + $0x54] sm:$0xf]
  %v41 = vld [vmem:[%s0 + $0x58] sm:$0xf]
  %v42 = vld [vmem:[%s0 + $0x5c] sm:$0xf]
  %v43 = vld [vmem:[%s0 + $0x60] sm:$0xf]
  %v44 = vld [vmem:[%s0 + $0x64] sm:$0xf]
  %v45 = vld [vmem:[%s0 + $0x68] sm:$0xf]
  %v46 = vld [vmem:[%s0 + $0x6c] sm:$0xf]
  %v47 = vld [vmem:[%s0 + $0x70] sm:$0xf]
  %v48 = vld [vmem:[%s0 + $0x74] sm:$0xf]
  %v49 = vld [vmem:[%s0 + $0x78] sm:$0xf]
  %v50 = vld [vmem:[%s0 + $0x7c] sm:$0xf]
  %v51 = vld [vmem:[%s0 + $0x80] sm:$0xf]
  %v52 = vld [vmem:[%s0 + $0x84] sm:$0xf]
  %v53 = vld [vmem:[%s0 + $0x88] sm:$0xf]
  %v54 = vld [vmem:[%s0 + $0x8c] sm:$0xf]
  %v59 = vunpack.c.l.b16 %v15
  %v60 = vunpack.c.h.b16 %v15
  %v61 = vunpack.c.l.b16 %v16
  %v62 = vunpack.c.l.b16 %v17
  %v63 = vunpack.c.h.b16 %v17
  %v64 = vunpack.c.l.b16 %v18
  %v65 = vpack.c.b16 %v62, %v59
  %v66 = vpack.c.b16 %v63, %v60
  %v67 = vpack.c.b16 %v64, %v61
  %v106 = vunpack.c.l.b16 %v19
  %v107 = vunpack.c.l.b16 %v20
  %v108 = vunpack.c.l.b16 %v21
  %v109 = vunpack.c.l.b16 %v22
  %v110 = vunpack.c.l.b16 %v23
  %v111 = vunpack.c.l.b16 %v24
  %v112 = vunpack.c.l.b16 %v25
  %v113 = vunpack.c.l.b16 %v26
  %v114 = vunpack.c.l.b16 %v27
  %v115 = vunpack.c.l.b16 %v28
  %v116 = vunpack.c.l.b16 %v29
  %v117 = vunpack.c.l.b16 %v30
  %v118 = vunpack.c.l.b16 %v31
  %v119 = vunpack.c.l.b16 %v32
  %v120 = vunpack.c.l.b16 %v33
  %v121 = vunpack.c.l.b16 %v34
  %v122 = vunpack.c.l.b16 %v35
  %v123 = vunpack.c.l.b16 %v36
  %v124 = vunpack.c.l.b16 %v37
  %v125 = vunpack.c.l.b16 %v38
  %v126 = vunpack.c.l.b16 %v39
  %v127 = vunpack.c.l.b16 %v40
  %v128 = vunpack.c.l.b16 %v41
  %v129 = vunpack.c.l.b16 %v42
  %v130 = vunpack.c.l.b16 %v43
  %v131 = vunpack.c.l.b16 %v44
  %v132 = vunpack.c.l.b16 %v45
  %v133 = vunpack.c.l.b16 %v46
  %v134 = vunpack.c.l.b16 %v47
  %v135 = vunpack.c.l.b16 %v48
  %v136 = vunpack.c.l.b16 %v49
  %v137 = vunpack.c.l.b16 %v50
  %v138 = vunpack.c.l.b16 %v51
  %v139 = vunpack.c.l.b16 %v52
  %v140 = vunpack.c.l.b16 %v53
  %v141 = vunpack.c.l.b16 %v54
  %v142 = vpack.c.b16 %v107, %v106
  %v143 = vpack.c.b16 %v109, %v108
  %v144 = vpack.c.b16 %v111, %v110
  %v145 = vpack.c.b16 %v113, %v112
  %v146 = vpack.c.b16 %v115, %v114
  %v147 = vpack.c.b16 %v117, %v116
  %v148 = vpack.c.b16 %v119, %v118
  %v149 = vpack.c.b16 %v121, %v120
  %v150 = vpack.c.b16 %v123, %v122
  %v151 = vpack.c.b16 %v125, %v124
  %v152 = vpack.c.b16 %v127, %v126
  %v153 = vpack.c.b16 %v129, %v128
  %v154 = vpack.c.b16 %v131, %v130
  %v155 = vpack.c.b16 %v133, %v132
  %v156 = vpack.c.b16 %v135, %v134
  %v157 = vpack.c.b16 %v137, %v136
  %v158 = vpack.c.b16 %v139, %v138
  %v159 = vpack.c.b16 %v141, %v140
  %vm178 = vcmask 261120
  %v180 = vsel %vm178, %v67, 0
  %182 = vmatprep.subr.bf16.mxu0 0
  %183 = vmatpush1.bf16.msra.mxu0 %v142
  %184 = vmatprep.subr.bf16.mxu0 0
  %185 = vmatpush1.bf16.msra.mxu0 %v143
  %186 = vmatprep.subr.bf16.mxu0 0
  %187 = vmatpush1.bf16.msra.mxu0 %v144
  %188 = vmatprep.subr.bf16.mxu0 0
  %189 = vmatpush1.bf16.msra.mxu0 %v145
  %190 = vmatprep.subr.bf16.mxu0 0
  %191 = vmatpush1.bf16.msra.mxu0 %v146
  %192 = vmatprep.subr.bf16.mxu0 0
  %193 = vmatpush1.bf16.msra.mxu0 %v147
  %194 = vmatprep.subr.bf16.mxu0 0
  %195 = vmatpush1.bf16.msra.mxu0 %v148
  %196 = vmatprep.subr.bf16.mxu0 0
  %197 = vmatpush1.bf16.msra.mxu0 %v149
  %198 = vmatprep.subr.bf16.mxu0 0
  %199 = vmatpush1.bf16.msra.mxu0 %v150
  %200 = vmatprep.subr.bf16.mxu0 0
  %201 = vmatpush1.bf16.msra.mxu0 %v151
  %202 = vmatprep.subr.bf16.mxu0 0
  %203 = vmatpush1.bf16.msra.mxu0 %v152
  %204 = vmatprep.subr.bf16.mxu0 0
  %205 = vmatpush1.bf16.msra.mxu0 %v153
  %206 = vmatprep.subr.bf16.mxu0 0
  %207 = vmatpush1.bf16.msra.mxu0 %v154
  %208 = vmatprep.subr.bf16.mxu0 0
  %209 = vmatpush1.bf16.msra.mxu0 %v155
  %210 = vmatprep.subr.bf16.mxu0 0
  %211 = vmatpush1.bf16.msra.mxu0 %v156
  %212 = vmatprep.subr.bf16.mxu0 0
  %213 = vmatpush1.bf16.msra.mxu0 %v157
  %214 = vmatprep.mubr.bf16.mxu0 %v66
  %215 = vmatmul.mubr.bf16.gmra.mrb[0].mxu0 %v65
  %v216 = vpop.f32.mrb[0].mxu0
  %v217 = vadd.f32 0.0, %v216
  %v218 = vpop.f32.mrb[0].mxu0
  %v219 = vpop.f32.mrb[0].mxu0
  %v220 = vadd.f32 0.0, %v219
  %v221 = vpop.f32.mrb[0].mxu0
  %222 = vdwg.mxu0
  %223 = vmatprep.subr.bf16.mxu0 0
  %224 = vmatpush1.bf16.msra.mxu0 %v158
  %225 = vmatprep.subr.bf16.mxu0 0
  %226 = vmatpush1.bf16.msra.mxu0 %v159
  %227 = vmatprep.subr.bf16.mxu0 0
  %228 = vmatpush1.bf16.msra.mxu0 0
  %229 = vmatprep.subr.bf16.mxu0 0
  %230 = vmatpush1.bf16.msra.mxu0 0
  %231 = vmatprep.subr.bf16.mxu0 0
  %232 = vmatpush1.bf16.msra.mxu0 0
  %233 = vmatprep.subr.bf16.mxu0 0
  %234 = vmatpush1.bf16.msra.mxu0 0
  %235 = vmatprep.subr.bf16.mxu0 0
  %236 = vmatpush1.bf16.msra.mxu0 0
  %237 = vmatprep.subr.bf16.mxu0 0
  %238 = vmatpush1.bf16.msra.mxu0 0
  %239 = vmatprep.subr.bf16.mxu0 0
  %240 = vmatpush1.bf16.msra.mxu0 0
  %241 = vmatprep.subr.bf16.mxu0 0
  %242 = vmatpush1.bf16.msra.mxu0 0
  %243 = vmatprep.subr.bf16.mxu0 0
  %244 = vmatpush1.bf16.msra.mxu0 0
  %245 = vmatprep.subr.bf16.mxu0 0
  %246 = vmatpush1.bf16.msra.mxu0 0
  %247 = vmatprep.subr.bf16.mxu0 0
  %248 = vmatpush1.bf16.msra.mxu0 0
  %249 = vmatprep.subr.bf16.mxu0 0
  %250 = vmatpush1.bf16.msra.mxu0 0
  %251 = vmatprep.subr.bf16.mxu0 0
  %252 = vmatpush1.bf16.msra.mxu0 0
  %253 = vmatprep.subr.bf16.mxu0 0
  %254 = vmatpush1.bf16.msra.mxu0 0
  %255 = vmatprep.mubr.bf16.mxu0 0
  %256 = vmatmul.mubr.bf16.gmra.mrb[0].mxu0 %v180
  %v257 = vpop.f32.mrb[0].mxu0
  %v258 = vadd.f32 %v217, %v257
  %v259 = vpop.f32.mrb[0].mxu0
  %v260 = vpop.f32.mrb[0].mxu0
  %v261 = vadd.f32 %v220, %v260
  %v262 = vpop.f32.mrb[0].mxu0
  %263 = vdwg.mxu0
  %264 = vst [vmem:[%s2] sm:$0xff] %v258
  %265 = vst [vmem:[%s2 + $0x8] sm:$0xff] %v261
  %v266 = vlaneseq
  %v267 = vand.u32 %v266, 127
  %s268 = smul.u32 0, 128
  %v269 = vstv %s268
  %v270 = vadd.s32 %v267, %v269
  %vm271 = vcmp.lt.s32.totalorder %v270, 98
  %v272 = vsel %vm271, %v258, 0.0
  %v273 = vsel %vm271, %v261, 0.0
  %p274 = scmp.eq.s32.totalorder 0, 0
  // Predicated region
  $region10: #{forward.17} parent=0 // pred_check
    %p275 = pneg %p274
  $region11: #{forward.17} parent=0 // pred_check_branch
    %277 = sbr.rel (%p275) target = $region13
  $region12: #{forward.17} parent=0 // pred_region
    %vm278 = vcmask 7168
    %279 = vst.msk [vmem:[%s3] sm:$0xff] %vm278, 0.0
    %280 = vst.msk [vmem:[%s3 + $0x8] sm:$0xff] %vm278, 0.0
    %281 = vst.msk [vmem:[%s4] sm:$0xff] %vm278, 0.0
    %282 = vst.msk [vmem:[%s4 + $0x8] sm:$0xff] %vm278, 0.0
  $region13: #{forward.17} parent=0 // pred_fallthru
    _
  %v283 = vld [vmem:[%s3] sm:$0xff]
  %v284 = vld [vmem:[%s3 + $0x8] sm:$0xff]
  %285 = vadd.xlane.f32.xlu0 %v272
  %v286 = vpop.xlane.xlu0 %285
  %287 = vadd.xlane.f32.xlu0 %v273
  %v288 = vpop.xlane.xlu0 %287
  %v289 = vadd.f32 %v283, %v286
  %v290 = vadd.f32 %v284, %v288
  %vm291 = vcmask 7168
  %292 = vst.msk [vmem:[%s3] sm:$0xff] %vm291, %v289
  %293 = vst.msk [vmem:[%s3 + $0x8] sm:$0xff] %vm291, %v290
  %v294 = vld [vmem:[%s4] sm:$0xff]
  %v295 = vld [vmem:[%s4 + $0x8] sm:$0xff]
  %v296 = vmul.f32 %v272, %v272
  %v297 = vmul.f32 %v273, %v273
  %298 = vadd.xlane.f32.xlu0 %v296
  %v299 = vpop.xlane.xlu0 %298
  %300 = vadd.xlane.f32.xlu0 %v297
  %v301 = vpop.xlane.xlu0 %300
  %v302 = vadd.f32 %v294, %v299
  %v303 = vadd.f32 %v295, %v301
  %304 = vst.msk [vmem:[%s4] sm:$0xff] %vm291, %v302
  %305 = vst.msk [vmem:[%s4 + $0x8] sm:$0xff] %vm291, %v303
  // Predicated region
  $region14: #{forward.17} parent=0 // pred_check
    _
  $region15: #{forward.17} parent=0 // pred_check_branch
    %307 = sbr.rel (0) target = $region17
  $region16: #{forward.17} parent=0 // pred_region
    _
  $region17: #{forward.17} parent=0 // pred_fallthru
    _
  // Predicated region
  $region18: #{forward.17} parent=0 // pred_check
    _
  $region19: #{forward.17} parent=0 // pred_check_branch
    %309 = sbr.rel (0) target = $region21
  $region20: #{forward.17} parent=0 // pred_region
    _
  $region21: #{forward.17} parent=0 // pred_fallthru
    _
  // Predicated region
  $region22: #{forward.17} parent=0 // pred_check
    _
  $region23: #{forward.17} parent=0 // pred_check_branch
    %311 = sbr.rel (0) target = $region25
  $region24: #{forward.17} parent=0 // pred_region
    _
  $region25: #{forward.17} parent=0 // pred_fallthru
    _
  // Predicated region
  $region26: #{forward.17} parent=0 // pred_check
    _
  $region27: #{forward.17} parent=0 // pred_check_branch
    %313 = sbr.rel (0) target = $region29
  $region28: #{forward.17} parent=0 // pred_region
    _
  $region29: #{forward.17} parent=0 // pred_fallthru
    _
  // Predicated region
  $region30: #{forward.17} parent=0 // pred_check
    _
  $region31: #{forward.17} parent=0 // pred_check_branch
    %315 = sbr.rel (0) target = $region33
  $region32: #{forward.17} parent=0 // pred_region
    _
  $region33: #{forward.17} parent=0 // pred_fallthru
    _
  // Predicated region
  $region34: #{forward.17} parent=0 // pred_check
    _
  $region35: #{forward.17} parent=0 // pred_check_branch
    %317 = sbr.rel (0) target = $region37
  $region36: #{forward.17} parent=0 // pred_region
    _
  $region37: #{forward.17} parent=0 // pred_fallthru
    _

// kernel: forward.19
$region0: #{forward.19}
  #allocation0 [shape = 'u32[]', space=smem, size = 0x4, offset = 0x4, fixed_abs, tag = 'smem constant byte address 0x4 - core index']
  #allocation1 [shape = 'u32[144,128]{1,0:T(1,128)}', space=vmem, size = 0x12000, scoped, tag = 'internal scratch']
  %s0 = inlined_call_operand.vmem [shape: bf16[144,128], index: 0, kind: input, shape index: {}]
  %s1 = inlined_call_operand.vmem [shape: bf16[32,144], index: 1, kind: input, shape index: {}]
  %s2 = inlined_call_operand.vmem [shape: f32[32,128], index: 2, kind: output, shape index: {0}]
  %s3 = inlined_call_operand.vmem [shape: f32[32,1], index: 3, kind: output, shape index: {1}]
  %s4 = inlined_call_operand.vmem [shape: f32[32,1], index: 4, kind: output, shape index: {2}]
  %5 = xla_tuple %s2, %s3, %s4
  %s6 = sld [smem:[#allocation0]]
  $region38: #{forward.19} parent=0
    _
  %s8 = ssub.s32 1, %s6
  %s9 = scalar_select 0, %s8, %s6
  // Predicated region
  $region2: #{forward.19} parent=0 // pred_check
    _
  $region3: #{forward.19} parent=0 // pred_check_branch
    %11 = sbr.rel (0) target = $region5
  $region4: #{forward.19} parent=0 // pred_region
    _
  $region5: #{forward.19} parent=0 // pred_fallthru
    _
  // Predicated region
  $region6: #{forward.19} parent=0 // pred_check
    _
  $region7: #{forward.19} parent=0 // pred_check_branch
    %13 = sbr.rel (0) target = $region9
  $region8: #{forward.19} parent=0 // pred_region
    _
  $region9: #{forward.19} parent=0 // pred_fallthru
    _
  %v15 = vld [vmem:[%s1] sm:$0xff]
  %v16 = vld [vmem:[%s1 + $0x8] sm:$0xff]
  %v17 = vld [vmem:[%s1 + $0x10] sm:$0xff]
  %v18 = vld [vmem:[%s1 + $0x18] sm:$0xff]
  %v19 = vld [vmem:[%s0] sm:$0xf]
  %v20 = vld [vmem:[%s0 + $0x4] sm:$0xf]
  %v21 = vld [vmem:[%s0 + $0x8] sm:$0xf]
  %v22 = vld [vmem:[%s0 + $0xc] sm:$0xf]
  %v23 = vld [vmem:[%s0 + $0x10] sm:$0xf]
  %v24 = vld [vmem:[%s0 + $0x14] sm:$0xf]
  %v25 = vld [vmem:[%s0 + $0x18] sm:$0xf]
  %v26 = vld [vmem:[%s0 + $0x1c] sm:$0xf]
  %v27 = vld [vmem:[%s0 + $0x20] sm:$0xf]
  %v28 = vld [vmem:[%s0 + $0x24] sm:$0xf]
  %v29 = vld [vmem:[%s0 + $0x28] sm:$0xf]
  %v30 = vld [vmem:[%s0 + $0x2c] sm:$0xf]
  %v31 = vld [vmem:[%s0 + $0x30] sm:$0xf]
  %v32 = vld [vmem:[%s0 + $0x34] sm:$0xf]
  %v33 = vld [vmem:[%s0 + $0x38] sm:$0xf]
  %v34 = vld [vmem:[%s0 + $0x3c] sm:$0xf]
  %v35 = vld [vmem:[%s0 + $0x40] sm:$0xf]
  %v36 = vld [vmem:[%s0 + $0x44] sm:$0xf]
  %v41 = vunpack.c.l.b16 %v15
  %v42 = vunpack.c.h.b16 %v15
  %v43 = vunpack.c.l.b16 %v16
  %v44 = vunpack.c.h.b16 %v16
  %v45 = vunpack.c.l.b16 %v17
  %v46 = vunpack.c.h.b16 %v17
  %v47 = vunpack.c.l.b16 %v18
  %v48 = vunpack.c.h.b16 %v18
  %v49 = vpack.c.b16 %v43, %v41
  %v50 = vpack.c.b16 %v44, %v42
  %v51 = vpack.c.b16 %v47, %v45
  %v52 = vpack.c.b16 %v48, %v46
  %v73 = vunpack.c.l.b16 %v19
  %v74 = vunpack.c.l.b16 %v20
  %v75 = vunpack.c.l.b16 %v21
  %v76 = vunpack.c.l.b16 %v22
  %v77 = vunpack.c.l.b16 %v23
  %v78 = vunpack.c.l.b16 %v24
  %v79 = vunpack.c.l.b16 %v25
  %v80 = vunpack.c.l.b16 %v26
  %v81 = vunpack.c.l.b16 %v27
  %v82 = vunpack.c.l.b16 %v28
  %v83 = vunpack.c.l.b16 %v29
  %v84 = vunpack.c.l.b16 %v30
  %v85 = vunpack.c.l.b16 %v31
  %v86 = vunpack.c.l.b16 %v32
  %v87 = vunpack.c.l.b16 %v33
  %v88 = vunpack.c.l.b16 %v34
  %v89 = vunpack.c.l.b16 %v35
  %v90 = vunpack.c.l.b16 %v36
  %v91 = vpack.c.b16 %v74, %v73
  %v92 = vpack.c.b16 %v76, %v75
  %v93 = vpack.c.b16 %v78, %v77
  %v94 = vpack.c.b16 %v80, %v79
  %v95 = vpack.c.b16 %v82, %v81
  %v96 = vpack.c.b16 %v84, %v83
  %v97 = vpack.c.b16 %v86, %v85
  %v98 = vpack.c.b16 %v88, %v87
  %v99 = vpack.c.b16 %v90, %v89
  %vm109 = vcmask 130048
  %v111 = vsel %vm109, %v50, 0
  %v114 = vsel %vm109, %v52, 0
  %116 = vmatprep.subr.bf16.mxu0 0
  %117 = vmatpush1.bf16.msra.mxu0 %v91
  %118 = vmatprep.subr.bf16.mxu0 0
  %119 = vmatpush1.bf16.msra.mxu0 %v92
  %120 = vmatprep.subr.bf16.mxu0 0
  %121 = vmatpush1.bf16.msra.mxu0 %v93
  %122 = vmatprep.subr.bf16.mxu0 0
  %123 = vmatpush1.bf16.msra.mxu0 %v94
  %124 = vmatprep.subr.bf16.mxu0 0
  %125 = vmatpush1.bf16.msra.mxu0 %v95
  %126 = vmatprep.subr.bf16.mxu0 0
  %127 = vmatpush1.bf16.msra.mxu0 %v96
  %128 = vmatprep.subr.bf16.mxu0 0
  %129 = vmatpush1.bf16.msra.mxu0 %v97
  %130 = vmatprep.subr.bf16.mxu0 0
  %131 = vmatpush1.bf16.msra.mxu0 %v98
  %132 = vmatprep.subr.bf16.mxu0 0
  %133 = vmatpush1.bf16.msra.mxu0 %v99
  %134 = vmatprep.subr.bf16.mxu0 0
  %135 = vmatpush1.bf16.msra.mxu0 0
  %136 = vmatprep.subr.bf16.mxu0 0
  %137 = vmatpush1.bf16.msra.mxu0 0
  %138 = vmatprep.subr.bf16.mxu0 0
  %139 = vmatpush1.bf16.msra.mxu0 0
  %140 = vmatprep.subr.bf16.mxu0 0
  %141 = vmatpush1.bf16.msra.mxu0 0
  %142 = vmatprep.subr.bf16.mxu0 0
  %143 = vmatpush1.bf16.msra.mxu0 0
  %144 = vmatprep.subr.bf16.mxu0 0
  %145 = vmatpush1.bf16.msra.mxu0 0
  %146 = vmatprep.subr.bf16.mxu0 0
  %147 = vmatpush1.bf16.msra.mxu0 0
  %148 = vmatprep.mubr.bf16.mxu0 %v111
  %149 = vmatmul.mubr.bf16.gmra.mrb[0].mxu0 %v49
  %v150 = vpop.f32.mrb[0].mxu0
  %v151 = vadd.f32 0.0, %v150
  %v152 = vpop.f32.mrb[0].mxu0
  %v153 = vpop.f32.mrb[0].mxu0
  %v154 = vadd.f32 0.0, %v153
  %v155 = vpop.f32.mrb[0].mxu0
  %156 = vmatprep.mubr.bf16.mxu0 %v114
  %157 = vmatmul.mubr.bf16.gmra.mrb[0].mxu0 %v51
  %v158 = vpop.f32.mrb[0].mxu0
  %v159 = vadd.f32 0.0, %v158
  %v160 = vpop.f32.mrb[0].mxu0
  %v161 = vpop.f32.mrb[0].mxu0
  %v162 = vadd.f32 0.0, %v161
  %v163 = vpop.f32.mrb[0].mxu0
  %164 = vdwg.mxu0
  %165 = vst [vmem:[%s2] sm:$0xff] %v151
  %166 = vst [vmem:[%s2 + $0x8] sm:$0xff] %v154
  %167 = vst [vmem:[%s2 + $0x10] sm:$0xff] %v159
  %168 = vst [vmem:[%s2 + $0x18] sm:$0xff] %v162
  %v169 = vlaneseq
  %v170 = vand.u32 %v169, 127
  %s171 = smul.u32 0, 128
  %v172 = vstv %s171
  %v173 = vadd.s32 %v170, %v172
  %vm174 = vcmp.lt.s32.totalorder %v173, 98
  %v175 = vsel %vm174, %v151, 0.0
  %v176 = vsel %vm174, %v154, 0.0
  %v177 = vsel %vm174, %v159, 0.0
  %v178 = vsel %vm174, %v162, 0.0
  %p179 = scmp.eq.s32.totalorder 0, 0
  // Predicated region
  $region10: #{forward.19} parent=0 // pred_check
    %p180 = pneg %p179
  $region11: #{forward.19} parent=0 // pred_check_branch
    %182 = sbr.rel (%p180) target = $region13
  $region12: #{forward.19} parent=0 // pred_region
    %vm183 = vcmask 7168
    %184 = vst.msk [vmem:[%s3] sm:$0xff] %vm183, 0.0
    %185 = vst.msk [vmem:[%s3 + $0x8] sm:$0xff] %vm183, 0.0
    %186 = vst.msk [vmem:[%s3 + $0x10] sm:$0xff] %vm183, 0.0
    %187 = vst.msk [vmem:[%s3 + $0x18] sm:$0xff] %vm183, 0.0
    %188 = vst.msk [vmem:[%s4] sm:$0xff] %vm183, 0.0
    %189 = vst.msk [vmem:[%s4 + $0x8] sm:$0xff] %vm183, 0.0
    %190 = vst.msk [vmem:[%s4 + $0x10] sm:$0xff] %vm183, 0.0
    %191 = vst.msk [vmem:[%s4 + $0x18] sm:$0xff] %vm183, 0.0
  $region13: #{forward.19} parent=0 // pred_fallthru
    _
  %v192 = vld [vmem:[%s3] sm:$0xff]
  %v193 = vld [vmem:[%s3 + $0x8] sm:$0xff]
  %v194 = vld [vmem:[%s3 + $0x10] sm:$0xff]
  %v195 = vld [vmem:[%s3 + $0x18] sm:$0xff]
  %196 = vadd.xlane.f32.xlu0 %v175
  %v197 = vpop.xlane.xlu0 %196
  %198 = vadd.xlane.f32.xlu0 %v176
  %v199 = vpop.xlane.xlu0 %198
  %200 = vadd.xlane.f32.xlu0 %v177
  %v201 = vpop.xlane.xlu0 %200
  %202 = vadd.xlane.f32.xlu0 %v178
  %v203 = vpop.xlane.xlu0 %202
  %v204 = vadd.f32 %v192, %v197
  %v205 = vadd.f32 %v193, %v199
  %v206 = vadd.f32 %v194, %v201
  %v207 = vadd.f32 %v195, %v203
  %vm208 = vcmask 7168
  %209 = vst.msk [vmem:[%s3] sm:$0xff] %vm208, %v204
  %210 = vst.msk [vmem:[%s3 + $0x8] sm:$0xff] %vm208, %v205
  %211 = vst.msk [vmem:[%s3 + $0x10] sm:$0xff] %vm208, %v206
  %212 = vst.msk [vmem:[%s3 + $0x18] sm:$0xff] %vm208, %v207
  %v213 = vld [vmem:[%s4] sm:$0xff]
  %v214 = vld [vmem:[%s4 + $0x8] sm:$0xff]
  %v215 = vld [vmem:[%s4 + $0x10] sm:$0xff]
  %v216 = vld [vmem:[%s4 + $0x18] sm:$0xff]
  %v217 = vmul.f32 %v175, %v175
  %v218 = vmul.f32 %v176, %v176
  %v219 = vmul.f32 %v177, %v177
  %v220 = vmul.f32 %v178, %v178
  %221 = vadd.xlane.f32.xlu0 %v217
  %v222 = vpop.xlane.xlu0 %221
  %223 = vadd.xlane.f32.xlu0 %v218
  %v224 = vpop.xlane.xlu0 %223
  %225 = vadd.xlane.f32.xlu0 %v219
  %v226 = vpop.xlane.xlu0 %225
  %227 = vadd.xlane.f32.xlu0 %v220
  %v228 = vpop.xlane.xlu0 %227
  %v229 = vadd.f32 %v213, %v222
  %v230 = vadd.f32 %v214, %v224
  %v231 = vadd.f32 %v215, %v226
  %v232 = vadd.f32 %v216, %v228
  %233 = vst.msk [vmem:[%s4] sm:$0xff] %vm208, %v229
  %234 = vst.msk [vmem:[%s4 + $0x8] sm:$0xff] %vm208, %v230
  %235 = vst.msk [vmem:[%s4 + $0x10] sm:$0xff] %vm208, %v231
  %236 = vst.msk [vmem:[%s4 + $0x18] sm:$0xff] %vm208, %v232
  // Predicated region
  $region14: #{forward.19} parent=0 // pred_check
    _
  $region15: #{forward.19} parent=0 // pred_check_branch
    %238 = sbr.rel (0) target = $region17
  $region16: #{forward.19} parent=0 // pred_region
    _
  $region17: #{forward.19} parent=0 // pred_fallthru
    _
  // Predicated region
  $region18: #{forward.19} parent=0 // pred_check
    _
  $region19: #{forward.19} parent=0 // pred_check_branch
    %240 = sbr.rel (0) target = $region21
  $region20: #{forward.19} parent=0 // pred_region
    _
  $region21: #{forward.19} parent=0 // pred_fallthru
    _
  // Predicated region
  $region22: #{forward.19} parent=0 // pred_check
    _
  $region23: #{forward.19} parent=0 // pred_check_branch
    %242 = sbr.rel (0) target = $region25
  $region24: #{forward.19} parent=0 // pred_region
    _
  $region25: #{forward.19} parent=0 // pred_fallthru
    _
  // Predicated region
  $region26: #{forward.19} parent=0 // pred_check
    _
  $region27: #{forward.19} parent=0 // pred_check_branch
    %244 = sbr.rel (0) target = $region29
  $region28: #{forward.19} parent=0 // pred_region
    _
  $region29: #{forward.19} parent=0 // pred_fallthru
    _
  // Predicated region
  $region30: #{forward.19} parent=0 // pred_check
    _
  $region31: #{forward.19} parent=0 // pred_check_branch
    %246 = sbr.rel (0) target = $region33
  $region32: #{forward.19} parent=0 // pred_region
    _
  $region33: #{forward.19} parent=0 // pred_fallthru
    _
  // Predicated region
  $region34: #{forward.19} parent=0 // pred_check
    _
  $region35: #{forward.19} parent=0 // pred_check_branch
    %248 = sbr.rel (0) target = $region37
  $region36: #{forward.19} parent=0 // pred_region
    _
  $region37: #{forward.19} parent=0 // pred_fallthru
    _

// kernel: reverse.3
$region0: #{reverse.3}
  #allocation0 [shape = 's32[1]{0}', space=sflag, size = 0x4, scoped, tag = 'scoped memory for reverse.3']
  %s0 = inlined_call_operand.vmem [shape: bf16[8,1,1,3], index: 0, kind: input, shape index: {}]
  %s1 = inlined_call_operand.vmem [shape: bf16[8,1,1,3], index: 1, kind: output, shape index: {}]
  %s2 = scalar_lea.vmem %s0, 2
  %v3 = vld [vmem:[%s2] ss:$0 sm:$0x3]
  %v4 = vunpack.i.l.bf16 %v3
  %v6 = vunpack.i.h.bf16 %v3
  %v8 = vpack.c.bf16 0.0, %v4
  %9 = vst [vmem:[%s1] sm:$0x1] %v8
  %s10 = scalar_lea.vmem %s0, 1
  %v11 = vld [vmem:[%s10] ss:$0 sm:$0x3]
  %v12 = vunpack.i.l.bf16 %v11
  %v14 = vunpack.i.h.bf16 %v11
  %s16 = scalar_lea.vmem %s1, 1
  %v17 = vpack.c.bf16 0.0, %v12
  %18 = vst [vmem:[%s16] sm:$0x1] %v17
  %v19 = vld [vmem:[%s0] ss:$0 sm:$0x3]
  %v20 = vunpack.i.l.bf16 %v19
  %v22 = vunpack.i.h.bf16 %v19
  %s24 = scalar_lea.vmem %s1, 2
  %v25 = vpack.c.bf16 0.0, %v20
  %26 = vst [vmem:[%s24] sm:$0x1] %v25

// kernel: tile.27
$region0: #{tile.27}
  #allocation0 [shape = 's32[1]{0}', space=sflag, size = 0x4, scoped, tag = 'scoped memory for tile.27']
  %s0 = inlined_call_operand.<no memory space> [shape: f32[], index: 0, kind: input, shape index: {}]
  %s1 = inlined_call_operand.vmem [shape: f32[4,1], index: 1, kind: output, shape index: {}]
  %v2 = vstv %s0
  %3 = vst [vmem:[%s1] sm:$0xf] %v2

// kernel: forward.21
$region0: #{forward.21}
  #allocation0 [shape = 'u32[]', space=smem, size = 0x4, offset = 0x4, fixed_abs, tag = 'smem constant byte address 0x4 - core index']
  #allocation1 [shape = 'u32[144,128]{1,0:T(1,128)}', space=vmem, size = 0x12000, scoped, tag = 'internal scratch']
  %s0 = inlined_call_operand.vmem [shape: bf16[72,512], index: 0, kind: input, shape index: {}]
  %s1 = inlined_call_operand.vmem [shape: bf16[4,72], index: 1, kind: input, shape index: {}]
  %s2 = inlined_call_operand.vmem [shape: f32[4,1], index: 2, kind: input, shape index: {}]
  %s3 = inlined_call_operand.vmem [shape: f32[4,512], index: 3, kind: output, shape index: {}]
  %s4 = sld [smem:[#allocation0]]
  $region22: #{forward.21} parent=0
    _
  %s6 = ssub.s32 1, %s4
  %s7 = scalar_select 0, %s6, %s4
  // Predicated region
  $region2: #{forward.21} parent=0 // pred_check
    _
  $region3: #{forward.21} parent=0 // pred_check_branch
    %9 = sbr.rel (0) target = $region5
  $region4: #{forward.21} parent=0 // pred_region
    _
  $region5: #{forward.21} parent=0 // pred_fallthru
    _
  // Predicated region
  $region6: #{forward.21} parent=0 // pred_check
    _
  $region7: #{forward.21} parent=0 // pred_check_branch
    %11 = sbr.rel (0) target = $region9
  $region8: #{forward.21} parent=0 // pred_region
    _
  $region9: #{forward.21} parent=0 // pred_fallthru
    _
  // Predicated region
  $region10: #{forward.21} parent=0 // pred_check
    _
  $region11: #{forward.21} parent=0 // pred_check_branch
    %13 = sbr.rel (0) target = $region13
  $region12: #{forward.21} parent=0 // pred_region
    _
  $region13: #{forward.21} parent=0 // pred_fallthru
    _
  %v15 = vld [vmem:[%s1] sm:$0x3]
  %v16 = vld [vmem:[%s0] sm:$0xff]
  %v17 = vld [vmem:[%s0 + $0x8] sm:$0xff]
  %v18 = vld [vmem:[%s0 + $0x10] sm:$0xff]
  %v19 = vld [vmem:[%s0 + $0x18] sm:$0xff]
  %v20 = vld [vmem:[%s0 + $0x20] sm:$0xff]
  %v21 = vld [vmem:[%s0 + $0x28] sm:$0xff]
  %v22 = vld [vmem:[%s0 + $0x30] sm:$0xff]
  %v23 = vld [vmem:[%s0 + $0x38] sm:$0xff]
  %v24 = vld [vmem:[%s0 + $0x40] sm:$0xff]
  %v25 = vld [vmem:[%s0 + $0x48] sm:$0xff]
  %v26 = vld [vmem:[%s0 + $0x50] sm:$0xff]
  %v27 = vld [vmem:[%s0 + $0x58] sm:$0xff]
  %v28 = vld [vmem:[%s0 + $0x60] sm:$0xff]
  %v29 = vld [vmem:[%s0 + $0x68] sm:$0xff]
  %v30 = vld [vmem:[%s0 + $0x70] sm:$0xff]
  %v31 = vld [vmem:[%s0 + $0x78] sm:$0xff]
  %v32 = vld [vmem:[%s0 + $0x80] sm:$0xff]
  %v33 = vld [vmem:[%s0 + $0x88] sm:$0xff]
  %v34 = vld [vmem:[%s2] sm:$0xf]
  %36 = vset.pattern.permute.xlu0 0
  %37 = vperm.xlu0 %36, %v34
  %v38 = vpop.permute.xlu0 %37
  %v58 = vunpack.c.l.b16 %v16
  %v59 = vunpack.c.h.b16 %v16
  %v60 = vunpack.c.l.b16 %v17
  %v61 = vunpack.c.h.b16 %v17
  %v62 = vunpack.c.l.b16 %v18
  %v63 = vunpack.c.h.b16 %v18
  %v64 = vunpack.c.l.b16 %v19
  %v65 = vunpack.c.h.b16 %v19
  %v66 = vunpack.c.l.b16 %v20
  %v67 = vunpack.c.h.b16 %v20
  %v68 = vunpack.c.l.b16 %v21
  %v69 = vunpack.c.h.b16 %v21
  %v70 = vunpack.c.l.b16 %v22
  %v71 = vunpack.c.h.b16 %v22
  %v72 = vunpack.c.l.b16 %v23
  %v73 = vunpack.c.h.b16 %v23
  %v74 = vunpack.c.l.b16 %v24
  %v75 = vunpack.c.h.b16 %v24
  %v76 = vunpack.c.l.b16 %v25
  %v77 = vunpack.c.h.b16 %v25
  %v78 = vunpack.c.l.b16 %v26
  %v79 = vunpack.c.h.b16 %v26
  %v80 = vunpack.c.l.b16 %v27
  %v81 = vunpack.c.h.b16 %v27
  %v82 = vunpack.c.l.b16 %v28
  %v83 = vunpack.c.h.b16 %v28
  %v84 = vunpack.c.l.b16 %v29
  %v85 = vunpack.c.h.b16 %v29
  %v86 = vunpack.c.l.b16 %v30
  %v87 = vunpack.c.h.b16 %v30
  %v88 = vunpack.c.l.b16 %v31
  %v89 = vunpack.c.h.b16 %v31
  %v90 = vunpack.c.l.b16 %v32
  %v91 = vunpack.c.h.b16 %v32
  %v92 = vunpack.c.l.b16 %v33
  %v93 = vunpack.c.h.b16 %v33
  %v94 = vpack.c.b16 %v62, %v58
  %v95 = vpack.c.b16 %v63, %v59
  %v96 = vpack.c.b16 %v64, %v60
  %v97 = vpack.c.b16 %v65, %v61
  %v98 = vpack.c.b16 %v70, %v66
  %v99 = vpack.c.b16 %v71, %v67
  %v100 = vpack.c.b16 %v72, %v68
  %v101 = vpack.c.b16 %v73, %v69
  %v102 = vpack.c.b16 %v78, %v74
  %v103 = vpack.c.b16 %v79, %v75
  %v104 = vpack.c.b16 %v80, %v76
  %v105 = vpack.c.b16 %v81, %v77
  %v106 = vpack.c.b16 %v86, %v82
  %v107 = vpack.c.b16 %v87, %v83
  %v108 = vpack.c.b16 %v88, %v84
  %v109 = vpack.c.b16 %v89, %v85
  %v110 = vpack.c.b16 %v90, %v90
  %v111 = vpack.c.b16 %v91, %v91
  %v112 = vpack.c.b16 %v92, %v92
  %v113 = vpack.c.b16 %v93, %v93
  %vm130 = vcmask 588800
  %v132 = vsel %vm130, %v15, 0
  %vm134 = vcmask 1043456
  %v136 = vsel %vm134, %v110, 0
  %v139 = vsel %vm134, %v111, 0
  %v142 = vsel %vm134, %v112, 0
  %v145 = vsel %vm134, %v113, 0
  %147 = vmatprep.subr.bf16.mxu0 %v95
  %148 = vmatpush1.bf16.msra.mxu0 %v94
  %149 = vmatprep.subr.bf16.mxu0 %v99
  %150 = vmatpush1.bf16.msra.mxu0 %v98
  %151 = vmatprep.subr.bf16.mxu0 %v103
  %152 = vmatpush1.bf16.msra.mxu0 %v102
  %153 = vmatprep.subr.bf16.mxu0 %v107
  %154 = vmatpush1.bf16.msra.mxu0 %v106
  %155 = vmatprep.subr.bf16.mxu0 %v139
  %156 = vmatpush1.bf16.msra.mxu0 %v136
  %157 = vmatprep.subr.bf16.mxu0 0
  %158 = vmatpush1.bf16.msra.mxu0 0
  %159 = vmatprep.subr.bf16.mxu0 0
  %160 = vmatpush1.bf16.msra.mxu0 0
  %161 = vmatprep.subr.bf16.mxu0 0
  %162 = vmatpush1.bf16.msra.mxu0 0
  %163 = vmatprep.subr.bf16.mxu0 0
  %164 = vmatpush1.bf16.msra.mxu0 0
  %165 = vmatprep.subr.bf16.mxu0 0
  %166 = vmatpush1.bf16.msra.mxu0 0
  %167 = vmatprep.subr.bf16.mxu0 0
  %168 = vmatpush1.bf16.msra.mxu0 0
  %169 = vmatprep.subr.bf16.mxu0 0
  %170 = vmatpush1.bf16.msra.mxu0 0
  %171 = vmatprep.subr.bf16.mxu0 0
  %172 = vmatpush1.bf16.msra.mxu0 0
  %173 = vmatprep.subr.bf16.mxu0 0
  %174 = vmatpush1.bf16.msra.mxu0 0
  %175 = vmatprep.subr.bf16.mxu0 0
  %176 = vmatpush1.bf16.msra.mxu0 0
  %177 = vmatprep.subr.bf16.mxu0 0
  %178 = vmatpush1.bf16.msra.mxu0 0
  %179 = vmatprep.mubr.bf16.mxu0 0
  %180 = vmatmul.mubr.bf16.gmra.mrb[0].mxu0 %v132
  %v181 = vpop.f32.mrb[0].mxu0
  %v182 = vadd.f32 %v38, %v181
  %v183 = vpop.f32.mrb[0].mxu0
  %v184 = vadd.f32 %v38, %v183
  %v185 = vpop.f32.mrb[0].mxu0
  %v186 = vpop.f32.mrb[0].mxu0
  %187 = vdwg.mxu0
  %188 = vmatprep.subr.bf16.mxu0 %v97
  %189 = vmatpush1.bf16.msra.mxu0 %v96
  %190 = vmatprep.subr.bf16.mxu0 %v101
  %191 = vmatpush1.bf16.msra.mxu0 %v100
  %192 = vmatprep.subr.bf16.mxu0 %v105
  %193 = vmatpush1.bf16.msra.mxu0 %v104
  %194 = vmatprep.subr.bf16.mxu0 %v109
  %195 = vmatpush1.bf16.msra.mxu0 %v108
  %196 = vmatprep.subr.bf16.mxu0 %v145
  %197 = vmatpush1.bf16.msra.mxu0 %v142
  %198 = vmatprep.subr.bf16.mxu0 0
  %199 = vmatpush1.bf16.msra.mxu0 0
  %200 = vmatprep.subr.bf16.mxu0 0
  %201 = vmatpush1.bf16.msra.mxu0 0
  %202 = vmatprep.subr.bf16.mxu0 0
  %203 = vmatpush1.bf16.msra.mxu0 0
  %204 = vmatprep.subr.bf16.mxu0 0
  %205 = vmatpush1.bf16.msra.mxu0 0
  %206 = vmatprep.subr.bf16.mxu0 0
  %207 = vmatpush1.bf16.msra.mxu0 0
  %208 = vmatprep.subr.bf16.mxu0 0
  %209 = vmatpush1.bf16.msra.mxu0 0
  %210 = vmatprep.subr.bf16.mxu0 0
  %211 = vmatpush1.bf16.msra.mxu0 0
  %212 = vmatprep.subr.bf16.mxu0 0
  %213 = vmatpush1.bf16.msra.mxu0 0
  %214 = vmatprep.subr.bf16.mxu0 0
  %215 = vmatpush1.bf16.msra.mxu0 0
  %216 = vmatprep.subr.bf16.mxu0 0
  %217 = vmatpush1.bf16.msra.mxu0 0
  %218 = vmatprep.subr.bf16.mxu0 0
  %219 = vmatpush1.bf16.msra.mxu0 0
  %220 = vmatprep.mubr.bf16.mxu0 0
  %221 = vmatmul.mubr.bf16.gmra.mrb[0].mxu0 %v132
  %v222 = vpop.f32.mrb[0].mxu0
  %v223 = vadd.f32 %v38, %v222
  %v224 = vpop.f32.mrb[0].mxu0
  %v225 = vadd.f32 %v38, %v224
  %v226 = vpop.f32.mrb[0].mxu0
  %v227 = vpop.f32.mrb[0].mxu0
  %228 = vdwg.mxu0
  %v229 = vsub.f32 0.0, %v182
  %v230 = vsub.f32 0.0, %v184
  %v231 = vsub.f32 0.0, %v223
  %v232 = vsub.f32 0.0, %v225
  %v233 = vmul.f32 %v229, 1.442695
  %v234 = vpow.pop %v233
  %v235 = vmul.f32 %v230, 1.442695
  %v236 = vpow.pop %v235
  %v237 = vmul.f32 %v231, 1.442695
  %v238 = vpow.pop %v237
  %v239 = vmul.f32 %v232, 1.442695
  %v240 = vpow.pop %v239
  %v241 = vadd.f32 %v234, 1.0
  %v242 = vadd.f32 %v236, 1.0
  %v243 = vadd.f32 %v238, 1.0
  %v244 = vadd.f32 %v240, 1.0
  %v245 = vrcp.pop %v241
  %v246 = vmul.f32 1.0, %v245
  %v247 = vrcp.pop %v242
  %v248 = vmul.f32 1.0, %v247
  %v249 = vrcp.pop %v243
  %v250 = vmul.f32 1.0, %v249
  %v251 = vrcp.pop %v244
  %v252 = vmul.f32 1.0, %v251
  %v257 = vcombine.low %v246, %v248
  %v258 = vcombine.low %v250, %v252
  %261 = vst [vmem:[%s3] sm:$0xff] %v257
  %262 = vst [vmem:[%s3 + $0x8] sm:$0xff] %v258
  // Predicated region
  $region14: #{forward.21} parent=0 // pred_check
    _
  $region15: #{forward.21} parent=0 // pred_check_branch
    %264 = sbr.rel (0) target = $region17
  $region16: #{forward.21} parent=0 // pred_region
    _
  $region17: #{forward.21} parent=0 // pred_fallthru
    _
  // Predicated region
  $region18: #{forward.21} parent=0 // pred_check
    _
  $region19: #{forward.21} parent=0 // pred_check_branch
    %266 = sbr.rel (0) target = $region21
  $region20: #{forward.21} parent=0 // pred_region
    _
  $region21: #{forward.21} parent=0 // pred_fallthru
    _

</llo_original>
